<compile_context>
chip_gen: v7x
topology: tpu7x:2x2x1
jax: 0.10.0
libtpu: 0.0.40
codegen_flags: <defaults>
</compile_context>

<pallas_src>
import jax
import jax.numpy as jnp
from jax.experimental import pallas as pl
from jax.experimental.pallas import tpu as pltpu


def _round_up(n, m):
    return ((n + m - 1) // m) * m


def _decoder_kernel(x_ref, w1_ref, b1_ref, w2_ref, b2_ref, w3_ref, b3_ref, o_ref):
    # Layer 1: bf16 x bf16 -> f32 accumulate (MXU); bias + ReLU in f32 (VPU).
    h = jnp.dot(x_ref[...], w1_ref[...], preferred_element_type=jnp.float32)
    h = jnp.maximum(h + b1_ref[...], 0.0)
    # Layer 2: cast activations to bf16 only for the MXU pass.
    h = jnp.dot(h.astype(jnp.bfloat16), w2_ref[...], preferred_element_type=jnp.float32)
    h = jnp.maximum(h + b2_ref[...], 0.0)
    # Layer 3: Linear, no activation.
    out = jnp.dot(h.astype(jnp.bfloat16), w3_ref[...], preferred_element_type=jnp.float32)
    o_ref[...] = (out + b3_ref[...]).astype(o_ref.dtype)


def decoder_forward(x, padded_params, out_dim, *, tm=256):
    """x: (B, feature_dim) f32.  padded_params: pre-transposed bf16 weights
    (hidden/output dims 128-padded) + f32 biases.  Returns (B, out_dim) f32,
    same semantics as the PyTorch Decoder.forward."""
    w1, b1, w2, b2, w3, b3 = padded_params
    B, F = x.shape
    assert w1.shape[0] == F
    Hp = w1.shape[1]
    Op = w3.shape[1]

    # Batch tile: multiple of 16 (bf16 sublanes); single grid step for small B.
    tm = max(16, _round_up(tm, 16))
    bp_min = _round_up(B, 16)
    if tm >= bp_min:
        tm = bp_min
    Bp = _round_up(B, tm)
    grid = (Bp // tm,)

    # Pad the batch and cast the MXU operand to bf16 (weights already bf16).
    x_p = jnp.zeros((Bp, F), jnp.bfloat16).at[:B, :].set(x.astype(jnp.bfloat16))

    # Advisory cost estimate for XLA's scheduler.
    flops = 2 * Bp * (F * Hp + Hp * Hp + Hp * Op)
    bytes_accessed = (
        x_p.size * 2 + Bp * Op * 4
        + (w1.size + w2.size + w3.size) * 2
        + (b1.size + b2.size + b3.size) * 4
    )
    cost = pl.CostEstimate(flops=flops, transcendentals=0,
                           bytes_accessed=bytes_accessed)

    # Real VMEM footprint + headroom (weights counted twice in case the
    # single-buffer fallback path double-buffers them).
    vmem_bytes = (
        2 * (w1.size + w2.size + w3.size) * 2        # resident bf16 weights
        + (b1.size + b2.size + b3.size) * 4          # f32 biases
        + 2 * tm * F * 2                             # double-buffered x tile (bf16)
        + 2 * tm * Op * 4                            # double-buffered out tile (f32)
        + 4 * tm * Hp * 4                            # f32 inter-layer activations
    )
    vmem_limit = min(int(1.5 * vmem_bytes) + (8 << 20), 64 << 20)

    def build(single_buffer_weights):
        def const_spec(shape):
            if single_buffer_weights:
                return pl.BlockSpec(shape, lambda i: (0, 0),
                                    pipeline_mode=pl.Buffered(1))
            return pl.BlockSpec(shape, lambda i: (0, 0))

        return pl.pallas_call(
            _decoder_kernel,
            out_shape=jax.ShapeDtypeStruct((Bp, Op), jnp.float32),
            grid=grid,
            in_specs=[
                # x tile streams with the grid (double-buffered by the pipeliner).
                pl.BlockSpec((tm, F), lambda i: (i, 0)),
                # Weights / biases: DMA'd once, VMEM-resident across steps.
                const_spec((F, Hp)), const_spec((1, Hp)),
                const_spec((Hp, Hp)), const_spec((1, Hp)),
                const_spec((Hp, Op)), const_spec((1, Op)),
            ],
            out_specs=pl.BlockSpec((tm, Op), lambda i: (i, 0)),
            compiler_params=pltpu.CompilerParams(
                dimension_semantics=("parallel",),
                vmem_limit_bytes=vmem_limit,
            ),
            cost_estimate=cost,
        )

    args = (x_p, w1, b1, w2, b2, w3, b3)
    try:
        out_p = build(True)(*args)
    except Exception:
        # Fallback if this jax version rejects pipeline_mode=pl.Buffered(1).
        out_p = build(False)(*args)

    # Strip batch / lane padding in the wrapper (kernel stores stay lane-dense).
    return out_p[:B, :out_dim]


def init_params(key, input_dim, feature_dim, hidden=500, dtype=jnp.float32):
    """Deterministic PyTorch-Linear-style init. Weights stored transposed (in, out)."""

    def linear_init(k, fan_in, fan_out):
        kw, kb = jax.random.split(k)
        bound = 1.0 / (fan_in ** 0.5)
        w_t = jax.random.uniform(kw, (fan_in, fan_out), dtype, -bound, bound)
        b = jax.random.uniform(kb, (1, fan_out), dtype, -bound, bound)
        return w_t, b

    k1, k2, k3 = jax.random.split(key, 3)
    w1, b1 = linear_init(k1, feature_dim, hidden)
    w2, b2 = linear_init(k2, hidden, hidden)
    w3, b3 = linear_init(k3, hidden, input_dim)
    return (w1, b1, w2, b2, w3, b3)


def pad_params(params, feature_dim, input_dim, hidden=500):
    """Pad hidden/output dims to 128 lanes; cast weights to bf16 (MXU operands).
    feature_dim is deliberately NOT padded (full-extent block is legal and cuts
    w1/x bytes when the feature dim is small).  Biases stay f32 (added to the
    f32 accumulator in-kernel)."""
    w1, b1, w2, b2, w3, b3 = params
    Hp = _round_up(hidden, 128)       # 500 -> 512
    Op = _round_up(input_dim, 128)

    def pad2(a, r, c, dtype):
        return jnp.zeros((r, c), dtype).at[: a.shape[0], : a.shape[1]].set(a.astype(dtype))

    return (
        pad2(w1, feature_dim, Hp, jnp.bfloat16), pad2(b1, 1, Hp, jnp.float32),
        pad2(w2, Hp, Hp, jnp.bfloat16),          pad2(b2, 1, Hp, jnp.float32),
        pad2(w3, Hp, Op, jnp.bfloat16),          pad2(b3, 1, Op, jnp.float32),
    )


if __name__ == "__main__":
    # Decoder(input_dim, feature_dim): maps feature_dim -> 500 -> 500 -> input_dim.
    input_dim, feature_dim, hidden = 64, 32, 500
    batch = 72  # not a multiple of 16: exercises batch padding

    key = jax.random.PRNGKey(0)
    kx, kp = jax.random.split(key)
    x = jax.random.normal(kx, (batch, feature_dim), dtype=jnp.float32)

    params = init_params(kp, input_dim, feature_dim, hidden)
    padded = pad_params(params, feature_dim, input_dim, hidden)

    # Default tm -> single grid step; tm=32 -> grid=(3,) exercises batch tiling
    # with VMEM-resident weights.
    out_single = jax.block_until_ready(decoder_forward(x, padded, input_dim))
    out_tiled = jax.block_until_ready(decoder_forward(x, padded, input_dim, tm=32))

    # f32 reference with the unpadded params (PyTorch Decoder.forward semantics).
    w1, b1, w2, b2, w3, b3 = params
    hp_prec = jax.lax.Precision.HIGHEST
    h = jnp.maximum(jnp.dot(x, w1, precision=hp_prec) + b1, 0.0)
    h = jnp.maximum(jnp.dot(h, w2, precision=hp_prec) + b2, 0.0)
    ref_f32 = jnp.dot(h, w3, precision=hp_prec) + b3

    # bf16-operand / f32-accumulate reference (what the kernel actually computes,
    # up to accumulation order).
    hb = jnp.maximum(
        jnp.dot(x.astype(jnp.bfloat16), w1.astype(jnp.bfloat16),
                preferred_element_type=jnp.float32) + b1, 0.0)
    hb = jnp.maximum(
        jnp.dot(hb.astype(jnp.bfloat16), w2.astype(jnp.bfloat16),
                preferred_element_type=jnp.float32) + b2, 0.0)
    ref_bf16 = jnp.dot(hb.astype(jnp.bfloat16), w3.astype(jnp.bfloat16),
                       preferred_element_type=jnp.float32) + b3

    assert out_single.shape == (batch, input_dim)
    assert out_tiled.shape == (batch, input_dim)
    for out in (out_single, out_tiled):
        # Tight check vs the bf16-operand reference.
        assert jnp.allclose(out, ref_bf16, atol=2e-3, rtol=2e-3), \
            float(jnp.max(jnp.abs(out - ref_bf16)))
        # Looser check vs the full-f32 module reference (bf16 operand rounding).
        assert jnp.allclose(out, ref_f32, atol=5e-2, rtol=5e-2), \
            float(jnp.max(jnp.abs(out - ref_f32)))

    print("KERNEL_OK")
</pallas_src>

<mosaic_0001>
module attributes {stable_mosaic.version = 11 : i64} {
  func.func @_decoder_kernel(%arg0: i32, %arg1: memref<80x32xbf16, #tpu.memory_space<vmem>>, %arg2: memref<32x512xbf16, #tpu.memory_space<vmem>>, %arg3: memref<1x512xf32, #tpu.memory_space<vmem>>, %arg4: memref<512x512xbf16, #tpu.memory_space<vmem>>, %arg5: memref<1x512xf32, #tpu.memory_space<vmem>>, %arg6: memref<512x128xbf16, #tpu.memory_space<vmem>>, %arg7: memref<1x128xf32, #tpu.memory_space<vmem>>, %arg8: memref<80x128xf32, #tpu.memory_space<vmem>>) attributes {dimension_semantics = [#tpu.dimension_semantics<parallel>], iteration_bounds = array<i64: 1>, scalar_prefetch = 0 : i64, scratch_operands = 0 : i64, tpu.core_type = #tpu.core_type<tc>, window_params = [{transform_indices = @transform_0, window_bounds = array<i64: 80, 32>}, {pipeline_mode = #tpu.pipeline_mode<synchronous>, transform_indices = @transform_1, window_bounds = array<i64: 32, 512>}, {pipeline_mode = #tpu.pipeline_mode<synchronous>, transform_indices = @transform_2, window_bounds = array<i64: 1, 512>}, {pipeline_mode = #tpu.pipeline_mode<synchronous>, transform_indices = @transform_3, window_bounds = array<i64: 512, 512>}, {pipeline_mode = #tpu.pipeline_mode<synchronous>, transform_indices = @transform_4, window_bounds = array<i64: 1, 512>}, {pipeline_mode = #tpu.pipeline_mode<synchronous>, transform_indices = @transform_5, window_bounds = array<i64: 512, 128>}, {pipeline_mode = #tpu.pipeline_mode<synchronous>, transform_indices = @transform_6, window_bounds = array<i64: 1, 128>}, {transform_indices = @transform_7, window_bounds = array<i64: 80, 128>}]} {
    %c0 = arith.constant 0 : index
    %c0_0 = arith.constant 0 : index
    %0 = vector.load %arg1[%c0, %c0_0] : memref<80x32xbf16, #tpu.memory_space<vmem>>, vector<80x32xbf16>
    %c0_1 = arith.constant 0 : index
    %c0_2 = arith.constant 0 : index
    %1 = vector.load %arg2[%c0_1, %c0_2] : memref<32x512xbf16, #tpu.memory_space<vmem>>, vector<32x512xbf16>
    %cst = arith.constant dense<0.000000e+00> : vector<80x512xf32>
    %2 = tpu.matmul %0, %1, %cst {dimension_numbers = #tpu.dot_dimension_numbers<[1], [0], [0], [1], [0, 0, 1, 1], [], []>} : vector<80x32xbf16>, vector<32x512xbf16>, vector<80x512xf32> -> vector<80x512xf32>
    %c0_3 = arith.constant 0 : index
    %c0_4 = arith.constant 0 : index
    %3 = vector.load %arg3[%c0_3, %c0_4] : memref<1x512xf32, #tpu.memory_space<vmem>>, vector<1x512xf32>
    %4 = vector.broadcast %3 : vector<1x512xf32> to vector<80x512xf32>
    %5 = arith.addf %2, %4 : vector<80x512xf32>
    %cst_5 = arith.constant 0.000000e+00 : f32
    %6 = vector.broadcast %cst_5 : f32 to vector<80x512xf32>
    %7 = arith.maximumf %5, %6 : vector<80x512xf32>
    %8 = arith.truncf %7 : vector<80x512xf32> to vector<80x512xbf16>
    %c0_6 = arith.constant 0 : index
    %c0_7 = arith.constant 0 : index
    %9 = vector.load %arg4[%c0_6, %c0_7] : memref<512x512xbf16, #tpu.memory_space<vmem>>, vector<512x512xbf16>
    %cst_8 = arith.constant dense<0.000000e+00> : vector<80x512xf32>
    %10 = tpu.matmul %8, %9, %cst_8 {dimension_numbers = #tpu.dot_dimension_numbers<[1], [0], [0], [1], [0, 0, 1, 1], [], []>} : vector<80x512xbf16>, vector<512x512xbf16>, vector<80x512xf32> -> vector<80x512xf32>
    %c0_9 = arith.constant 0 : index
    %c0_10 = arith.constant 0 : index
    %11 = vector.load %arg5[%c0_9, %c0_10] : memref<1x512xf32, #tpu.memory_space<vmem>>, vector<1x512xf32>
    %12 = vector.broadcast %11 : vector<1x512xf32> to vector<80x512xf32>
    %13 = arith.addf %10, %12 : vector<80x512xf32>
    %cst_11 = arith.constant 0.000000e+00 : f32
    %14 = vector.broadcast %cst_11 : f32 to vector<80x512xf32>
    %15 = arith.maximumf %13, %14 : vector<80x512xf32>
    %16 = arith.truncf %15 : vector<80x512xf32> to vector<80x512xbf16>
    %c0_12 = arith.constant 0 : index
    %c0_13 = arith.constant 0 : index
    %17 = vector.load %arg6[%c0_12, %c0_13] : memref<512x128xbf16, #tpu.memory_space<vmem>>, vector<512x128xbf16>
    %cst_14 = arith.constant dense<0.000000e+00> : vector<80x128xf32>
    %18 = tpu.matmul %16, %17, %cst_14 {dimension_numbers = #tpu.dot_dimension_numbers<[1], [0], [0], [1], [0, 0, 1, 1], [], []>} : vector<80x512xbf16>, vector<512x128xbf16>, vector<80x128xf32> -> vector<80x128xf32>
    %c0_15 = arith.constant 0 : index
    %c0_16 = arith.constant 0 : index
    %19 = vector.load %arg7[%c0_15, %c0_16] : memref<1x128xf32, #tpu.memory_space<vmem>>, vector<1x128xf32>
    %20 = vector.broadcast %19 : vector<1x128xf32> to vector<80x128xf32>
    %21 = arith.addf %18, %20 : vector<80x128xf32>
    %c0_17 = arith.constant 0 : index
    %c0_18 = arith.constant 0 : index
    %22 = vector.load %arg8[%c0_17, %c0_18] : memref<80x128xf32, #tpu.memory_space<vmem>>, vector<80x128xf32>
    tpu.vector_store %arg8[%c0_17, %c0_18], %21 {strides = array<i32>} : memref<80x128xf32, #tpu.memory_space<vmem>>, vector<80x128xf32>,
    return
  }
  func.func @transform_0(%arg0: i32) -> (i32, i32) {
    %c0_i32 = arith.constant 0 : i32
    %c0_i32_0 = arith.constant 0 : i32
    return %arg0, %c0_i32 : i32, i32
  }
  func.func @transform_1(%arg0: i32) -> (i32, i32) {
    %c0_i32 = arith.constant 0 : i32
    %c0_i32_0 = arith.constant 0 : i32
    %c0_i32_1 = arith.constant 0 : i32
    return %c0_i32, %c0_i32_0 : i32, i32
  }
  func.func @transform_2(%arg0: i32) -> (i32, i32) {
    %c0_i32 = arith.constant 0 : i32
    %c0_i32_0 = arith.constant 0 : i32
    %c0_i32_1 = arith.constant 0 : i32
    return %c0_i32, %c0_i32_0 : i32, i32
  }
  func.func @transform_3(%arg0: i32) -> (i32, i32) {
    %c0_i32 = arith.constant 0 : i32
    %c0_i32_0 = arith.constant 0 : i32
    %c0_i32_1 = arith.constant 0 : i32
    return %c0_i32, %c0_i32_0 : i32, i32
  }
  func.func @transform_4(%arg0: i32) -> (i32, i32) {
    %c0_i32 = arith.constant 0 : i32
    %c0_i32_0 = arith.constant 0 : i32
    %c0_i32_1 = arith.constant 0 : i32
    return %c0_i32, %c0_i32_0 : i32, i32
  }
  func.func @transform_5(%arg0: i32) -> (i32, i32) {
    %c0_i32 = arith.constant 0 : i32
    %c0_i32_0 = arith.constant 0 : i32
    %c0_i32_1 = arith.constant 0 : i32
    return %c0_i32, %c0_i32_0 : i32, i32
  }
  func.func @transform_6(%arg0: i32) -> (i32, i32) {
    %c0_i32 = arith.constant 0 : i32
    %c0_i32_0 = arith.constant 0 : i32
    %c0_i32_1 = arith.constant 0 : i32
    return %c0_i32, %c0_i32_0 : i32, i32
  }
  func.func @transform_7(%arg0: i32) -> (i32, i32) {
    %c0_i32 = arith.constant 0 : i32
    %c0_i32_0 = arith.constant 0 : i32
    return %arg0, %c0_i32 : i32, i32
  }
}

module attributes {stable_mosaic.version = 11 : i64} {
  func.func @_decoder_kernel(%arg0: i32, %arg1: memref<80x32xbf16, #tpu.memory_space<vmem>>, %arg2: memref<32x512xbf16, #tpu.memory_space<vmem>>, %arg3: memref<1x512xf32, #tpu.memory_space<vmem>>, %arg4: memref<512x512xbf16, #tpu.memory_space<vmem>>, %arg5: memref<1x512xf32, #tpu.memory_space<vmem>>, %arg6: memref<512x128xbf16, #tpu.memory_space<vmem>>, %arg7: memref<1x128xf32, #tpu.memory_space<vmem>>, %arg8: memref<80x128xf32, #tpu.memory_space<vmem>>) attributes {dimension_semantics = [#tpu.dimension_semantics<parallel>], iteration_bounds = array<i64: 1>, scalar_prefetch = 0 : i64, scratch_operands = 0 : i64, tpu.core_type = #tpu.core_type<tc>, window_params = [{transform_indices = @transform_0, window_bounds = array<i64: 80, 32>}, {pipeline_mode = #tpu.pipeline_mode<synchronous>, transform_indices = @transform_1, window_bounds = array<i64: 32, 512>}, {pipeline_mode = #tpu.pipeline_mode<synchronous>, transform_indices = @transform_2, window_bounds = array<i64: 1, 512>}, {pipeline_mode = #tpu.pipeline_mode<synchronous>, transform_indices = @transform_3, window_bounds = array<i64: 512, 512>}, {pipeline_mode = #tpu.pipeline_mode<synchronous>, transform_indices = @transform_4, window_bounds = array<i64: 1, 512>}, {pipeline_mode = #tpu.pipeline_mode<synchronous>, transform_indices = @transform_5, window_bounds = array<i64: 512, 128>}, {pipeline_mode = #tpu.pipeline_mode<synchronous>, transform_indices = @transform_6, window_bounds = array<i64: 1, 128>}, {transform_indices = @transform_7, window_bounds = array<i64: 80, 128>}]} {
    %c0 = arith.constant 0 : index
    %c0_0 = arith.constant 0 : index
    %0 = vector.load %arg1[%c0, %c0_0] : memref<80x32xbf16, #tpu.memory_space<vmem>>, vector<80x32xbf16>
    %c0_1 = arith.constant 0 : index
    %c0_2 = arith.constant 0 : index
    %1 = vector.load %arg2[%c0_1, %c0_2] : memref<32x512xbf16, #tpu.memory_space<vmem>>, vector<32x512xbf16>
    %cst = arith.constant dense<0.000000e+00> : vector<80x512xf32>
    %2 = tpu.matmul %0, %1, %cst {dimension_numbers = #tpu.dot_dimension_numbers<[1], [0], [0], [1], [0, 0, 1, 1], [], []>} : vector<80x32xbf16>, vector<32x512xbf16>, vector<80x512xf32> -> vector<80x512xf32>
    %c0_3 = arith.constant 0 : index
    %c0_4 = arith.constant 0 : index
    %3 = vector.load %arg3[%c0_3, %c0_4] : memref<1x512xf32, #tpu.memory_space<vmem>>, vector<1x512xf32>
    %4 = vector.broadcast %3 : vector<1x512xf32> to vector<80x512xf32>
    %5 = arith.addf %2, %4 : vector<80x512xf32>
    %cst_5 = arith.constant 0.000000e+00 : f32
    %6 = vector.broadcast %cst_5 : f32 to vector<80x512xf32>
    %7 = arith.maximumf %5, %6 : vector<80x512xf32>
    %8 = arith.truncf %7 : vector<80x512xf32> to vector<80x512xbf16>
    %c0_6 = arith.constant 0 : index
    %c0_7 = arith.constant 0 : index
    %9 = vector.load %arg4[%c0_6, %c0_7] : memref<512x512xbf16, #tpu.memory_space<vmem>>, vector<512x512xbf16>
    %cst_8 = arith.constant dense<0.000000e+00> : vector<80x512xf32>
    %10 = tpu.matmul %8, %9, %cst_8 {dimension_numbers = #tpu.dot_dimension_numbers<[1], [0], [0], [1], [0, 0, 1, 1], [], []>} : vector<80x512xbf16>, vector<512x512xbf16>, vector<80x512xf32> -> vector<80x512xf32>
    %c0_9 = arith.constant 0 : index
    %c0_10 = arith.constant 0 : index
    %11 = vector.load %arg5[%c0_9, %c0_10] : memref<1x512xf32, #tpu.memory_space<vmem>>, vector<1x512xf32>
    %12 = vector.broadcast %11 : vector<1x512xf32> to vector<80x512xf32>
    %13 = arith.addf %10, %12 : vector<80x512xf32>
    %cst_11 = arith.constant 0.000000e+00 : f32
    %14 = vector.broadcast %cst_11 : f32 to vector<80x512xf32>
    %15 = arith.maximumf %13, %14 : vector<80x512xf32>
    %16 = arith.truncf %15 : vector<80x512xf32> to vector<80x512xbf16>
    %c0_12 = arith.constant 0 : index
    %c0_13 = arith.constant 0 : index
    %17 = vector.load %arg6[%c0_12, %c0_13] : memref<512x128xbf16, #tpu.memory_space<vmem>>, vector<512x128xbf16>
    %cst_14 = arith.constant dense<0.000000e+00> : vector<80x128xf32>
    %18 = tpu.matmul %16, %17, %cst_14 {dimension_numbers = #tpu.dot_dimension_numbers<[1], [0], [0], [1], [0, 0, 1, 1], [], []>} : vector<80x512xbf16>, vector<512x128xbf16>, vector<80x128xf32> -> vector<80x128xf32>
    %c0_15 = arith.constant 0 : index
    %c0_16 = arith.constant 0 : index
    %19 = vector.load %arg7[%c0_15, %c0_16] : memref<1x128xf32, #tpu.memory_space<vmem>>, vector<1x128xf32>
    %20 = vector.broadcast %19 : vector<1x128xf32> to vector<80x128xf32>
    %21 = arith.addf %18, %20 : vector<80x128xf32>
    %c0_17 = arith.constant 0 : index
    %c0_18 = arith.constant 0 : index
    %22 = vector.load %arg8[%c0_17, %c0_18] : memref<80x128xf32, #tpu.memory_space<vmem>>, vector<80x128xf32>
    tpu.vector_store %arg8[%c0_17, %c0_18], %21 {strides = array<i32>} : memref<80x128xf32, #tpu.memory_space<vmem>>, vector<80x128xf32>,
    return
  }
  func.func @transform_0(%arg0: i32) -> (i32, i32) {
    %c0_i32 = arith.constant 0 : i32
    %c0_i32_0 = arith.constant 0 : i32
    return %arg0, %c0_i32 : i32, i32
  }
  func.func @transform_1(%arg0: i32) -> (i32, i32) {
    %c0_i32 = arith.constant 0 : i32
    %c0_i32_0 = arith.constant 0 : i32
    %c0_i32_1 = arith.constant 0 : i32
    return %c0_i32, %c0_i32_0 : i32, i32
  }
  func.func @transform_2(%arg0: i32) -> (i32, i32) {
    %c0_i32 = arith.constant 0 : i32
    %c0_i32_0 = arith.constant 0 : i32
    %c0_i32_1 = arith.constant 0 : i32
    return %c0_i32, %c0_i32_0 : i32, i32
  }
  func.func @transform_3(%arg0: i32) -> (i32, i32) {
    %c0_i32 = arith.constant 0 : i32
    %c0_i32_0 = arith.constant 0 : i32
    %c0_i32_1 = arith.constant 0 : i32
    return %c0_i32, %c0_i32_0 : i32, i32
  }
  func.func @transform_4(%arg0: i32) -> (i32, i32) {
    %c0_i32 = arith.constant 0 : i32
    %c0_i32_0 = arith.constant 0 : i32
    %c0_i32_1 = arith.constant 0 : i32
    return %c0_i32, %c0_i32_0 : i32, i32
  }
  func.func @transform_5(%arg0: i32) -> (i32, i32) {
    %c0_i32 = arith.constant 0 : i32
    %c0_i32_0 = arith.constant 0 : i32
    %c0_i32_1 = arith.constant 0 : i32
    return %c0_i32, %c0_i32_0 : i32, i32
  }
  func.func @transform_6(%arg0: i32) -> (i32, i32) {
    %c0_i32 = arith.constant 0 : i32
    %c0_i32_0 = arith.constant 0 : i32
    %c0_i32_1 = arith.constant 0 : i32
    return %c0_i32, %c0_i32_0 : i32, i32
  }
  func.func @transform_7(%arg0: i32) -> (i32, i32) {
    %c0_i32 = arith.constant 0 : i32
    %c0_i32_0 = arith.constant 0 : i32
    return %arg0, %c0_i32 : i32, i32
  }
}

</mosaic_0001>

<llo_original>
// kernel: tpu_custom_call.1
$region0: #{tpu_custom_call.1}
  #allocation0 [shape = 'u32[]', space=smem, size = 0x4, offset = 0x4, fixed_abs, tag = 'smem constant byte address 0x4 - core index']
  #allocation1 [shape = 'u32[144,128]{1,0:T(1,128)}', space=vmem, size = 0x12000, scoped, tag = 'internal scratch']
  %s0 = inlined_call_operand.vmem [shape: bf16[80,32], index: 0, kind: input, shape index: {}]
  %s1 = inlined_call_operand.hbm [shape: bf16[32,512], index: 1, kind: input, shape index: {}]
  %s2 = inlined_call_operand.vmem [shape: f32[1,512], index: 2, kind: input, shape index: {}]
  %s3 = inlined_call_operand.hbm [shape: bf16[512,512], index: 3, kind: input, shape index: {}]
  %s4 = inlined_call_operand.vmem [shape: f32[1,512], index: 4, kind: input, shape index: {}]
  %s5 = inlined_call_operand.hbm [shape: bf16[512,128], index: 5, kind: input, shape index: {}]
  %s6 = inlined_call_operand.vmem [shape: f32[1,128], index: 6, kind: input, shape index: {}]
  %s7 = inlined_call_operand.hbm [shape: f32[80,128], index: 7, kind: output, shape index: {}]
  %s8 = sld [smem:[#allocation0]]
  $region50: #{tpu_custom_call.1} parent=0
    _
  %s10 = ssub.s32 1, %s8
  %s11 = scalar_select 0, %s10, %s8
  $region1: #{tpu_custom_call.1} parent=0
    #allocation2 [shape = 'u8[32768]{0}', space=vmem, size = 0x8000, scoped, tag = 'input window, operand 1, single buffered']
    #allocation3 [shape = 's32[1]{0}', space=sflag, size = 0x4, scoped, tag = 'scoped memory for tpu_custom_call.1']
    #allocation4 [shape = 's32[1]{0}', space=sflag, size = 0x4, scoped, tag = 'scoped memory for tpu_custom_call.1']
    #allocation5 [shape = 'u8[524288]{0}', space=vmem, size = 0x80000, scoped, tag = 'input window, operand 3, single buffered']
    #allocation6 [shape = 's32[1]{0}', space=sflag, size = 0x4, scoped, tag = 'scoped memory for tpu_custom_call.1']
    #allocation7 [shape = 'u8[131072]{0}', space=vmem, size = 0x20000, scoped, tag = 'input window, operand 5, single buffered']
    #allocation8 [shape = 'u8[40960]{0}', space=vmem, size = 0xa000, scoped, tag = 'output window, operand 0, single buffered']
    %12 = vsyncpa [#allocation3], 0
    %13 = vsyncpa [#allocation6], 0
    %14 = vsyncpa [#allocation4], 0
    // Predicated region
    $region2: #{tpu_custom_call.1} parent=1 // pred_check
      _
    $region3: #{tpu_custom_call.1} parent=1 // pred_check_branch
      %16 = sbr.rel (0) target = $region5
    $region4: #{tpu_custom_call.1} parent=1 // pred_region
      _
    $region5: #{tpu_custom_call.1} parent=1 // pred_fallthru
      _
    // Predicated region
    $region6: #{tpu_custom_call.1} parent=1 // pred_check
      _
    $region7: #{tpu_custom_call.1} parent=1 // pred_check_branch
      %18 = sbr.rel (0) target = $region9
    $region8: #{tpu_custom_call.1} parent=1 // pred_region
      %s20 = ssub.s32 1024, 1024
      %21 = vsyncadd [#allocation3], %s20
      %s22 = sshll.u32 [#allocation2], 4
      %s23 = int_to_ptr.vmem [resolvable:$true] %s22
      %28 = dma.hbm_to_vmem [thread:$0]  %s1, 1024, %s23, [#allocation3], 256, 256, 16
    $region9: #{tpu_custom_call.1} parent=1 // pred_fallthru
      _
    // Predicated region
    $region10: #{tpu_custom_call.1} parent=1 // pred_check
      _
    $region11: #{tpu_custom_call.1} parent=1 // pred_check_branch
      %30 = sbr.rel (0) target = $region13
    $region12: #{tpu_custom_call.1} parent=1 // pred_region
      _
    $region13: #{tpu_custom_call.1} parent=1 // pred_fallthru
      _
    // Predicated region
    $region14: #{tpu_custom_call.1} parent=1 // pred_check
      _
    $region15: #{tpu_custom_call.1} parent=1 // pred_check_branch
      %32 = sbr.rel (0) target = $region17
    $region16: #{tpu_custom_call.1} parent=1 // pred_region
      %s34 = ssub.s32 16384, 16384
      %35 = vsyncadd [#allocation6], %s34
      %s36 = sshll.u32 [#allocation5], 4
      %s37 = int_to_ptr.vmem [resolvable:$true] %s36
      %42 = dma.hbm_to_vmem [thread:$0]  %s3, 16384, %s37, [#allocation6], 256, 256, 16
    $region17: #{tpu_custom_call.1} parent=1 // pred_fallthru
      _
    // Predicated region
    $region18: #{tpu_custom_call.1} parent=1 // pred_check
      _
    $region19: #{tpu_custom_call.1} parent=1 // pred_check_branch
      %44 = sbr.rel (0) target = $region21
    $region20: #{tpu_custom_call.1} parent=1 // pred_region
      _
    $region21: #{tpu_custom_call.1} parent=1 // pred_fallthru
      _
    // Predicated region
    $region22: #{tpu_custom_call.1} parent=1 // pred_check
      _
    $region23: #{tpu_custom_call.1} parent=1 // pred_check_branch
      %46 = sbr.rel (0) target = $region25
    $region24: #{tpu_custom_call.1} parent=1 // pred_region
      %s48 = ssub.s32 4096, 4096
      %49 = vsyncadd [#allocation6], %s48
      %s50 = sshll.u32 [#allocation7], 4
      %s51 = int_to_ptr.vmem [resolvable:$true] %s50
      %56 = dma.hbm_to_vmem [thread:$0]  %s5, 4096, %s51, [#allocation6], 64, 64, 4
    $region25: #{tpu_custom_call.1} parent=1 // pred_fallthru
      _
    // Predicated region
    $region26: #{tpu_custom_call.1} parent=1 // pred_check
      _
    $region27: #{tpu_custom_call.1} parent=1 // pred_check_branch
      %58 = sbr.rel (0) target = $region29
    $region28: #{tpu_custom_call.1} parent=1 // pred_region
      _
    $region29: #{tpu_custom_call.1} parent=1 // pred_fallthru
      _
    // Predicated region
    $region30: #{tpu_custom_call.1} parent=1 // pred_check
      _
    $region31: #{tpu_custom_call.1} parent=1 // pred_check_branch
      %60 = sbr.rel (0) target = $region33
    $region32: #{tpu_custom_call.1} parent=1 // pred_region
      %61 = dma.done [#allocation3], 1024
    $region33: #{tpu_custom_call.1} parent=1 // pred_fallthru
      _
    // Predicated region
    $region34: #{tpu_custom_call.1} parent=1 // pred_check
      _
    $region35: #{tpu_custom_call.1} parent=1 // pred_check_branch
      %63 = sbr.rel (0) target = $region37
    $region36: #{tpu_custom_call.1} parent=1 // pred_region
      %64 = dma.done [#allocation6], 16384
    $region37: #{tpu_custom_call.1} parent=1 // pred_fallthru
      _
    // Predicated region
    $region38: #{tpu_custom_call.1} parent=1 // pred_check
      _
    $region39: #{tpu_custom_call.1} parent=1 // pred_check_branch
      %66 = sbr.rel (0) target = $region41
    $region40: #{tpu_custom_call.1} parent=1 // pred_region
      %67 = dma.done [#allocation6], 4096
    $region41: #{tpu_custom_call.1} parent=1 // pred_fallthru
      _
    %v69 = vld [vmem:[%s0] sm:$0xf]
    %v70 = vld [vmem:[%s0 + $0x4] sm:$0xf]
    %v71 = vld [vmem:[%s0 + $0x8] sm:$0xf]
    %v72 = vld [vmem:[%s0 + $0xc] sm:$0xf]
    %v73 = vld [vmem:[%s0 + $0x10] sm:$0xf]
    %v74 = vld [vmem:[%s0 + $0x14] sm:$0xf]
    %v75 = vld [vmem:[%s0 + $0x18] sm:$0xf]
    %v76 = vld [vmem:[%s0 + $0x1c] sm:$0xf]
    %v77 = vld [vmem:[%s0 + $0x20] sm:$0xf]
    %v78 = vld [vmem:[%s0 + $0x24] sm:$0xf]
    %v79 = vld [vmem:[#allocation2] sm:$0xff]
    %v80 = vld [vmem:[#allocation2 + $0x8] sm:$0xff]
    %v81 = vld [vmem:[#allocation2 + $0x10] sm:$0xff]
    %v82 = vld [vmem:[#allocation2 + $0x18] sm:$0xff]
    %v83 = vld [vmem:[#allocation2 + $0x20] sm:$0xff]
    %v84 = vld [vmem:[#allocation2 + $0x28] sm:$0xff]
    %v85 = vld [vmem:[#allocation2 + $0x30] sm:$0xff]
    %v86 = vld [vmem:[#allocation2 + $0x38] sm:$0xff]
    %v87 = vld [vmem:[%s2] sm:$0xf]
    %v89 = vlaneseq
    %v90 = vshrl.u32 %v89, 7
    %v91 = vsub.s32 0, %v90
    %v92 = vrot.slane %v87, %v91
    %v93 = vlaneseq
    %v94 = vshrl.u32 %v93, 7
    %v95 = vsub.s32 1, %v94
    %v96 = vrot.slane %v87, %v95
    %v97 = vlaneseq
    %v98 = vshrl.u32 %v97, 7
    %v99 = vsub.s32 2, %v98
    %v100 = vrot.slane %v87, %v99
    %v101 = vlaneseq
    %v102 = vshrl.u32 %v101, 7
    %v103 = vsub.s32 3, %v102
    %v104 = vrot.slane %v87, %v103
    %v119 = vunpack.c.l.b16 %v69
    %v120 = vunpack.c.l.b16 %v70
    %v121 = vunpack.c.l.b16 %v71
    %v122 = vunpack.c.l.b16 %v72
    %v123 = vunpack.c.l.b16 %v73
    %v124 = vunpack.c.l.b16 %v74
    %v125 = vunpack.c.l.b16 %v75
    %v126 = vunpack.c.l.b16 %v76
    %v127 = vunpack.c.l.b16 %v77
    %v128 = vunpack.c.l.b16 %v78
    %v129 = vpack.c.b16 %v120, %v119
    %v130 = vpack.c.b16 %v122, %v121
    %v131 = vpack.c.b16 %v124, %v123
    %v132 = vpack.c.b16 %v126, %v125
    %v133 = vpack.c.b16 %v128, %v127
    %v142 = vunpack.c.l.b16 %v79
    %v143 = vunpack.c.h.b16 %v79
    %v144 = vunpack.c.l.b16 %v80
    %v145 = vunpack.c.h.b16 %v80
    %v146 = vunpack.c.l.b16 %v81
    %v147 = vunpack.c.h.b16 %v81
    %v148 = vunpack.c.l.b16 %v82
    %v149 = vunpack.c.h.b16 %v82
    %v150 = vunpack.c.l.b16 %v83
    %v151 = vunpack.c.h.b16 %v83
    %v152 = vunpack.c.l.b16 %v84
    %v153 = vunpack.c.h.b16 %v84
    %v154 = vunpack.c.l.b16 %v85
    %v155 = vunpack.c.h.b16 %v85
    %v156 = vunpack.c.l.b16 %v86
    %v157 = vunpack.c.h.b16 %v86
    %v158 = vpack.c.b16 %v146, %v142
    %v159 = vpack.c.b16 %v147, %v143
    %v160 = vpack.c.b16 %v148, %v144
    %v161 = vpack.c.b16 %v149, %v145
    %v162 = vpack.c.b16 %v154, %v150
    %v163 = vpack.c.b16 %v155, %v151
    %v164 = vpack.c.b16 %v156, %v152
    %v165 = vpack.c.b16 %v157, %v153
    %vm174 = vcmask 261120
    %v176 = vsel %vm174, %v129, 0
    %v179 = vsel %vm174, %v130, 0
    %v182 = vsel %vm174, %v131, 0
    %v185 = vsel %vm174, %v132, 0
    %v188 = vsel %vm174, %v133, 0
    %190 = vmatprep.subr.bf16.mxu0 %v159
    %191 = vmatpush1.bf16.msra.mxu0 %v158
    %192 = vmatprep.subr.bf16.mxu0 %v163
    %193 = vmatpush1.bf16.msra.mxu0 %v162
    %194 = vmatprep.subr.bf16.mxu0 0
    %195 = vmatpush1.bf16.msra.mxu0 0
    %196 = vmatprep.subr.bf16.mxu0 0
    %197 = vmatpush1.bf16.msra.mxu0 0
    %198 = vmatprep.subr.bf16.mxu0 0
    %199 = vmatpush1.bf16.msra.mxu0 0
    %200 = vmatprep.subr.bf16.mxu0 0
    %201 = vmatpush1.bf16.msra.mxu0 0
    %202 = vmatprep.subr.bf16.mxu0 0
    %203 = vmatpush1.bf16.msra.mxu0 0
    %204 = vmatprep.subr.bf16.mxu0 0
    %205 = vmatpush1.bf16.msra.mxu0 0
    %206 = vmatprep.subr.bf16.mxu0 0
    %207 = vmatpush1.bf16.msra.mxu0 0
    %208 = vmatprep.subr.bf16.mxu0 0
    %209 = vmatpush1.bf16.msra.mxu0 0
    %210 = vmatprep.subr.bf16.mxu0 0
    %211 = vmatpush1.bf16.msra.mxu0 0
    %212 = vmatprep.subr.bf16.mxu0 0
    %213 = vmatpush1.bf16.msra.mxu0 0
    %214 = vmatprep.subr.bf16.mxu0 0
    %215 = vmatpush1.bf16.msra.mxu0 0
    %216 = vmatprep.subr.bf16.mxu0 0
    %217 = vmatpush1.bf16.msra.mxu0 0
    %218 = vmatprep.subr.bf16.mxu0 0
    %219 = vmatpush1.bf16.msra.mxu0 0
    %220 = vmatprep.subr.bf16.mxu0 0
    %221 = vmatpush1.bf16.msra.mxu0 0
    %222 = vmatprep.mubr.bf16.mxu0 0
    %223 = vmatmul.mubr.bf16.gmra.mrb[0].mxu0 %v176
    %v224 = vpop.f32.mrb[0].mxu0
    %v225 = vadd.f32 %v92, %v224
    %v226 = vpop.f32.mrb[0].mxu0
    %v227 = vadd.f32 %v96, %v226
    %v228 = vpop.f32.mrb[0].mxu0
    %v229 = vadd.f32 %v92, %v228
    %v230 = vpop.f32.mrb[0].mxu0
    %v231 = vadd.f32 %v96, %v230
    %232 = vmatprep.mubr.bf16.mxu0 0
    %233 = vmatmul.mubr.bf16.gmra.mrb[0].mxu0 %v179
    %v234 = vpop.f32.mrb[0].mxu0
    %v235 = vadd.f32 %v92, %v234
    %v236 = vpop.f32.mrb[0].mxu0
    %v237 = vadd.f32 %v96, %v236
    %v238 = vpop.f32.mrb[0].mxu0
    %v239 = vadd.f32 %v92, %v238
    %v240 = vpop.f32.mrb[0].mxu0
    %v241 = vadd.f32 %v96, %v240
    %242 = vmatprep.mubr.bf16.mxu0 0
    %243 = vmatmul.mubr.bf16.gmra.mrb[0].mxu0 %v182
    %v244 = vpop.f32.mrb[0].mxu0
    %v245 = vadd.f32 %v92, %v244
    %v246 = vpop.f32.mrb[0].mxu0
    %v247 = vadd.f32 %v96, %v246
    %v248 = vpop.f32.mrb[0].mxu0
    %v249 = vadd.f32 %v92, %v248
    %v250 = vpop.f32.mrb[0].mxu0
    %v251 = vadd.f32 %v96, %v250
    %252 = vmatprep.mubr.bf16.mxu0 0
    %253 = vmatmul.mubr.bf16.gmra.mrb[0].mxu0 %v185
    %v254 = vpop.f32.mrb[0].mxu0
    %v255 = vadd.f32 %v92, %v254
    %v256 = vpop.f32.mrb[0].mxu0
    %v257 = vadd.f32 %v96, %v256
    %v258 = vpop.f32.mrb[0].mxu0
    %v259 = vadd.f32 %v92, %v258
    %v260 = vpop.f32.mrb[0].mxu0
    %v261 = vadd.f32 %v96, %v260
    %262 = vmatprep.mubr.bf16.mxu0 0
    %263 = vmatmul.mubr.bf16.gmra.mrb[0].mxu0 %v188
    %v264 = vpop.f32.mrb[0].mxu0
    %v265 = vadd.f32 %v92, %v264
    %v266 = vpop.f32.mrb[0].mxu0
    %v267 = vadd.f32 %v96, %v266
    %v268 = vpop.f32.mrb[0].mxu0
    %v269 = vadd.f32 %v92, %v268
    %v270 = vpop.f32.mrb[0].mxu0
    %v271 = vadd.f32 %v96, %v270
    %272 = vdwg.mxu0
    %273 = vmatprep.subr.bf16.mxu0 %v161
    %274 = vmatpush1.bf16.msra.mxu0 %v160
    %275 = vmatprep.subr.bf16.mxu0 %v165
    %276 = vmatpush1.bf16.msra.mxu0 %v164
    %277 = vmatprep.subr.bf16.mxu0 0
    %278 = vmatpush1.bf16.msra.mxu0 0
    %279 = vmatprep.subr.bf16.mxu0 0
    %280 = vmatpush1.bf16.msra.mxu0 0
    %281 = vmatprep.subr.bf16.mxu0 0
    %282 = vmatpush1.bf16.msra.mxu0 0
    %283 = vmatprep.subr.bf16.mxu0 0
    %284 = vmatpush1.bf16.msra.mxu0 0
    %285 = vmatprep.subr.bf16.mxu0 0
    %286 = vmatpush1.bf16.msra.mxu0 0
    %287 = vmatprep.subr.bf16.mxu0 0
    %288 = vmatpush1.bf16.msra.mxu0 0
    %289 = vmatprep.subr.bf16.mxu0 0
    %290 = vmatpush1.bf16.msra.mxu0 0
    %291 = vmatprep.subr.bf16.mxu0 0
    %292 = vmatpush1.bf16.msra.mxu0 0
    %293 = vmatprep.subr.bf16.mxu0 0
    %294 = vmatpush1.bf16.msra.mxu0 0
    %295 = vmatprep.subr.bf16.mxu0 0
    %296 = vmatpush1.bf16.msra.mxu0 0
    %297 = vmatprep.subr.bf16.mxu0 0
    %298 = vmatpush1.bf16.msra.mxu0 0
    %299 = vmatprep.subr.bf16.mxu0 0
    %300 = vmatpush1.bf16.msra.mxu0 0
    %301 = vmatprep.subr.bf16.mxu0 0
    %302 = vmatpush1.bf16.msra.mxu0 0
    %303 = vmatprep.subr.bf16.mxu0 0
    %304 = vmatpush1.bf16.msra.mxu0 0
    %305 = vmatprep.mubr.bf16.mxu0 0
    %306 = vmatmul.mubr.bf16.gmra.mrb[0].mxu0 %v176
    %v307 = vpop.f32.mrb[0].mxu0
    %v308 = vadd.f32 %v100, %v307
    %v309 = vpop.f32.mrb[0].mxu0
    %v310 = vadd.f32 %v104, %v309
    %v311 = vpop.f32.mrb[0].mxu0
    %v312 = vadd.f32 %v100, %v311
    %v313 = vpop.f32.mrb[0].mxu0
    %v314 = vadd.f32 %v104, %v313
    %315 = vmatprep.mubr.bf16.mxu0 0
    %316 = vmatmul.mubr.bf16.gmra.mrb[0].mxu0 %v179
    %v317 = vpop.f32.mrb[0].mxu0
    %v318 = vadd.f32 %v100, %v317
    %v319 = vpop.f32.mrb[0].mxu0
    %v320 = vadd.f32 %v104, %v319
    %v321 = vpop.f32.mrb[0].mxu0
    %v322 = vadd.f32 %v100, %v321
    %v323 = vpop.f32.mrb[0].mxu0
    %v324 = vadd.f32 %v104, %v323
    %325 = vmatprep.mubr.bf16.mxu0 0
    %326 = vmatmul.mubr.bf16.gmra.mrb[0].mxu0 %v182
    %v327 = vpop.f32.mrb[0].mxu0
    %v328 = vadd.f32 %v100, %v327
    %v329 = vpop.f32.mrb[0].mxu0
    %v330 = vadd.f32 %v104, %v329
    %v331 = vpop.f32.mrb[0].mxu0
    %v332 = vadd.f32 %v100, %v331
    %v333 = vpop.f32.mrb[0].mxu0
    %v334 = vadd.f32 %v104, %v333
    %335 = vmatprep.mubr.bf16.mxu0 0
    %336 = vmatmul.mubr.bf16.gmra.mrb[0].mxu0 %v185
    %v337 = vpop.f32.mrb[0].mxu0
    %v338 = vadd.f32 %v100, %v337
    %v339 = vpop.f32.mrb[0].mxu0
    %v340 = vadd.f32 %v104, %v339
    %v341 = vpop.f32.mrb[0].mxu0
    %v342 = vadd.f32 %v100, %v341
    %v343 = vpop.f32.mrb[0].mxu0
    %v344 = vadd.f32 %v104, %v343
    %345 = vmatprep.mubr.bf16.mxu0 0
    %346 = vmatmul.mubr.bf16.gmra.mrb[0].mxu0 %v188
    %v347 = vpop.f32.mrb[0].mxu0
    %v348 = vadd.f32 %v100, %v347
    %v349 = vpop.f32.mrb[0].mxu0
    %v350 = vadd.f32 %v104, %v349
    %v351 = vpop.f32.mrb[0].mxu0
    %v352 = vadd.f32 %v100, %v351
    %v353 = vpop.f32.mrb[0].mxu0
    %v354 = vadd.f32 %v104, %v353
    %355 = vdwg.mxu0
    %v356 = vmax.f32 %v225, 0.0
    %v357 = vmax.f32 %v227, 0.0
    %v358 = vmax.f32 %v308, 0.0
    %v359 = vmax.f32 %v310, 0.0
    %v360 = vmax.f32 %v229, 0.0
    %v361 = vmax.f32 %v231, 0.0
    %v362 = vmax.f32 %v312, 0.0
    %v363 = vmax.f32 %v314, 0.0
    %v364 = vmax.f32 %v235, 0.0
    %v365 = vmax.f32 %v237, 0.0
    %v366 = vmax.f32 %v318, 0.0
    %v367 = vmax.f32 %v320, 0.0
    %v368 = vmax.f32 %v239, 0.0
    %v369 = vmax.f32 %v241, 0.0
    %v370 = vmax.f32 %v322, 0.0
    %v371 = vmax.f32 %v324, 0.0
    %v372 = vmax.f32 %v245, 0.0
    %v373 = vmax.f32 %v247, 0.0
    %v374 = vmax.f32 %v328, 0.0
    %v375 = vmax.f32 %v330, 0.0
    %v376 = vmax.f32 %v249, 0.0
    %v377 = vmax.f32 %v251, 0.0
    %v378 = vmax.f32 %v332, 0.0
    %v379 = vmax.f32 %v334, 0.0
    %v380 = vmax.f32 %v255, 0.0
    %v381 = vmax.f32 %v257, 0.0
    %v382 = vmax.f32 %v338, 0.0
    %v383 = vmax.f32 %v340, 0.0
    %v384 = vmax.f32 %v259, 0.0
    %v385 = vmax.f32 %v261, 0.0
    %v386 = vmax.f32 %v342, 0.0
    %v387 = vmax.f32 %v344, 0.0
    %v388 = vmax.f32 %v265, 0.0
    %v389 = vmax.f32 %v267, 0.0
    %v390 = vmax.f32 %v348, 0.0
    %v391 = vmax.f32 %v350, 0.0
    %v392 = vmax.f32 %v269, 0.0
    %v393 = vmax.f32 %v271, 0.0
    %v394 = vmax.f32 %v352, 0.0
    %v395 = vmax.f32 %v354, 0.0
    %v396 = vpack.c.bf16 %v360, %v356
    %v397 = vpack.c.bf16 %v361, %v357
    %v398 = vpack.c.bf16 %v362, %v358
    %v399 = vpack.c.bf16 %v363, %v359
    %v400 = vpack.c.bf16 %v368, %v364
    %v401 = vpack.c.bf16 %v369, %v365
    %v402 = vpack.c.bf16 %v370, %v366
    %v403 = vpack.c.bf16 %v371, %v367
    %v404 = vpack.c.bf16 %v376, %v372
    %v405 = vpack.c.bf16 %v377, %v373
    %v406 = vpack.c.bf16 %v378, %v374
    %v407 = vpack.c.bf16 %v379, %v375
    %v408 = vpack.c.bf16 %v384, %v380
    %v409 = vpack.c.bf16 %v385, %v381
    %v410 = vpack.c.bf16 %v386, %v382
    %v411 = vpack.c.bf16 %v387, %v383
    %v412 = vpack.c.bf16 %v392, %v388
    %v413 = vpack.c.bf16 %v393, %v389
    %v414 = vpack.c.bf16 %v394, %v390
    %v415 = vpack.c.bf16 %v395, %v391
    %v416 = vld [vmem:[#allocation5] sm:$0xff]
    %v417 = vld [vmem:[#allocation5 + $0x8] sm:$0xff]
    %v418 = vld [vmem:[#allocation5 + $0x10] sm:$0xff]
    %v419 = vld [vmem:[#allocation5 + $0x18] sm:$0xff]
    %v420 = vld [vmem:[#allocation5 + $0x20] sm:$0xff]
    %v421 = vld [vmem:[#allocation5 + $0x28] sm:$0xff]
    %v422 = vld [vmem:[#allocation5 + $0x30] sm:$0xff]
    %v423 = vld [vmem:[#allocation5 + $0x38] sm:$0xff]
    %v424 = vld [vmem:[#allocation5 + $0x40] sm:$0xff]
    %v425 = vld [vmem:[#allocation5 + $0x48] sm:$0xff]
    %v426 = vld [vmem:[#allocation5 + $0x50] sm:$0xff]
    %v427 = vld [vmem:[#allocation5 + $0x58] sm:$0xff]
    %v428 = vld [vmem:[#allocation5 + $0x60] sm:$0xff]
    %v429 = vld [vmem:[#allocation5 + $0x68] sm:$0xff]
    %v430 = vld [vmem:[#allocation5 + $0x70] sm:$0xff]
    %v431 = vld [vmem:[#allocation5 + $0x78] sm:$0xff]
    %v432 = vld [vmem:[#allocation5 + $0x80] sm:$0xff]
    %v433 = vld [vmem:[#allocation5 + $0x88] sm:$0xff]
    %v434 = vld [vmem:[#allocation5 + $0x90] sm:$0xff]
    %v435 = vld [vmem:[#allocation5 + $0x98] sm:$0xff]
    %v436 = vld [vmem:[#allocation5 + $0xa0] sm:$0xff]
    %v437 = vld [vmem:[#allocation5 + $0xa8] sm:$0xff]
    %v438 = vld [vmem:[#allocation5 + $0xb0] sm:$0xff]
    %v439 = vld [vmem:[#allocation5 + $0xb8] sm:$0xff]
    %v440 = vld [vmem:[#allocation5 + $0xc0] sm:$0xff]
    %v441 = vld [vmem:[#allocation5 + $0xc8] sm:$0xff]
    %v442 = vld [vmem:[#allocation5 + $0xd0] sm:$0xff]
    %v443 = vld [vmem:[#allocation5 + $0xd8] sm:$0xff]
    %v444 = vld [vmem:[#allocation5 + $0xe0] sm:$0xff]
    %v445 = vld [vmem:[#allocation5 + $0xe8] sm:$0xff]
    %v446 = vld [vmem:[#allocation5 + $0xf0] sm:$0xff]
    %v447 = vld [vmem:[#allocation5 + $0xf8] sm:$0xff]
    %v448 = vld [vmem:[#allocation5 + $0x100] sm:$0xff]
    %v449 = vld [vmem:[#allocation5 + $0x108] sm:$0xff]
    %v450 = vld [vmem:[#allocation5 + $0x110] sm:$0xff]
    %v451 = vld [vmem:[#allocation5 + $0x118] sm:$0xff]
    %v452 = vld [vmem:[#allocation5 + $0x120] sm:$0xff]
    %v453 = vld [vmem:[#allocation5 + $0x128] sm:$0xff]
    %v454 = vld [vmem:[#allocation5 + $0x130] sm:$0xff]
    %v455 = vld [vmem:[#allocation5 + $0x138] sm:$0xff]
    %v456 = vld [vmem:[#allocation5 + $0x140] sm:$0xff]
    %v457 = vld [vmem:[#allocation5 + $0x148] sm:$0xff]
    %v458 = vld [vmem:[#allocation5 + $0x150] sm:$0xff]
    %v459 = vld [vmem:[#allocation5 + $0x158] sm:$0xff]
    %v460 = vld [vmem:[#allocation5 + $0x160] sm:$0xff]
    %v461 = vld [vmem:[#allocation5 + $0x168] sm:$0xff]
    %v462 = vld [vmem:[#allocation5 + $0x170] sm:$0xff]
    %v463 = vld [vmem:[#allocation5 + $0x178] sm:$0xff]
    %v464 = vld [vmem:[#allocation5 + $0x180] sm:$0xff]
    %v465 = vld [vmem:[#allocation5 + $0x188] sm:$0xff]
    %v466 = vld [vmem:[#allocation5 + $0x190] sm:$0xff]
    %v467 = vld [vmem:[#allocation5 + $0x198] sm:$0xff]
    %v468 = vld [vmem:[#allocation5 + $0x1a0] sm:$0xff]
    %v469 = vld [vmem:[#allocation5 + $0x1a8] sm:$0xff]
    %v470 = vld [vmem:[#allocation5 + $0x1b0] sm:$0xff]
    %v471 = vld [vmem:[#allocation5 + $0x1b8] sm:$0xff]
    %v472 = vld [vmem:[#allocation5 + $0x1c0] sm:$0xff]
    %v473 = vld [vmem:[#allocation5 + $0x1c8] sm:$0xff]
    %v474 = vld [vmem:[#allocation5 + $0x1d0] sm:$0xff]
    %v475 = vld [vmem:[#allocation5 + $0x1d8] sm:$0xff]
    %v476 = vld [vmem:[#allocation5 + $0x1e0] sm:$0xff]
    %v477 = vld [vmem:[#allocation5 + $0x1e8] sm:$0xff]
    %v478 = vld [vmem:[#allocation5 + $0x1f0] sm:$0xff]
    %v479 = vld [vmem:[#allocation5 + $0x1f8] sm:$0xff]
    %v480 = vld [vmem:[#allocation5 + $0x200] sm:$0xff]
    %v481 = vld [vmem:[#allocation5 + $0x208] sm:$0xff]
    %v482 = vld [vmem:[#allocation5 + $0x210] sm:$0xff]
    %v483 = vld [vmem:[#allocation5 + $0x218] sm:$0xff]
    %v484 = vld [vmem:[#allocation5 + $0x220] sm:$0xff]
    %v485 = vld [vmem:[#allocation5 + $0x228] sm:$0xff]
    %v486 = vld [vmem:[#allocation5 + $0x230] sm:$0xff]
    %v487 = vld [vmem:[#allocation5 + $0x238] sm:$0xff]
    %v488 = vld [vmem:[#allocation5 + $0x240] sm:$0xff]
    %v489 = vld [vmem:[#allocation5 + $0x248] sm:$0xff]
    %v490 = vld [vmem:[#allocation5 + $0x250] sm:$0xff]
    %v491 = vld [vmem:[#allocation5 + $0x258] sm:$0xff]
    %v492 = vld [vmem:[#allocation5 + $0x260] sm:$0xff]
    %v493 = vld [vmem:[#allocation5 + $0x268] sm:$0xff]
    %v494 = vld [vmem:[#allocation5 + $0x270] sm:$0xff]
    %v495 = vld [vmem:[#allocation5 + $0x278] sm:$0xff]
    %v496 = vld [vmem:[#allocation5 + $0x280] sm:$0xff]
    %v497 = vld [vmem:[#allocation5 + $0x288] sm:$0xff]
    %v498 = vld [vmem:[#allocation5 + $0x290] sm:$0xff]
    %v499 = vld [vmem:[#allocation5 + $0x298] sm:$0xff]
    %v500 = vld [vmem:[#allocation5 + $0x2a0] sm:$0xff]
    %v501 = vld [vmem:[#allocation5 + $0x2a8] sm:$0xff]
    %v502 = vld [vmem:[#allocation5 + $0x2b0] sm:$0xff]
    %v503 = vld [vmem:[#allocation5 + $0x2b8] sm:$0xff]
    %v504 = vld [vmem:[#allocation5 + $0x2c0] sm:$0xff]
    %v505 = vld [vmem:[#allocation5 + $0x2c8] sm:$0xff]
    %v506 = vld [vmem:[#allocation5 + $0x2d0] sm:$0xff]
    %v507 = vld [vmem:[#allocation5 + $0x2d8] sm:$0xff]
    %v508 = vld [vmem:[#allocation5 + $0x2e0] sm:$0xff]
    %v509 = vld [vmem:[#allocation5 + $0x2e8] sm:$0xff]
    %v510 = vld [vmem:[#allocation5 + $0x2f0] sm:$0xff]
    %v511 = vld [vmem:[#allocation5 + $0x2f8] sm:$0xff]
    %v512 = vld [vmem:[#allocation5 + $0x300] sm:$0xff]
    %v513 = vld [vmem:[#allocation5 + $0x308] sm:$0xff]
    %v514 = vld [vmem:[#allocation5 + $0x310] sm:$0xff]
    %v515 = vld [vmem:[#allocation5 + $0x318] sm:$0xff]
    %v516 = vld [vmem:[#allocation5 + $0x320] sm:$0xff]
    %v517 = vld [vmem:[#allocation5 + $0x328] sm:$0xff]
    %v518 = vld [vmem:[#allocation5 + $0x330] sm:$0xff]
    %v519 = vld [vmem:[#allocation5 + $0x338] sm:$0xff]
    %v520 = vld [vmem:[#allocation5 + $0x340] sm:$0xff]
    %v521 = vld [vmem:[#allocation5 + $0x348] sm:$0xff]
    %v522 = vld [vmem:[#allocation5 + $0x350] sm:$0xff]
    %v523 = vld [vmem:[#allocation5 + $0x358] sm:$0xff]
    %v524 = vld [vmem:[#allocation5 + $0x360] sm:$0xff]
    %v525 = vld [vmem:[#allocation5 + $0x368] sm:$0xff]
    %v526 = vld [vmem:[#allocation5 + $0x370] sm:$0xff]
    %v527 = vld [vmem:[#allocation5 + $0x378] sm:$0xff]
    %v528 = vld [vmem:[#allocation5 + $0x380] sm:$0xff]
    %v529 = vld [vmem:[#allocation5 + $0x388] sm:$0xff]
    %v530 = vld [vmem:[#allocation5 + $0x390] sm:$0xff]
    %v531 = vld [vmem:[#allocation5 + $0x398] sm:$0xff]
    %v532 = vld [vmem:[#allocation5 + $0x3a0] sm:$0xff]
    %v533 = vld [vmem:[#allocation5 + $0x3a8] sm:$0xff]
    %v534 = vld [vmem:[#allocation5 + $0x3b0] sm:$0xff]
    %v535 = vld [vmem:[#allocation5 + $0x3b8] sm:$0xff]
    %v536 = vld [vmem:[#allocation5 + $0x3c0] sm:$0xff]
    %v537 = vld [vmem:[#allocation5 + $0x3c8] sm:$0xff]
    %v538 = vld [vmem:[#allocation5 + $0x3d0] sm:$0xff]
    %v539 = vld [vmem:[#allocation5 + $0x3d8] sm:$0xff]
    %v540 = vld [vmem:[#allocation5 + $0x3e0] sm:$0xff]
    %v541 = vld [vmem:[#allocation5 + $0x3e8] sm:$0xff]
    %v542 = vld [vmem:[#allocation5 + $0x3f0] sm:$0xff]
    %v543 = vld [vmem:[#allocation5 + $0x3f8] sm:$0xff]
    %v544 = vld [vmem:[%s4] sm:$0xf]
    %v546 = vlaneseq
    %v547 = vshrl.u32 %v546, 7
    %v548 = vsub.s32 0, %v547
    %v549 = vrot.slane %v544, %v548
    %v550 = vlaneseq
    %v551 = vshrl.u32 %v550, 7
    %v552 = vsub.s32 1, %v551
    %v553 = vrot.slane %v544, %v552
    %v554 = vlaneseq
    %v555 = vshrl.u32 %v554, 7
    %v556 = vsub.s32 2, %v555
    %v557 = vrot.slane %v544, %v556
    %v558 = vlaneseq
    %v559 = vshrl.u32 %v558, 7
    %v560 = vsub.s32 3, %v559
    %v561 = vrot.slane %v544, %v560
    %v694 = vunpack.c.l.b16 %v416
    %v695 = vunpack.c.h.b16 %v416
    %v696 = vunpack.c.l.b16 %v417
    %v697 = vunpack.c.h.b16 %v417
    %v698 = vunpack.c.l.b16 %v418
    %v699 = vunpack.c.h.b16 %v418
    %v700 = vunpack.c.l.b16 %v419
    %v701 = vunpack.c.h.b16 %v419
    %v702 = vunpack.c.l.b16 %v420
    %v703 = vunpack.c.h.b16 %v420
    %v704 = vunpack.c.l.b16 %v421
    %v705 = vunpack.c.h.b16 %v421
    %v706 = vunpack.c.l.b16 %v422
    %v707 = vunpack.c.h.b16 %v422
    %v708 = vunpack.c.l.b16 %v423
    %v709 = vunpack.c.h.b16 %v423
    %v710 = vunpack.c.l.b16 %v424
    %v711 = vunpack.c.h.b16 %v424
    %v712 = vunpack.c.l.b16 %v425
    %v713 = vunpack.c.h.b16 %v425
    %v714 = vunpack.c.l.b16 %v426
    %v715 = vunpack.c.h.b16 %v426
    %v716 = vunpack.c.l.b16 %v427
    %v717 = vunpack.c.h.b16 %v427
    %v718 = vunpack.c.l.b16 %v428
    %v719 = vunpack.c.h.b16 %v428
    %v720 = vunpack.c.l.b16 %v429
    %v721 = vunpack.c.h.b16 %v429
    %v722 = vunpack.c.l.b16 %v430
    %v723 = vunpack.c.h.b16 %v430
    %v724 = vunpack.c.l.b16 %v431
    %v725 = vunpack.c.h.b16 %v431
    %v726 = vunpack.c.l.b16 %v432
    %v727 = vunpack.c.h.b16 %v432
    %v728 = vunpack.c.l.b16 %v433
    %v729 = vunpack.c.h.b16 %v433
    %v730 = vunpack.c.l.b16 %v434
    %v731 = vunpack.c.h.b16 %v434
    %v732 = vunpack.c.l.b16 %v435
    %v733 = vunpack.c.h.b16 %v435
    %v734 = vunpack.c.l.b16 %v436
    %v735 = vunpack.c.h.b16 %v436
    %v736 = vunpack.c.l.b16 %v437
    %v737 = vunpack.c.h.b16 %v437
    %v738 = vunpack.c.l.b16 %v438
    %v739 = vunpack.c.h.b16 %v438
    %v740 = vunpack.c.l.b16 %v439
    %v741 = vunpack.c.h.b16 %v439
    %v742 = vunpack.c.l.b16 %v440
    %v743 = vunpack.c.h.b16 %v440
    %v744 = vunpack.c.l.b16 %v441
    %v745 = vunpack.c.h.b16 %v441
    %v746 = vunpack.c.l.b16 %v442
    %v747 = vunpack.c.h.b16 %v442
    %v748 = vunpack.c.l.b16 %v443
    %v749 = vunpack.c.h.b16 %v443
    %v750 = vunpack.c.l.b16 %v444
    %v751 = vunpack.c.h.b16 %v444
    %v752 = vunpack.c.l.b16 %v445
    %v753 = vunpack.c.h.b16 %v445
    %v754 = vunpack.c.l.b16 %v446
    %v755 = vunpack.c.h.b16 %v446
    %v756 = vunpack.c.l.b16 %v447
    %v757 = vunpack.c.h.b16 %v447
    %v758 = vunpack.c.l.b16 %v448
    %v759 = vunpack.c.h.b16 %v448
    %v760 = vunpack.c.l.b16 %v449
    %v761 = vunpack.c.h.b16 %v449
    %v762 = vunpack.c.l.b16 %v450
    %v763 = vunpack.c.h.b16 %v450
    %v764 = vunpack.c.l.b16 %v451
    %v765 = vunpack.c.h.b16 %v451
    %v766 = vunpack.c.l.b16 %v452
    %v767 = vunpack.c.h.b16 %v452
    %v768 = vunpack.c.l.b16 %v453
    %v769 = vunpack.c.h.b16 %v453
    %v770 = vunpack.c.l.b16 %v454
    %v771 = vunpack.c.h.b16 %v454
    %v772 = vunpack.c.l.b16 %v455
    %v773 = vunpack.c.h.b16 %v455
    %v774 = vunpack.c.l.b16 %v456
    %v775 = vunpack.c.h.b16 %v456
    %v776 = vunpack.c.l.b16 %v457
    %v777 = vunpack.c.h.b16 %v457
    %v778 = vunpack.c.l.b16 %v458
    %v779 = vunpack.c.h.b16 %v458
    %v780 = vunpack.c.l.b16 %v459
    %v781 = vunpack.c.h.b16 %v459
    %v782 = vunpack.c.l.b16 %v460
    %v783 = vunpack.c.h.b16 %v460
    %v784 = vunpack.c.l.b16 %v461
    %v785 = vunpack.c.h.b16 %v461
    %v786 = vunpack.c.l.b16 %v462
    %v787 = vunpack.c.h.b16 %v462
    %v788 = vunpack.c.l.b16 %v463
    %v789 = vunpack.c.h.b16 %v463
    %v790 = vunpack.c.l.b16 %v464
    %v791 = vunpack.c.h.b16 %v464
    %v792 = vunpack.c.l.b16 %v465
    %v793 = vunpack.c.h.b16 %v465
    %v794 = vunpack.c.l.b16 %v466
    %v795 = vunpack.c.h.b16 %v466
    %v796 = vunpack.c.l.b16 %v467
    %v797 = vunpack.c.h.b16 %v467
    %v798 = vunpack.c.l.b16 %v468
    %v799 = vunpack.c.h.b16 %v468
    %v800 = vunpack.c.l.b16 %v469
    %v801 = vunpack.c.h.b16 %v469
    %v802 = vunpack.c.l.b16 %v470
    %v803 = vunpack.c.h.b16 %v470
    %v804 = vunpack.c.l.b16 %v471
    %v805 = vunpack.c.h.b16 %v471
    %v806 = vunpack.c.l.b16 %v472
    %v807 = vunpack.c.h.b16 %v472
    %v808 = vunpack.c.l.b16 %v473
    %v809 = vunpack.c.h.b16 %v473
    %v810 = vunpack.c.l.b16 %v474
    %v811 = vunpack.c.h.b16 %v474
    %v812 = vunpack.c.l.b16 %v475
    %v813 = vunpack.c.h.b16 %v475
    %v814 = vunpack.c.l.b16 %v476
    %v815 = vunpack.c.h.b16 %v476
    %v816 = vunpack.c.l.b16 %v477
    %v817 = vunpack.c.h.b16 %v477
    %v818 = vunpack.c.l.b16 %v478
    %v819 = vunpack.c.h.b16 %v478
    %v820 = vunpack.c.l.b16 %v479
    %v821 = vunpack.c.h.b16 %v479
    %v822 = vunpack.c.l.b16 %v480
    %v823 = vunpack.c.h.b16 %v480
    %v824 = vunpack.c.l.b16 %v481
    %v825 = vunpack.c.h.b16 %v481
    %v826 = vunpack.c.l.b16 %v482
    %v827 = vunpack.c.h.b16 %v482
    %v828 = vunpack.c.l.b16 %v483
    %v829 = vunpack.c.h.b16 %v483
    %v830 = vunpack.c.l.b16 %v484
    %v831 = vunpack.c.h.b16 %v484
    %v832 = vunpack.c.l.b16 %v485
    %v833 = vunpack.c.h.b16 %v485
    %v834 = vunpack.c.l.b16 %v486
    %v835 = vunpack.c.h.b16 %v486
    %v836 = vunpack.c.l.b16 %v487
    %v837 = vunpack.c.h.b16 %v487
    %v838 = vunpack.c.l.b16 %v488
    %v839 = vunpack.c.h.b16 %v488
    %v840 = vunpack.c.l.b16 %v489
    %v841 = vunpack.c.h.b16 %v489
    %v842 = vunpack.c.l.b16 %v490
    %v843 = vunpack.c.h.b16 %v490
    %v844 = vunpack.c.l.b16 %v491
    %v845 = vunpack.c.h.b16 %v491
    %v846 = vunpack.c.l.b16 %v492
    %v847 = vunpack.c.h.b16 %v492
    %v848 = vunpack.c.l.b16 %v493
    %v849 = vunpack.c.h.b16 %v493
    %v850 = vunpack.c.l.b16 %v494
    %v851 = vunpack.c.h.b16 %v494
    %v852 = vunpack.c.l.b16 %v495
    %v853 = vunpack.c.h.b16 %v495
    %v854 = vunpack.c.l.b16 %v496
    %v855 = vunpack.c.h.b16 %v496
    %v856 = vunpack.c.l.b16 %v497
    %v857 = vunpack.c.h.b16 %v497
    %v858 = vunpack.c.l.b16 %v498
    %v859 = vunpack.c.h.b16 %v498
    %v860 = vunpack.c.l.b16 %v499
    %v861 = vunpack.c.h.b16 %v499
    %v862 = vunpack.c.l.b16 %v500
    %v863 = vunpack.c.h.b16 %v500
    %v864 = vunpack.c.l.b16 %v501
    %v865 = vunpack.c.h.b16 %v501
    %v866 = vunpack.c.l.b16 %v502
    %v867 = vunpack.c.h.b16 %v502
    %v868 = vunpack.c.l.b16 %v503
    %v869 = vunpack.c.h.b16 %v503
    %v870 = vunpack.c.l.b16 %v504
    %v871 = vunpack.c.h.b16 %v504
    %v872 = vunpack.c.l.b16 %v505
    %v873 = vunpack.c.h.b16 %v505
    %v874 = vunpack.c.l.b16 %v506
    %v875 = vunpack.c.h.b16 %v506
    %v876 = vunpack.c.l.b16 %v507
    %v877 = vunpack.c.h.b16 %v507
    %v878 = vunpack.c.l.b16 %v508
    %v879 = vunpack.c.h.b16 %v508
    %v880 = vunpack.c.l.b16 %v509
    %v881 = vunpack.c.h.b16 %v509
    %v882 = vunpack.c.l.b16 %v510
    %v883 = vunpack.c.h.b16 %v510
    %v884 = vunpack.c.l.b16 %v511
    %v885 = vunpack.c.h.b16 %v511
    %v886 = vunpack.c.l.b16 %v512
    %v887 = vunpack.c.h.b16 %v512
    %v888 = vunpack.c.l.b16 %v513
    %v889 = vunpack.c.h.b16 %v513
    %v890 = vunpack.c.l.b16 %v514
    %v891 = vunpack.c.h.b16 %v514
    %v892 = vunpack.c.l.b16 %v515
    %v893 = vunpack.c.h.b16 %v515
    %v894 = vunpack.c.l.b16 %v516
    %v895 = vunpack.c.h.b16 %v516
    %v896 = vunpack.c.l.b16 %v517
    %v897 = vunpack.c.h.b16 %v517
    %v898 = vunpack.c.l.b16 %v518
    %v899 = vunpack.c.h.b16 %v518
    %v900 = vunpack.c.l.b16 %v519
    %v901 = vunpack.c.h.b16 %v519
    %v902 = vunpack.c.l.b16 %v520
    %v903 = vunpack.c.h.b16 %v520
    %v904 = vunpack.c.l.b16 %v521
    %v905 = vunpack.c.h.b16 %v521
    %v906 = vunpack.c.l.b16 %v522
    %v907 = vunpack.c.h.b16 %v522
    %v908 = vunpack.c.l.b16 %v523
    %v909 = vunpack.c.h.b16 %v523
    %v910 = vunpack.c.l.b16 %v524
    %v911 = vunpack.c.h.b16 %v524
    %v912 = vunpack.c.l.b16 %v525
    %v913 = vunpack.c.h.b16 %v525
    %v914 = vunpack.c.l.b16 %v526
    %v915 = vunpack.c.h.b16 %v526
    %v916 = vunpack.c.l.b16 %v527
    %v917 = vunpack.c.h.b16 %v527
    %v918 = vunpack.c.l.b16 %v528
    %v919 = vunpack.c.h.b16 %v528
    %v920 = vunpack.c.l.b16 %v529
    %v921 = vunpack.c.h.b16 %v529
    %v922 = vunpack.c.l.b16 %v530
    %v923 = vunpack.c.h.b16 %v530
    %v924 = vunpack.c.l.b16 %v531
    %v925 = vunpack.c.h.b16 %v531
    %v926 = vunpack.c.l.b16 %v532
    %v927 = vunpack.c.h.b16 %v532
    %v928 = vunpack.c.l.b16 %v533
    %v929 = vunpack.c.h.b16 %v533
    %v930 = vunpack.c.l.b16 %v534
    %v931 = vunpack.c.h.b16 %v534
    %v932 = vunpack.c.l.b16 %v535
    %v933 = vunpack.c.h.b16 %v535
    %v934 = vunpack.c.l.b16 %v536
    %v935 = vunpack.c.h.b16 %v536
    %v936 = vunpack.c.l.b16 %v537
    %v937 = vunpack.c.h.b16 %v537
    %v938 = vunpack.c.l.b16 %v538
    %v939 = vunpack.c.h.b16 %v538
    %v940 = vunpack.c.l.b16 %v539
    %v941 = vunpack.c.h.b16 %v539
    %v942 = vunpack.c.l.b16 %v540
    %v943 = vunpack.c.h.b16 %v540
    %v944 = vunpack.c.l.b16 %v541
    %v945 = vunpack.c.h.b16 %v541
    %v946 = vunpack.c.l.b16 %v542
    %v947 = vunpack.c.h.b16 %v542
    %v948 = vunpack.c.l.b16 %v543
    %v949 = vunpack.c.h.b16 %v543
    %v950 = vpack.c.b16 %v698, %v694
    %v951 = vpack.c.b16 %v699, %v695
    %v952 = vpack.c.b16 %v700, %v696
    %v953 = vpack.c.b16 %v701, %v697
    %v954 = vpack.c.b16 %v706, %v702
    %v955 = vpack.c.b16 %v707, %v703
    %v956 = vpack.c.b16 %v708, %v704
    %v957 = vpack.c.b16 %v709, %v705
    %v958 = vpack.c.b16 %v714, %v710
    %v959 = vpack.c.b16 %v715, %v711
    %v960 = vpack.c.b16 %v716, %v712
    %v961 = vpack.c.b16 %v717, %v713
    %v962 = vpack.c.b16 %v722, %v718
    %v963 = vpack.c.b16 %v723, %v719
    %v964 = vpack.c.b16 %v724, %v720
    %v965 = vpack.c.b16 %v725, %v721
    %v966 = vpack.c.b16 %v730, %v726
    %v967 = vpack.c.b16 %v731, %v727
    %v968 = vpack.c.b16 %v732, %v728
    %v969 = vpack.c.b16 %v733, %v729
    %v970 = vpack.c.b16 %v738, %v734
    %v971 = vpack.c.b16 %v739, %v735
    %v972 = vpack.c.b16 %v740, %v736
    %v973 = vpack.c.b16 %v741, %v737
    %v974 = vpack.c.b16 %v746, %v742
    %v975 = vpack.c.b16 %v747, %v743
    %v976 = vpack.c.b16 %v748, %v744
    %v977 = vpack.c.b16 %v749, %v745
    %v978 = vpack.c.b16 %v754, %v750
    %v979 = vpack.c.b16 %v755, %v751
    %v980 = vpack.c.b16 %v756, %v752
    %v981 = vpack.c.b16 %v757, %v753
    %v982 = vpack.c.b16 %v762, %v758
    %v983 = vpack.c.b16 %v763, %v759
    %v984 = vpack.c.b16 %v764, %v760
    %v985 = vpack.c.b16 %v765, %v761
    %v986 = vpack.c.b16 %v770, %v766
    %v987 = vpack.c.b16 %v771, %v767
    %v988 = vpack.c.b16 %v772, %v768
    %v989 = vpack.c.b16 %v773, %v769
    %v990 = vpack.c.b16 %v778, %v774
    %v991 = vpack.c.b16 %v779, %v775
    %v992 = vpack.c.b16 %v780, %v776
    %v993 = vpack.c.b16 %v781, %v777
    %v994 = vpack.c.b16 %v786, %v782
    %v995 = vpack.c.b16 %v787, %v783
    %v996 = vpack.c.b16 %v788, %v784
    %v997 = vpack.c.b16 %v789, %v785
    %v998 = vpack.c.b16 %v794, %v790
    %v999 = vpack.c.b16 %v795, %v791
    %v1000 = vpack.c.b16 %v796, %v792
    %v1001 = vpack.c.b16 %v797, %v793
    %v1002 = vpack.c.b16 %v802, %v798
    %v1003 = vpack.c.b16 %v803, %v799
    %v1004 = vpack.c.b16 %v804, %v800
    %v1005 = vpack.c.b16 %v805, %v801
    %v1006 = vpack.c.b16 %v810, %v806
    %v1007 = vpack.c.b16 %v811, %v807
    %v1008 = vpack.c.b16 %v812, %v808
    %v1009 = vpack.c.b16 %v813, %v809
    %v1010 = vpack.c.b16 %v818, %v814
    %v1011 = vpack.c.b16 %v819, %v815
    %v1012 = vpack.c.b16 %v820, %v816
    %v1013 = vpack.c.b16 %v821, %v817
    %v1014 = vpack.c.b16 %v826, %v822
    %v1015 = vpack.c.b16 %v827, %v823
    %v1016 = vpack.c.b16 %v828, %v824
    %v1017 = vpack.c.b16 %v829, %v825
    %v1018 = vpack.c.b16 %v834, %v830
    %v1019 = vpack.c.b16 %v835, %v831
    %v1020 = vpack.c.b16 %v836, %v832
    %v1021 = vpack.c.b16 %v837, %v833
    %v1022 = vpack.c.b16 %v842, %v838
    %v1023 = vpack.c.b16 %v843, %v839
    %v1024 = vpack.c.b16 %v844, %v840
    %v1025 = vpack.c.b16 %v845, %v841
    %v1026 = vpack.c.b16 %v850, %v846
    %v1027 = vpack.c.b16 %v851, %v847
    %v1028 = vpack.c.b16 %v852, %v848
    %v1029 = vpack.c.b16 %v853, %v849
    %v1030 = vpack.c.b16 %v858, %v854
    %v1031 = vpack.c.b16 %v859, %v855
    %v1032 = vpack.c.b16 %v860, %v856
    %v1033 = vpack.c.b16 %v861, %v857
    %v1034 = vpack.c.b16 %v866, %v862
    %v1035 = vpack.c.b16 %v867, %v863
    %v1036 = vpack.c.b16 %v868, %v864
    %v1037 = vpack.c.b16 %v869, %v865
    %v1038 = vpack.c.b16 %v874, %v870
    %v1039 = vpack.c.b16 %v875, %v871
    %v1040 = vpack.c.b16 %v876, %v872
    %v1041 = vpack.c.b16 %v877, %v873
    %v1042 = vpack.c.b16 %v882, %v878
    %v1043 = vpack.c.b16 %v883, %v879
    %v1044 = vpack.c.b16 %v884, %v880
    %v1045 = vpack.c.b16 %v885, %v881
    %v1046 = vpack.c.b16 %v890, %v886
    %v1047 = vpack.c.b16 %v891, %v887
    %v1048 = vpack.c.b16 %v892, %v888
    %v1049 = vpack.c.b16 %v893, %v889
    %v1050 = vpack.c.b16 %v898, %v894
    %v1051 = vpack.c.b16 %v899, %v895
    %v1052 = vpack.c.b16 %v900, %v896
    %v1053 = vpack.c.b16 %v901, %v897
    %v1054 = vpack.c.b16 %v906, %v902
    %v1055 = vpack.c.b16 %v907, %v903
    %v1056 = vpack.c.b16 %v908, %v904
    %v1057 = vpack.c.b16 %v909, %v905
    %v1058 = vpack.c.b16 %v914, %v910
    %v1059 = vpack.c.b16 %v915, %v911
    %v1060 = vpack.c.b16 %v916, %v912
    %v1061 = vpack.c.b16 %v917, %v913
    %v1062 = vpack.c.b16 %v922, %v918
    %v1063 = vpack.c.b16 %v923, %v919
    %v1064 = vpack.c.b16 %v924, %v920
    %v1065 = vpack.c.b16 %v925, %v921
    %v1066 = vpack.c.b16 %v930, %v926
    %v1067 = vpack.c.b16 %v931, %v927
    %v1068 = vpack.c.b16 %v932, %v928
    %v1069 = vpack.c.b16 %v933, %v929
    %v1070 = vpack.c.b16 %v938, %v934
    %v1071 = vpack.c.b16 %v939, %v935
    %v1072 = vpack.c.b16 %v940, %v936
    %v1073 = vpack.c.b16 %v941, %v937
    %v1074 = vpack.c.b16 %v946, %v942
    %v1075 = vpack.c.b16 %v947, %v943
    %v1076 = vpack.c.b16 %v948, %v944
    %v1077 = vpack.c.b16 %v949, %v945
    %1206 = vmatprep.subr.bf16.mxu0 %v951
    %1207 = vmatpush1.bf16.msra.mxu0 %v950
    %1208 = vmatprep.subr.bf16.mxu0 %v955
    %1209 = vmatpush1.bf16.msra.mxu0 %v954
    %1210 = vmatprep.subr.bf16.mxu0 %v959
    %1211 = vmatpush1.bf16.msra.mxu0 %v958
    %1212 = vmatprep.subr.bf16.mxu0 %v963
    %1213 = vmatpush1.bf16.msra.mxu0 %v962
    %1214 = vmatprep.subr.bf16.mxu0 %v967
    %1215 = vmatpush1.bf16.msra.mxu0 %v966
    %1216 = vmatprep.subr.bf16.mxu0 %v971
    %1217 = vmatpush1.bf16.msra.mxu0 %v970
    %1218 = vmatprep.subr.bf16.mxu0 %v975
    %1219 = vmatpush1.bf16.msra.mxu0 %v974
    %1220 = vmatprep.subr.bf16.mxu0 %v979
    %1221 = vmatpush1.bf16.msra.mxu0 %v978
    %1222 = vmatprep.subr.bf16.mxu0 %v983
    %1223 = vmatpush1.bf16.msra.mxu0 %v982
    %1224 = vmatprep.subr.bf16.mxu0 %v987
    %1225 = vmatpush1.bf16.msra.mxu0 %v986
    %1226 = vmatprep.subr.bf16.mxu0 %v991
    %1227 = vmatpush1.bf16.msra.mxu0 %v990
    %1228 = vmatprep.subr.bf16.mxu0 %v995
    %1229 = vmatpush1.bf16.msra.mxu0 %v994
    %1230 = vmatprep.subr.bf16.mxu0 %v999
    %1231 = vmatpush1.bf16.msra.mxu0 %v998
    %1232 = vmatprep.subr.bf16.mxu0 %v1003
    %1233 = vmatpush1.bf16.msra.mxu0 %v1002
    %1234 = vmatprep.subr.bf16.mxu0 %v1007
    %1235 = vmatpush1.bf16.msra.mxu0 %v1006
    %1236 = vmatprep.subr.bf16.mxu0 %v1011
    %1237 = vmatpush1.bf16.msra.mxu0 %v1010
    %1238 = vmatprep.mubr.bf16.mxu0 %v397
    %1239 = vmatmul.mubr.bf16.gmra.mrb[0].mxu0 %v396
    %v1240 = vpop.f32.mrb[0].mxu0
    %v1241 = vadd.f32 %v549, %v1240
    %v1242 = vpop.f32.mrb[0].mxu0
    %v1243 = vadd.f32 %v553, %v1242
    %v1244 = vpop.f32.mrb[0].mxu0
    %v1245 = vadd.f32 %v549, %v1244
    %v1246 = vpop.f32.mrb[0].mxu0
    %v1247 = vadd.f32 %v553, %v1246
    %1248 = vmatprep.mubr.bf16.mxu0 %v401
    %1249 = vmatmul.mubr.bf16.gmra.mrb[0].mxu0 %v400
    %v1250 = vpop.f32.mrb[0].mxu0
    %v1251 = vadd.f32 %v549, %v1250
    %v1252 = vpop.f32.mrb[0].mxu0
    %v1253 = vadd.f32 %v553, %v1252
    %v1254 = vpop.f32.mrb[0].mxu0
    %v1255 = vadd.f32 %v549, %v1254
    %v1256 = vpop.f32.mrb[0].mxu0
    %v1257 = vadd.f32 %v553, %v1256
    %1258 = vmatprep.mubr.bf16.mxu0 %v405
    %1259 = vmatmul.mubr.bf16.gmra.mrb[0].mxu0 %v404
    %v1260 = vpop.f32.mrb[0].mxu0
    %v1261 = vadd.f32 %v549, %v1260
    %v1262 = vpop.f32.mrb[0].mxu0
    %v1263 = vadd.f32 %v553, %v1262
    %v1264 = vpop.f32.mrb[0].mxu0
    %v1265 = vadd.f32 %v549, %v1264
    %v1266 = vpop.f32.mrb[0].mxu0
    %v1267 = vadd.f32 %v553, %v1266
    %1268 = vmatprep.mubr.bf16.mxu0 %v409
    %1269 = vmatmul.mubr.bf16.gmra.mrb[0].mxu0 %v408
    %v1270 = vpop.f32.mrb[0].mxu0
    %v1271 = vadd.f32 %v549, %v1270
    %v1272 = vpop.f32.mrb[0].mxu0
    %v1273 = vadd.f32 %v553, %v1272
    %v1274 = vpop.f32.mrb[0].mxu0
    %v1275 = vadd.f32 %v549, %v1274
    %v1276 = vpop.f32.mrb[0].mxu0
    %v1277 = vadd.f32 %v553, %v1276
    %1278 = vmatprep.mubr.bf16.mxu0 %v413
    %1279 = vmatmul.mubr.bf16.gmra.mrb[0].mxu0 %v412
    %v1280 = vpop.f32.mrb[0].mxu0
    %v1281 = vadd.f32 %v549, %v1280
    %v1282 = vpop.f32.mrb[0].mxu0
    %v1283 = vadd.f32 %v553, %v1282
    %v1284 = vpop.f32.mrb[0].mxu0
    %v1285 = vadd.f32 %v549, %v1284
    %v1286 = vpop.f32.mrb[0].mxu0
    %v1287 = vadd.f32 %v553, %v1286
    %1288 = vdwg.mxu0
    %1289 = vmatprep.subr.bf16.mxu0 %v1015
    %1290 = vmatpush1.bf16.msra.mxu0 %v1014
    %1291 = vmatprep.subr.bf16.mxu0 %v1019
    %1292 = vmatpush1.bf16.msra.mxu0 %v1018
    %1293 = vmatprep.subr.bf16.mxu0 %v1023
    %1294 = vmatpush1.bf16.msra.mxu0 %v1022
    %1295 = vmatprep.subr.bf16.mxu0 %v1027
    %1296 = vmatpush1.bf16.msra.mxu0 %v1026
    %1297 = vmatprep.subr.bf16.mxu0 %v1031
    %1298 = vmatpush1.bf16.msra.mxu0 %v1030
    %1299 = vmatprep.subr.bf16.mxu0 %v1035
    %1300 = vmatpush1.bf16.msra.mxu0 %v1034
    %1301 = vmatprep.subr.bf16.mxu0 %v1039
    %1302 = vmatpush1.bf16.msra.mxu0 %v1038
    %1303 = vmatprep.subr.bf16.mxu0 %v1043
    %1304 = vmatpush1.bf16.msra.mxu0 %v1042
    %1305 = vmatprep.subr.bf16.mxu0 %v1047
    %1306 = vmatpush1.bf16.msra.mxu0 %v1046
    %1307 = vmatprep.subr.bf16.mxu0 %v1051
    %1308 = vmatpush1.bf16.msra.mxu0 %v1050
    %1309 = vmatprep.subr.bf16.mxu0 %v1055
    %1310 = vmatpush1.bf16.msra.mxu0 %v1054
    %1311 = vmatprep.subr.bf16.mxu0 %v1059
    %1312 = vmatpush1.bf16.msra.mxu0 %v1058
    %1313 = vmatprep.subr.bf16.mxu0 %v1063
    %1314 = vmatpush1.bf16.msra.mxu0 %v1062
    %1315 = vmatprep.subr.bf16.mxu0 %v1067
    %1316 = vmatpush1.bf16.msra.mxu0 %v1066
    %1317 = vmatprep.subr.bf16.mxu0 %v1071
    %1318 = vmatpush1.bf16.msra.mxu0 %v1070
    %1319 = vmatprep.subr.bf16.mxu0 %v1075
    %1320 = vmatpush1.bf16.msra.mxu0 %v1074
    %1321 = vmatprep.mubr.bf16.mxu0 %v399
    %1322 = vmatmul.mubr.bf16.gmra.mrb[0].mxu0 %v398
    %v1323 = vpop.f32.mrb[0].mxu0
    %v1324 = vadd.f32 %v1241, %v1323
    %v1325 = vpop.f32.mrb[0].mxu0
    %v1326 = vadd.f32 %v1243, %v1325
    %v1327 = vpop.f32.mrb[0].mxu0
    %v1328 = vadd.f32 %v1245, %v1327
    %v1329 = vpop.f32.mrb[0].mxu0
    %v1330 = vadd.f32 %v1247, %v1329
    %1331 = vmatprep.mubr.bf16.mxu0 %v403
    %1332 = vmatmul.mubr.bf16.gmra.mrb[0].mxu0 %v402
    %v1333 = vpop.f32.mrb[0].mxu0
    %v1334 = vadd.f32 %v1251, %v1333
    %v1335 = vpop.f32.mrb[0].mxu0
    %v1336 = vadd.f32 %v1253, %v1335
    %v1337 = vpop.f32.mrb[0].mxu0
    %v1338 = vadd.f32 %v1255, %v1337
    %v1339 = vpop.f32.mrb[0].mxu0
    %v1340 = vadd.f32 %v1257, %v1339
    %1341 = vmatprep.mubr.bf16.mxu0 %v407
    %1342 = vmatmul.mubr.bf16.gmra.mrb[0].mxu0 %v406
    %v1343 = vpop.f32.mrb[0].mxu0
    %v1344 = vadd.f32 %v1261, %v1343
    %v1345 = vpop.f32.mrb[0].mxu0
    %v1346 = vadd.f32 %v1263, %v1345
    %v1347 = vpop.f32.mrb[0].mxu0
    %v1348 = vadd.f32 %v1265, %v1347
    %v1349 = vpop.f32.mrb[0].mxu0
    %v1350 = vadd.f32 %v1267, %v1349
    %1351 = vmatprep.mubr.bf16.mxu0 %v411
    %1352 = vmatmul.mubr.bf16.gmra.mrb[0].mxu0 %v410
    %v1353 = vpop.f32.mrb[0].mxu0
    %v1354 = vadd.f32 %v1271, %v1353
    %v1355 = vpop.f32.mrb[0].mxu0
    %v1356 = vadd.f32 %v1273, %v1355
    %v1357 = vpop.f32.mrb[0].mxu0
    %v1358 = vadd.f32 %v1275, %v1357
    %v1359 = vpop.f32.mrb[0].mxu0
    %v1360 = vadd.f32 %v1277, %v1359
    %1361 = vmatprep.mubr.bf16.mxu0 %v415
    %1362 = vmatmul.mubr.bf16.gmra.mrb[0].mxu0 %v414
    %v1363 = vpop.f32.mrb[0].mxu0
    %v1364 = vadd.f32 %v1281, %v1363
    %v1365 = vpop.f32.mrb[0].mxu0
    %v1366 = vadd.f32 %v1283, %v1365
    %v1367 = vpop.f32.mrb[0].mxu0
    %v1368 = vadd.f32 %v1285, %v1367
    %v1369 = vpop.f32.mrb[0].mxu0
    %v1370 = vadd.f32 %v1287, %v1369
    %1371 = vdwg.mxu0
    %1372 = vmatprep.subr.bf16.mxu0 %v953
    %1373 = vmatpush1.bf16.msra.mxu0 %v952
    %1374 = vmatprep.subr.bf16.mxu0 %v957
    %1375 = vmatpush1.bf16.msra.mxu0 %v956
    %1376 = vmatprep.subr.bf16.mxu0 %v961
    %1377 = vmatpush1.bf16.msra.mxu0 %v960
    %1378 = vmatprep.subr.bf16.mxu0 %v965
    %1379 = vmatpush1.bf16.msra.mxu0 %v964
    %1380 = vmatprep.subr.bf16.mxu0 %v969
    %1381 = vmatpush1.bf16.msra.mxu0 %v968
    %1382 = vmatprep.subr.bf16.mxu0 %v973
    %1383 = vmatpush1.bf16.msra.mxu0 %v972
    %1384 = vmatprep.subr.bf16.mxu0 %v977
    %1385 = vmatpush1.bf16.msra.mxu0 %v976
    %1386 = vmatprep.subr.bf16.mxu0 %v981
    %1387 = vmatpush1.bf16.msra.mxu0 %v980
    %1388 = vmatprep.subr.bf16.mxu0 %v985
    %1389 = vmatpush1.bf16.msra.mxu0 %v984
    %1390 = vmatprep.subr.bf16.mxu0 %v989
    %1391 = vmatpush1.bf16.msra.mxu0 %v988
    %1392 = vmatprep.subr.bf16.mxu0 %v993
    %1393 = vmatpush1.bf16.msra.mxu0 %v992
    %1394 = vmatprep.subr.bf16.mxu0 %v997
    %1395 = vmatpush1.bf16.msra.mxu0 %v996
    %1396 = vmatprep.subr.bf16.mxu0 %v1001
    %1397 = vmatpush1.bf16.msra.mxu0 %v1000
    %1398 = vmatprep.subr.bf16.mxu0 %v1005
    %1399 = vmatpush1.bf16.msra.mxu0 %v1004
    %1400 = vmatprep.subr.bf16.mxu0 %v1009
    %1401 = vmatpush1.bf16.msra.mxu0 %v1008
    %1402 = vmatprep.subr.bf16.mxu0 %v1013
    %1403 = vmatpush1.bf16.msra.mxu0 %v1012
    %1404 = vmatprep.mubr.bf16.mxu0 %v397
    %1405 = vmatmul.mubr.bf16.gmra.mrb[0].mxu0 %v396
    %v1406 = vpop.f32.mrb[0].mxu0
    %v1407 = vadd.f32 %v557, %v1406
    %v1408 = vpop.f32.mrb[0].mxu0
    %v1409 = vadd.f32 %v561, %v1408
    %v1410 = vpop.f32.mrb[0].mxu0
    %v1411 = vadd.f32 %v557, %v1410
    %v1412 = vpop.f32.mrb[0].mxu0
    %v1413 = vadd.f32 %v561, %v1412
    %1414 = vmatprep.mubr.bf16.mxu0 %v401
    %1415 = vmatmul.mubr.bf16.gmra.mrb[0].mxu0 %v400
    %v1416 = vpop.f32.mrb[0].mxu0
    %v1417 = vadd.f32 %v557, %v1416
    %v1418 = vpop.f32.mrb[0].mxu0
    %v1419 = vadd.f32 %v561, %v1418
    %v1420 = vpop.f32.mrb[0].mxu0
    %v1421 = vadd.f32 %v557, %v1420
    %v1422 = vpop.f32.mrb[0].mxu0
    %v1423 = vadd.f32 %v561, %v1422
    %1424 = vmatprep.mubr.bf16.mxu0 %v405
    %1425 = vmatmul.mubr.bf16.gmra.mrb[0].mxu0 %v404
    %v1426 = vpop.f32.mrb[0].mxu0
    %v1427 = vadd.f32 %v557, %v1426
    %v1428 = vpop.f32.mrb[0].mxu0
    %v1429 = vadd.f32 %v561, %v1428
    %v1430 = vpop.f32.mrb[0].mxu0
    %v1431 = vadd.f32 %v557, %v1430
    %v1432 = vpop.f32.mrb[0].mxu0
    %v1433 = vadd.f32 %v561, %v1432
    %1434 = vmatprep.mubr.bf16.mxu0 %v409
    %1435 = vmatmul.mubr.bf16.gmra.mrb[0].mxu0 %v408
    %v1436 = vpop.f32.mrb[0].mxu0
    %v1437 = vadd.f32 %v557, %v1436
    %v1438 = vpop.f32.mrb[0].mxu0
    %v1439 = vadd.f32 %v561, %v1438
    %v1440 = vpop.f32.mrb[0].mxu0
    %v1441 = vadd.f32 %v557, %v1440
    %v1442 = vpop.f32.mrb[0].mxu0
    %v1443 = vadd.f32 %v561, %v1442
    %1444 = vmatprep.mubr.bf16.mxu0 %v413
    %1445 = vmatmul.mubr.bf16.gmra.mrb[0].mxu0 %v412
    %v1446 = vpop.f32.mrb[0].mxu0
    %v1447 = vadd.f32 %v557, %v1446
    %v1448 = vpop.f32.mrb[0].mxu0
    %v1449 = vadd.f32 %v561, %v1448
    %v1450 = vpop.f32.mrb[0].mxu0
    %v1451 = vadd.f32 %v557, %v1450
    %v1452 = vpop.f32.mrb[0].mxu0
    %v1453 = vadd.f32 %v561, %v1452
    %1454 = vdwg.mxu0
    %1455 = vmatprep.subr.bf16.mxu0 %v1017
    %1456 = vmatpush1.bf16.msra.mxu0 %v1016
    %1457 = vmatprep.subr.bf16.mxu0 %v1021
    %1458 = vmatpush1.bf16.msra.mxu0 %v1020
    %1459 = vmatprep.subr.bf16.mxu0 %v1025
    %1460 = vmatpush1.bf16.msra.mxu0 %v1024
    %1461 = vmatprep.subr.bf16.mxu0 %v1029
    %1462 = vmatpush1.bf16.msra.mxu0 %v1028
    %1463 = vmatprep.subr.bf16.mxu0 %v1033
    %1464 = vmatpush1.bf16.msra.mxu0 %v1032
    %1465 = vmatprep.subr.bf16.mxu0 %v1037
    %1466 = vmatpush1.bf16.msra.mxu0 %v1036
    %1467 = vmatprep.subr.bf16.mxu0 %v1041
    %1468 = vmatpush1.bf16.msra.mxu0 %v1040
    %1469 = vmatprep.subr.bf16.mxu0 %v1045
    %1470 = vmatpush1.bf16.msra.mxu0 %v1044
    %1471 = vmatprep.subr.bf16.mxu0 %v1049
    %1472 = vmatpush1.bf16.msra.mxu0 %v1048
    %1473 = vmatprep.subr.bf16.mxu0 %v1053
    %1474 = vmatpush1.bf16.msra.mxu0 %v1052
    %1475 = vmatprep.subr.bf16.mxu0 %v1057
    %1476 = vmatpush1.bf16.msra.mxu0 %v1056
    %1477 = vmatprep.subr.bf16.mxu0 %v1061
    %1478 = vmatpush1.bf16.msra.mxu0 %v1060
    %1479 = vmatprep.subr.bf16.mxu0 %v1065
    %1480 = vmatpush1.bf16.msra.mxu0 %v1064
    %1481 = vmatprep.subr.bf16.mxu0 %v1069
    %1482 = vmatpush1.bf16.msra.mxu0 %v1068
    %1483 = vmatprep.subr.bf16.mxu0 %v1073
    %1484 = vmatpush1.bf16.msra.mxu0 %v1072
    %1485 = vmatprep.subr.bf16.mxu0 %v1077
    %1486 = vmatpush1.bf16.msra.mxu0 %v1076
    %1487 = vmatprep.mubr.bf16.mxu0 %v399
    %1488 = vmatmul.mubr.bf16.gmra.mrb[0].mxu0 %v398
    %v1489 = vpop.f32.mrb[0].mxu0
    %v1490 = vadd.f32 %v1407, %v1489
    %v1491 = vpop.f32.mrb[0].mxu0
    %v1492 = vadd.f32 %v1409, %v1491
    %v1493 = vpop.f32.mrb[0].mxu0
    %v1494 = vadd.f32 %v1411, %v1493
    %v1495 = vpop.f32.mrb[0].mxu0
    %v1496 = vadd.f32 %v1413, %v1495
    %1497 = vmatprep.mubr.bf16.mxu0 %v403
    %1498 = vmatmul.mubr.bf16.gmra.mrb[0].mxu0 %v402
    %v1499 = vpop.f32.mrb[0].mxu0
    %v1500 = vadd.f32 %v1417, %v1499
    %v1501 = vpop.f32.mrb[0].mxu0
    %v1502 = vadd.f32 %v1419, %v1501
    %v1503 = vpop.f32.mrb[0].mxu0
    %v1504 = vadd.f32 %v1421, %v1503
    %v1505 = vpop.f32.mrb[0].mxu0
    %v1506 = vadd.f32 %v1423, %v1505
    %1507 = vmatprep.mubr.bf16.mxu0 %v407
    %1508 = vmatmul.mubr.bf16.gmra.mrb[0].mxu0 %v406
    %v1509 = vpop.f32.mrb[0].mxu0
    %v1510 = vadd.f32 %v1427, %v1509
    %v1511 = vpop.f32.mrb[0].mxu0
    %v1512 = vadd.f32 %v1429, %v1511
    %v1513 = vpop.f32.mrb[0].mxu0
    %v1514 = vadd.f32 %v1431, %v1513
    %v1515 = vpop.f32.mrb[0].mxu0
    %v1516 = vadd.f32 %v1433, %v1515
    %1517 = vmatprep.mubr.bf16.mxu0 %v411
    %1518 = vmatmul.mubr.bf16.gmra.mrb[0].mxu0 %v410
    %v1519 = vpop.f32.mrb[0].mxu0
    %v1520 = vadd.f32 %v1437, %v1519
    %v1521 = vpop.f32.mrb[0].mxu0
    %v1522 = vadd.f32 %v1439, %v1521
    %v1523 = vpop.f32.mrb[0].mxu0
    %v1524 = vadd.f32 %v1441, %v1523
    %v1525 = vpop.f32.mrb[0].mxu0
    %v1526 = vadd.f32 %v1443, %v1525
    %1527 = vmatprep.mubr.bf16.mxu0 %v415
    %1528 = vmatmul.mubr.bf16.gmra.mrb[0].mxu0 %v414
    %v1529 = vpop.f32.mrb[0].mxu0
    %v1530 = vadd.f32 %v1447, %v1529
    %v1531 = vpop.f32.mrb[0].mxu0
    %v1532 = vadd.f32 %v1449, %v1531
    %v1533 = vpop.f32.mrb[0].mxu0
    %v1534 = vadd.f32 %v1451, %v1533
    %v1535 = vpop.f32.mrb[0].mxu0
    %v1536 = vadd.f32 %v1453, %v1535
    %1537 = vdwg.mxu0
    %v1538 = vmax.f32 %v1324, 0.0
    %v1539 = vmax.f32 %v1326, 0.0
    %v1540 = vmax.f32 %v1490, 0.0
    %v1541 = vmax.f32 %v1492, 0.0
    %v1542 = vmax.f32 %v1328, 0.0
    %v1543 = vmax.f32 %v1330, 0.0
    %v1544 = vmax.f32 %v1494, 0.0
    %v1545 = vmax.f32 %v1496, 0.0
    %v1546 = vmax.f32 %v1334, 0.0
    %v1547 = vmax.f32 %v1336, 0.0
    %v1548 = vmax.f32 %v1500, 0.0
    %v1549 = vmax.f32 %v1502, 0.0
    %v1550 = vmax.f32 %v1338, 0.0
    %v1551 = vmax.f32 %v1340, 0.0
    %v1552 = vmax.f32 %v1504, 0.0
    %v1553 = vmax.f32 %v1506, 0.0
    %v1554 = vmax.f32 %v1344, 0.0
    %v1555 = vmax.f32 %v1346, 0.0
    %v1556 = vmax.f32 %v1510, 0.0
    %v1557 = vmax.f32 %v1512, 0.0
    %v1558 = vmax.f32 %v1348, 0.0
    %v1559 = vmax.f32 %v1350, 0.0
    %v1560 = vmax.f32 %v1514, 0.0
    %v1561 = vmax.f32 %v1516, 0.0
    %v1562 = vmax.f32 %v1354, 0.0
    %v1563 = vmax.f32 %v1356, 0.0
    %v1564 = vmax.f32 %v1520, 0.0
    %v1565 = vmax.f32 %v1522, 0.0
    %v1566 = vmax.f32 %v1358, 0.0
    %v1567 = vmax.f32 %v1360, 0.0
    %v1568 = vmax.f32 %v1524, 0.0
    %v1569 = vmax.f32 %v1526, 0.0
    %v1570 = vmax.f32 %v1364, 0.0
    %v1571 = vmax.f32 %v1366, 0.0
    %v1572 = vmax.f32 %v1530, 0.0
    %v1573 = vmax.f32 %v1532, 0.0
    %v1574 = vmax.f32 %v1368, 0.0
    %v1575 = vmax.f32 %v1370, 0.0
    %v1576 = vmax.f32 %v1534, 0.0
    %v1577 = vmax.f32 %v1536, 0.0
    %v1578 = vpack.c.bf16 %v1542, %v1538
    %v1579 = vpack.c.bf16 %v1543, %v1539
    %v1580 = vpack.c.bf16 %v1544, %v1540
    %v1581 = vpack.c.bf16 %v1545, %v1541
    %v1582 = vpack.c.bf16 %v1550, %v1546
    %v1583 = vpack.c.bf16 %v1551, %v1547
    %v1584 = vpack.c.bf16 %v1552, %v1548
    %v1585 = vpack.c.bf16 %v1553, %v1549
    %v1586 = vpack.c.bf16 %v1558, %v1554
    %v1587 = vpack.c.bf16 %v1559, %v1555
    %v1588 = vpack.c.bf16 %v1560, %v1556
    %v1589 = vpack.c.bf16 %v1561, %v1557
    %v1590 = vpack.c.bf16 %v1566, %v1562
    %v1591 = vpack.c.bf16 %v1567, %v1563
    %v1592 = vpack.c.bf16 %v1568, %v1564
    %v1593 = vpack.c.bf16 %v1569, %v1565
    %v1594 = vpack.c.bf16 %v1574, %v1570
    %v1595 = vpack.c.bf16 %v1575, %v1571
    %v1596 = vpack.c.bf16 %v1576, %v1572
    %v1597 = vpack.c.bf16 %v1577, %v1573
    %v1598 = vld [vmem:[#allocation7] sm:$0xf]
    %v1599 = vld [vmem:[#allocation7 + $0x4] sm:$0xf]
    %v1600 = vld [vmem:[#allocation7 + $0x8] sm:$0xf]
    %v1601 = vld [vmem:[#allocation7 + $0xc] sm:$0xf]
    %v1602 = vld [vmem:[#allocation7 + $0x10] sm:$0xf]
    %v1603 = vld [vmem:[#allocation7 + $0x14] sm:$0xf]
    %v1604 = vld [vmem:[#allocation7 + $0x18] sm:$0xf]
    %v1605 = vld [vmem:[#allocation7 + $0x1c] sm:$0xf]
    %v1606 = vld [vmem:[#allocation7 + $0x20] sm:$0xf]
    %v1607 = vld [vmem:[#allocation7 + $0x24] sm:$0xf]
    %v1608 = vld [vmem:[#allocation7 + $0x28] sm:$0xf]
    %v1609 = vld [vmem:[#allocation7 + $0x2c] sm:$0xf]
    %v1610 = vld [vmem:[#allocation7 + $0x30] sm:$0xf]
    %v1611 = vld [vmem:[#allocation7 + $0x34] sm:$0xf]
    %v1612 = vld [vmem:[#allocation7 + $0x38] sm:$0xf]
    %v1613 = vld [vmem:[#allocation7 + $0x3c] sm:$0xf]
    %v1614 = vld [vmem:[#allocation7 + $0x40] sm:$0xf]
    %v1615 = vld [vmem:[#allocation7 + $0x44] sm:$0xf]
    %v1616 = vld [vmem:[#allocation7 + $0x48] sm:$0xf]
    %v1617 = vld [vmem:[#allocation7 + $0x4c] sm:$0xf]
    %v1618 = vld [vmem:[#allocation7 + $0x50] sm:$0xf]
    %v1619 = vld [vmem:[#allocation7 + $0x54] sm:$0xf]
    %v1620 = vld [vmem:[#allocation7 + $0x58] sm:$0xf]
    %v1621 = vld [vmem:[#allocation7 + $0x5c] sm:$0xf]
    %v1622 = vld [vmem:[#allocation7 + $0x60] sm:$0xf]
    %v1623 = vld [vmem:[#allocation7 + $0x64] sm:$0xf]
    %v1624 = vld [vmem:[#allocation7 + $0x68] sm:$0xf]
    %v1625 = vld [vmem:[#allocation7 + $0x6c] sm:$0xf]
    %v1626 = vld [vmem:[#allocation7 + $0x70] sm:$0xf]
    %v1627 = vld [vmem:[#allocation7 + $0x74] sm:$0xf]
    %v1628 = vld [vmem:[#allocation7 + $0x78] sm:$0xf]
    %v1629 = vld [vmem:[#allocation7 + $0x7c] sm:$0xf]
    %v1630 = vld [vmem:[#allocation7 + $0x80] sm:$0xf]
    %v1631 = vld [vmem:[#allocation7 + $0x84] sm:$0xf]
    %v1632 = vld [vmem:[#allocation7 + $0x88] sm:$0xf]
    %v1633 = vld [vmem:[#allocation7 + $0x8c] sm:$0xf]
    %v1634 = vld [vmem:[#allocation7 + $0x90] sm:$0xf]
    %v1635 = vld [vmem:[#allocation7 + $0x94] sm:$0xf]
    %v1636 = vld [vmem:[#allocation7 + $0x98] sm:$0xf]
    %v1637 = vld [vmem:[#allocation7 + $0x9c] sm:$0xf]
    %v1638 = vld [vmem:[#allocation7 + $0xa0] sm:$0xf]
    %v1639 = vld [vmem:[#allocation7 + $0xa4] sm:$0xf]
    %v1640 = vld [vmem:[#allocation7 + $0xa8] sm:$0xf]
    %v1641 = vld [vmem:[#allocation7 + $0xac] sm:$0xf]
    %v1642 = vld [vmem:[#allocation7 + $0xb0] sm:$0xf]
    %v1643 = vld [vmem:[#allocation7 + $0xb4] sm:$0xf]
    %v1644 = vld [vmem:[#allocation7 + $0xb8] sm:$0xf]
    %v1645 = vld [vmem:[#allocation7 + $0xbc] sm:$0xf]
    %v1646 = vld [vmem:[#allocation7 + $0xc0] sm:$0xf]
    %v1647 = vld [vmem:[#allocation7 + $0xc4] sm:$0xf]
    %v1648 = vld [vmem:[#allocation7 + $0xc8] sm:$0xf]
    %v1649 = vld [vmem:[#allocation7 + $0xcc] sm:$0xf]
    %v1650 = vld [vmem:[#allocation7 + $0xd0] sm:$0xf]
    %v1651 = vld [vmem:[#allocation7 + $0xd4] sm:$0xf]
    %v1652 = vld [vmem:[#allocation7 + $0xd8] sm:$0xf]
    %v1653 = vld [vmem:[#allocation7 + $0xdc] sm:$0xf]
    %v1654 = vld [vmem:[#allocation7 + $0xe0] sm:$0xf]
    %v1655 = vld [vmem:[#allocation7 + $0xe4] sm:$0xf]
    %v1656 = vld [vmem:[#allocation7 + $0xe8] sm:$0xf]
    %v1657 = vld [vmem:[#allocation7 + $0xec] sm:$0xf]
    %v1658 = vld [vmem:[#allocation7 + $0xf0] sm:$0xf]
    %v1659 = vld [vmem:[#allocation7 + $0xf4] sm:$0xf]
    %v1660 = vld [vmem:[#allocation7 + $0xf8] sm:$0xf]
    %v1661 = vld [vmem:[#allocation7 + $0xfc] sm:$0xf]
    %v1662 = vld [vmem:[%s6] sm:$0x1]
    %v1664 = vlaneseq
    %v1665 = vshrl.u32 %v1664, 7
    %v1666 = vsub.s32 0, %v1665
    %v1667 = vrot.slane %v1662, %v1666
    %v1733 = vunpack.c.l.b16 %v1598
    %v1734 = vunpack.c.l.b16 %v1599
    %v1735 = vunpack.c.l.b16 %v1600
    %v1736 = vunpack.c.l.b16 %v1601
    %v1737 = vunpack.c.l.b16 %v1602
    %v1738 = vunpack.c.l.b16 %v1603
    %v1739 = vunpack.c.l.b16 %v1604
    %v1740 = vunpack.c.l.b16 %v1605
    %v1741 = vunpack.c.l.b16 %v1606
    %v1742 = vunpack.c.l.b16 %v1607
    %v1743 = vunpack.c.l.b16 %v1608
    %v1744 = vunpack.c.l.b16 %v1609
    %v1745 = vunpack.c.l.b16 %v1610
    %v1746 = vunpack.c.l.b16 %v1611
    %v1747 = vunpack.c.l.b16 %v1612
    %v1748 = vunpack.c.l.b16 %v1613
    %v1749 = vunpack.c.l.b16 %v1614
    %v1750 = vunpack.c.l.b16 %v1615
    %v1751 = vunpack.c.l.b16 %v1616
    %v1752 = vunpack.c.l.b16 %v1617
    %v1753 = vunpack.c.l.b16 %v1618
    %v1754 = vunpack.c.l.b16 %v1619
    %v1755 = vunpack.c.l.b16 %v1620
    %v1756 = vunpack.c.l.b16 %v1621
    %v1757 = vunpack.c.l.b16 %v1622
    %v1758 = vunpack.c.l.b16 %v1623
    %v1759 = vunpack.c.l.b16 %v1624
    %v1760 = vunpack.c.l.b16 %v1625
    %v1761 = vunpack.c.l.b16 %v1626
    %v1762 = vunpack.c.l.b16 %v1627
    %v1763 = vunpack.c.l.b16 %v1628
    %v1764 = vunpack.c.l.b16 %v1629
    %v1765 = vunpack.c.l.b16 %v1630
    %v1766 = vunpack.c.l.b16 %v1631
    %v1767 = vunpack.c.l.b16 %v1632
    %v1768 = vunpack.c.l.b16 %v1633
    %v1769 = vunpack.c.l.b16 %v1634
    %v1770 = vunpack.c.l.b16 %v1635
    %v1771 = vunpack.c.l.b16 %v1636
    %v1772 = vunpack.c.l.b16 %v1637
    %v1773 = vunpack.c.l.b16 %v1638
    %v1774 = vunpack.c.l.b16 %v1639
    %v1775 = vunpack.c.l.b16 %v1640
    %v1776 = vunpack.c.l.b16 %v1641
    %v1777 = vunpack.c.l.b16 %v1642
    %v1778 = vunpack.c.l.b16 %v1643
    %v1779 = vunpack.c.l.b16 %v1644
    %v1780 = vunpack.c.l.b16 %v1645
    %v1781 = vunpack.c.l.b16 %v1646
    %v1782 = vunpack.c.l.b16 %v1647
    %v1783 = vunpack.c.l.b16 %v1648
    %v1784 = vunpack.c.l.b16 %v1649
    %v1785 = vunpack.c.l.b16 %v1650
    %v1786 = vunpack.c.l.b16 %v1651
    %v1787 = vunpack.c.l.b16 %v1652
    %v1788 = vunpack.c.l.b16 %v1653
    %v1789 = vunpack.c.l.b16 %v1654
    %v1790 = vunpack.c.l.b16 %v1655
    %v1791 = vunpack.c.l.b16 %v1656
    %v1792 = vunpack.c.l.b16 %v1657
    %v1793 = vunpack.c.l.b16 %v1658
    %v1794 = vunpack.c.l.b16 %v1659
    %v1795 = vunpack.c.l.b16 %v1660
    %v1796 = vunpack.c.l.b16 %v1661
    %v1797 = vpack.c.b16 %v1734, %v1733
    %v1798 = vpack.c.b16 %v1736, %v1735
    %v1799 = vpack.c.b16 %v1738, %v1737
    %v1800 = vpack.c.b16 %v1740, %v1739
    %v1801 = vpack.c.b16 %v1742, %v1741
    %v1802 = vpack.c.b16 %v1744, %v1743
    %v1803 = vpack.c.b16 %v1746, %v1745
    %v1804 = vpack.c.b16 %v1748, %v1747
    %v1805 = vpack.c.b16 %v1750, %v1749
    %v1806 = vpack.c.b16 %v1752, %v1751
    %v1807 = vpack.c.b16 %v1754, %v1753
    %v1808 = vpack.c.b16 %v1756, %v1755
    %v1809 = vpack.c.b16 %v1758, %v1757
    %v1810 = vpack.c.b16 %v1760, %v1759
    %v1811 = vpack.c.b16 %v1762, %v1761
    %v1812 = vpack.c.b16 %v1764, %v1763
    %v1813 = vpack.c.b16 %v1766, %v1765
    %v1814 = vpack.c.b16 %v1768, %v1767
    %v1815 = vpack.c.b16 %v1770, %v1769
    %v1816 = vpack.c.b16 %v1772, %v1771
    %v1817 = vpack.c.b16 %v1774, %v1773
    %v1818 = vpack.c.b16 %v1776, %v1775
    %v1819 = vpack.c.b16 %v1778, %v1777
    %v1820 = vpack.c.b16 %v1780, %v1779
    %v1821 = vpack.c.b16 %v1782, %v1781
    %v1822 = vpack.c.b16 %v1784, %v1783
    %v1823 = vpack.c.b16 %v1786, %v1785
    %v1824 = vpack.c.b16 %v1788, %v1787
    %v1825 = vpack.c.b16 %v1790, %v1789
    %v1826 = vpack.c.b16 %v1792, %v1791
    %v1827 = vpack.c.b16 %v1794, %v1793
    %v1828 = vpack.c.b16 %v1796, %v1795
    %1861 = vmatprep.subr.bf16.mxu0 0
    %1862 = vmatpush1.bf16.msra.mxu0 %v1797
    %1863 = vmatprep.subr.bf16.mxu0 0
    %1864 = vmatpush1.bf16.msra.mxu0 %v1798
    %1865 = vmatprep.subr.bf16.mxu0 0
    %1866 = vmatpush1.bf16.msra.mxu0 %v1799
    %1867 = vmatprep.subr.bf16.mxu0 0
    %1868 = vmatpush1.bf16.msra.mxu0 %v1800
    %1869 = vmatprep.subr.bf16.mxu0 0
    %1870 = vmatpush1.bf16.msra.mxu0 %v1801
    %1871 = vmatprep.subr.bf16.mxu0 0
    %1872 = vmatpush1.bf16.msra.mxu0 %v1802
    %1873 = vmatprep.subr.bf16.mxu0 0
    %1874 = vmatpush1.bf16.msra.mxu0 %v1803
    %1875 = vmatprep.subr.bf16.mxu0 0
    %1876 = vmatpush1.bf16.msra.mxu0 %v1804
    %1877 = vmatprep.subr.bf16.mxu0 0
    %1878 = vmatpush1.bf16.msra.mxu0 %v1805
    %1879 = vmatprep.subr.bf16.mxu0 0
    %1880 = vmatpush1.bf16.msra.mxu0 %v1806
    %1881 = vmatprep.subr.bf16.mxu0 0
    %1882 = vmatpush1.bf16.msra.mxu0 %v1807
    %1883 = vmatprep.subr.bf16.mxu0 0
    %1884 = vmatpush1.bf16.msra.mxu0 %v1808
    %1885 = vmatprep.subr.bf16.mxu0 0
    %1886 = vmatpush1.bf16.msra.mxu0 %v1809
    %1887 = vmatprep.subr.bf16.mxu0 0
    %1888 = vmatpush1.bf16.msra.mxu0 %v1810
    %1889 = vmatprep.subr.bf16.mxu0 0
    %1890 = vmatpush1.bf16.msra.mxu0 %v1811
    %1891 = vmatprep.subr.bf16.mxu0 0
    %1892 = vmatpush1.bf16.msra.mxu0 %v1812
    %1893 = vmatprep.mubr.bf16.mxu0 %v1579
    %1894 = vmatmul.mubr.bf16.gmra.mrb[0].mxu0 %v1578
    %v1895 = vpop.f32.mrb[0].mxu0
    %v1896 = vadd.f32 %v1667, %v1895
    %v1897 = vpop.f32.mrb[0].mxu0
    %v1898 = vpop.f32.mrb[0].mxu0
    %v1899 = vadd.f32 %v1667, %v1898
    %v1900 = vpop.f32.mrb[0].mxu0
    %1901 = vmatprep.mubr.bf16.mxu0 %v1583
    %1902 = vmatmul.mubr.bf16.gmra.mrb[0].mxu0 %v1582
    %v1903 = vpop.f32.mrb[0].mxu0
    %v1904 = vadd.f32 %v1667, %v1903
    %v1905 = vpop.f32.mrb[0].mxu0
    %v1906 = vpop.f32.mrb[0].mxu0
    %v1907 = vadd.f32 %v1667, %v1906
    %v1908 = vpop.f32.mrb[0].mxu0
    %1909 = vmatprep.mubr.bf16.mxu0 %v1587
    %1910 = vmatmul.mubr.bf16.gmra.mrb[0].mxu0 %v1586
    %v1911 = vpop.f32.mrb[0].mxu0
    %v1912 = vadd.f32 %v1667, %v1911
    %v1913 = vpop.f32.mrb[0].mxu0
    %v1914 = vpop.f32.mrb[0].mxu0
    %v1915 = vadd.f32 %v1667, %v1914
    %v1916 = vpop.f32.mrb[0].mxu0
    %1917 = vmatprep.mubr.bf16.mxu0 %v1591
    %1918 = vmatmul.mubr.bf16.gmra.mrb[0].mxu0 %v1590
    %v1919 = vpop.f32.mrb[0].mxu0
    %v1920 = vadd.f32 %v1667, %v1919
    %v1921 = vpop.f32.mrb[0].mxu0
    %v1922 = vpop.f32.mrb[0].mxu0
    %v1923 = vadd.f32 %v1667, %v1922
    %v1924 = vpop.f32.mrb[0].mxu0
    %1925 = vmatprep.mubr.bf16.mxu0 %v1595
    %1926 = vmatmul.mubr.bf16.gmra.mrb[0].mxu0 %v1594
    %v1927 = vpop.f32.mrb[0].mxu0
    %v1928 = vadd.f32 %v1667, %v1927
    %v1929 = vpop.f32.mrb[0].mxu0
    %v1930 = vpop.f32.mrb[0].mxu0
    %v1931 = vadd.f32 %v1667, %v1930
    %v1932 = vpop.f32.mrb[0].mxu0
    %1933 = vdwg.mxu0
    %1934 = vmatprep.subr.bf16.mxu0 0
    %1935 = vmatpush1.bf16.msra.mxu0 %v1813
    %1936 = vmatprep.subr.bf16.mxu0 0
    %1937 = vmatpush1.bf16.msra.mxu0 %v1814
    %1938 = vmatprep.subr.bf16.mxu0 0
    %1939 = vmatpush1.bf16.msra.mxu0 %v1815
    %1940 = vmatprep.subr.bf16.mxu0 0
    %1941 = vmatpush1.bf16.msra.mxu0 %v1816
    %1942 = vmatprep.subr.bf16.mxu0 0
    %1943 = vmatpush1.bf16.msra.mxu0 %v1817
    %1944 = vmatprep.subr.bf16.mxu0 0
    %1945 = vmatpush1.bf16.msra.mxu0 %v1818
    %1946 = vmatprep.subr.bf16.mxu0 0
    %1947 = vmatpush1.bf16.msra.mxu0 %v1819
    %1948 = vmatprep.subr.bf16.mxu0 0
    %1949 = vmatpush1.bf16.msra.mxu0 %v1820
    %1950 = vmatprep.subr.bf16.mxu0 0
    %1951 = vmatpush1.bf16.msra.mxu0 %v1821
    %1952 = vmatprep.subr.bf16.mxu0 0
    %1953 = vmatpush1.bf16.msra.mxu0 %v1822
    %1954 = vmatprep.subr.bf16.mxu0 0
    %1955 = vmatpush1.bf16.msra.mxu0 %v1823
    %1956 = vmatprep.subr.bf16.mxu0 0
    %1957 = vmatpush1.bf16.msra.mxu0 %v1824
    %1958 = vmatprep.subr.bf16.mxu0 0
    %1959 = vmatpush1.bf16.msra.mxu0 %v1825
    %1960 = vmatprep.subr.bf16.mxu0 0
    %1961 = vmatpush1.bf16.msra.mxu0 %v1826
    %1962 = vmatprep.subr.bf16.mxu0 0
    %1963 = vmatpush1.bf16.msra.mxu0 %v1827
    %1964 = vmatprep.subr.bf16.mxu0 0
    %1965 = vmatpush1.bf16.msra.mxu0 %v1828
    %1966 = vmatprep.mubr.bf16.mxu0 %v1581
    %1967 = vmatmul.mubr.bf16.gmra.mrb[0].mxu0 %v1580
    %v1968 = vpop.f32.mrb[0].mxu0
    %v1969 = vadd.f32 %v1896, %v1968
    %v1970 = vpop.f32.mrb[0].mxu0
    %v1971 = vpop.f32.mrb[0].mxu0
    %v1972 = vadd.f32 %v1899, %v1971
    %v1973 = vpop.f32.mrb[0].mxu0
    %1974 = vmatprep.mubr.bf16.mxu0 %v1585
    %1975 = vmatmul.mubr.bf16.gmra.mrb[0].mxu0 %v1584
    %v1976 = vpop.f32.mrb[0].mxu0
    %v1977 = vadd.f32 %v1904, %v1976
    %v1978 = vpop.f32.mrb[0].mxu0
    %v1979 = vpop.f32.mrb[0].mxu0
    %v1980 = vadd.f32 %v1907, %v1979
    %v1981 = vpop.f32.mrb[0].mxu0
    %1982 = vmatprep.mubr.bf16.mxu0 %v1589
    %1983 = vmatmul.mubr.bf16.gmra.mrb[0].mxu0 %v1588
    %v1984 = vpop.f32.mrb[0].mxu0
    %v1985 = vadd.f32 %v1912, %v1984
    %v1986 = vpop.f32.mrb[0].mxu0
    %v1987 = vpop.f32.mrb[0].mxu0
    %v1988 = vadd.f32 %v1915, %v1987
    %v1989 = vpop.f32.mrb[0].mxu0
    %1990 = vmatprep.mubr.bf16.mxu0 %v1593
    %1991 = vmatmul.mubr.bf16.gmra.mrb[0].mxu0 %v1592
    %v1992 = vpop.f32.mrb[0].mxu0
    %v1993 = vadd.f32 %v1920, %v1992
    %v1994 = vpop.f32.mrb[0].mxu0
    %v1995 = vpop.f32.mrb[0].mxu0
    %v1996 = vadd.f32 %v1923, %v1995
    %v1997 = vpop.f32.mrb[0].mxu0
    %1998 = vmatprep.mubr.bf16.mxu0 %v1597
    %1999 = vmatmul.mubr.bf16.gmra.mrb[0].mxu0 %v1596
    %v2000 = vpop.f32.mrb[0].mxu0
    %v2001 = vadd.f32 %v1928, %v2000
    %v2002 = vpop.f32.mrb[0].mxu0
    %v2003 = vpop.f32.mrb[0].mxu0
    %v2004 = vadd.f32 %v1931, %v2003
    %v2005 = vpop.f32.mrb[0].mxu0
    %2006 = vdwg.mxu0
    %2007 = vst [vmem:[#allocation8] sm:$0xff] %v1969
    %2008 = vst [vmem:[#allocation8 + $0x8] sm:$0xff] %v1972
    %2009 = vst [vmem:[#allocation8 + $0x10] sm:$0xff] %v1977
    %2010 = vst [vmem:[#allocation8 + $0x18] sm:$0xff] %v1980
    %2011 = vst [vmem:[#allocation8 + $0x20] sm:$0xff] %v1985
    %2012 = vst [vmem:[#allocation8 + $0x28] sm:$0xff] %v1988
    %2013 = vst [vmem:[#allocation8 + $0x30] sm:$0xff] %v1993
    %2014 = vst [vmem:[#allocation8 + $0x38] sm:$0xff] %v1996
    %2015 = vst [vmem:[#allocation8 + $0x40] sm:$0xff] %v2001
    %2016 = vst [vmem:[#allocation8 + $0x48] sm:$0xff] %v2004
    // Predicated region
    $region42: #{tpu_custom_call.1} parent=1 // pred_check
      _
    $region43: #{tpu_custom_call.1} parent=1 // pred_check_branch
      %2018 = sbr.rel (0) target = $region45
    $region44: #{tpu_custom_call.1} parent=1 // pred_region
      %s2020 = ssub.s32 1280, 1280
      %2021 = vsyncadd [#allocation4], %s2020
      %s2022 = sshll.u32 [#allocation8], 4
      %s2023 = int_to_ptr.vmem [resolvable:$true] %s2022
      %2028 = dma.vmem_to_hbm [thread:$0]  %s2023, 1280, %s7, [#allocation4], 128, 128, 8
    $region45: #{tpu_custom_call.1} parent=1 // pred_fallthru
      _
    // Predicated region
    $region46: #{tpu_custom_call.1} parent=1 // pred_check
      _
    $region47: #{tpu_custom_call.1} parent=1 // pred_check_branch
      %2030 = sbr.rel (0) target = $region49
    $region48: #{tpu_custom_call.1} parent=1 // pred_region
      %2031 = dma.done [#allocation4], 1280
    $region49: #{tpu_custom_call.1} parent=1 // pred_fallthru
      _
    %2032 = vsyncpa [#allocation3], 1
    %2033 = vsyncpa [#allocation6], 1
    %2034 = vsyncpa [#allocation4], 1

// kernel: tpu_custom_call.1
$region0: #{tpu_custom_call.1}
  #allocation0 [shape = 'u32[]', space=smem, size = 0x4, offset = 0x4, fixed_abs, tag = 'smem constant byte address 0x4 - core index']
  #allocation1 [shape = 'u32[144,128]{1,0:T(1,128)}', space=vmem, size = 0x12000, scoped, tag = 'internal scratch']
  %s0 = inlined_call_operand.vmem [shape: bf16[80,32], index: 0, kind: input, shape index: {}]
  %s1 = inlined_call_operand.hbm [shape: bf16[32,512], index: 1, kind: input, shape index: {}]
  %s2 = inlined_call_operand.vmem [shape: f32[1,512], index: 2, kind: input, shape index: {}]
  %s3 = inlined_call_operand.hbm [shape: bf16[512,512], index: 3, kind: input, shape index: {}]
  %s4 = inlined_call_operand.vmem [shape: f32[1,512], index: 4, kind: input, shape index: {}]
  %s5 = inlined_call_operand.hbm [shape: bf16[512,128], index: 5, kind: input, shape index: {}]
  %s6 = inlined_call_operand.vmem [shape: f32[1,128], index: 6, kind: input, shape index: {}]
  %s7 = inlined_call_operand.hbm [shape: f32[80,128], index: 7, kind: output, shape index: {}]
  %s8 = sld [smem:[#allocation0]]
  $region50: #{tpu_custom_call.1} parent=0
    _
  %s10 = ssub.s32 1, %s8
  %s11 = scalar_select 0, %s10, %s8
  $region1: #{tpu_custom_call.1} parent=0
    #allocation2 [shape = 'u8[32768]{0}', space=vmem, size = 0x8000, scoped, tag = 'input window, operand 1, single buffered']
    #allocation3 [shape = 's32[1]{0}', space=sflag, size = 0x4, scoped, tag = 'scoped memory for tpu_custom_call.1']
    #allocation4 [shape = 's32[1]{0}', space=sflag, size = 0x4, scoped, tag = 'scoped memory for tpu_custom_call.1']
    #allocation5 [shape = 'u8[524288]{0}', space=vmem, size = 0x80000, scoped, tag = 'input window, operand 3, single buffered']
    #allocation6 [shape = 's32[1]{0}', space=sflag, size = 0x4, scoped, tag = 'scoped memory for tpu_custom_call.1']
    #allocation7 [shape = 'u8[131072]{0}', space=vmem, size = 0x20000, scoped, tag = 'input window, operand 5, single buffered']
    #allocation8 [shape = 'u8[40960]{0}', space=vmem, size = 0xa000, scoped, tag = 'output window, operand 0, single buffered']
    %12 = vsyncpa [#allocation3], 0
    %13 = vsyncpa [#allocation6], 0
    %14 = vsyncpa [#allocation4], 0
    // Predicated region
    $region2: #{tpu_custom_call.1} parent=1 // pred_check
      _
    $region3: #{tpu_custom_call.1} parent=1 // pred_check_branch
      %16 = sbr.rel (0) target = $region5
    $region4: #{tpu_custom_call.1} parent=1 // pred_region
      _
    $region5: #{tpu_custom_call.1} parent=1 // pred_fallthru
      _
    // Predicated region
    $region6: #{tpu_custom_call.1} parent=1 // pred_check
      _
    $region7: #{tpu_custom_call.1} parent=1 // pred_check_branch
      %18 = sbr.rel (0) target = $region9
    $region8: #{tpu_custom_call.1} parent=1 // pred_region
      %s20 = ssub.s32 1024, 1024
      %21 = vsyncadd [#allocation3], %s20
      %s22 = sshll.u32 [#allocation2], 4
      %s23 = int_to_ptr.vmem [resolvable:$true] %s22
      %28 = dma.hbm_to_vmem [thread:$0]  %s1, 1024, %s23, [#allocation3], 256, 256, 16
    $region9: #{tpu_custom_call.1} parent=1 // pred_fallthru
      _
    // Predicated region
    $region10: #{tpu_custom_call.1} parent=1 // pred_check
      _
    $region11: #{tpu_custom_call.1} parent=1 // pred_check_branch
      %30 = sbr.rel (0) target = $region13
    $region12: #{tpu_custom_call.1} parent=1 // pred_region
      _
    $region13: #{tpu_custom_call.1} parent=1 // pred_fallthru
      _
    // Predicated region
    $region14: #{tpu_custom_call.1} parent=1 // pred_check
      _
    $region15: #{tpu_custom_call.1} parent=1 // pred_check_branch
      %32 = sbr.rel (0) target = $region17
    $region16: #{tpu_custom_call.1} parent=1 // pred_region
      %s34 = ssub.s32 16384, 16384
      %35 = vsyncadd [#allocation6], %s34
      %s36 = sshll.u32 [#allocation5], 4
      %s37 = int_to_ptr.vmem [resolvable:$true] %s36
      %42 = dma.hbm_to_vmem [thread:$0]  %s3, 16384, %s37, [#allocation6], 256, 256, 16
    $region17: #{tpu_custom_call.1} parent=1 // pred_fallthru
      _
    // Predicated region
    $region18: #{tpu_custom_call.1} parent=1 // pred_check
      _
    $region19: #{tpu_custom_call.1} parent=1 // pred_check_branch
      %44 = sbr.rel (0) target = $region21
    $region20: #{tpu_custom_call.1} parent=1 // pred_region
      _
    $region21: #{tpu_custom_call.1} parent=1 // pred_fallthru
      _
    // Predicated region
    $region22: #{tpu_custom_call.1} parent=1 // pred_check
      _
    $region23: #{tpu_custom_call.1} parent=1 // pred_check_branch
      %46 = sbr.rel (0) target = $region25
    $region24: #{tpu_custom_call.1} parent=1 // pred_region
      %s48 = ssub.s32 4096, 4096
      %49 = vsyncadd [#allocation6], %s48
      %s50 = sshll.u32 [#allocation7], 4
      %s51 = int_to_ptr.vmem [resolvable:$true] %s50
      %56 = dma.hbm_to_vmem [thread:$0]  %s5, 4096, %s51, [#allocation6], 64, 64, 4
    $region25: #{tpu_custom_call.1} parent=1 // pred_fallthru
      _
    // Predicated region
    $region26: #{tpu_custom_call.1} parent=1 // pred_check
      _
    $region27: #{tpu_custom_call.1} parent=1 // pred_check_branch
      %58 = sbr.rel (0) target = $region29
    $region28: #{tpu_custom_call.1} parent=1 // pred_region
      _
    $region29: #{tpu_custom_call.1} parent=1 // pred_fallthru
      _
    // Predicated region
    $region30: #{tpu_custom_call.1} parent=1 // pred_check
      _
    $region31: #{tpu_custom_call.1} parent=1 // pred_check_branch
      %60 = sbr.rel (0) target = $region33
    $region32: #{tpu_custom_call.1} parent=1 // pred_region
      %61 = dma.done [#allocation3], 1024
    $region33: #{tpu_custom_call.1} parent=1 // pred_fallthru
      _
    // Predicated region
    $region34: #{tpu_custom_call.1} parent=1 // pred_check
      _
    $region35: #{tpu_custom_call.1} parent=1 // pred_check_branch
      %63 = sbr.rel (0) target = $region37
    $region36: #{tpu_custom_call.1} parent=1 // pred_region
      %64 = dma.done [#allocation6], 16384
    $region37: #{tpu_custom_call.1} parent=1 // pred_fallthru
      _
    // Predicated region
    $region38: #{tpu_custom_call.1} parent=1 // pred_check
      _
    $region39: #{tpu_custom_call.1} parent=1 // pred_check_branch
      %66 = sbr.rel (0) target = $region41
    $region40: #{tpu_custom_call.1} parent=1 // pred_region
      %67 = dma.done [#allocation6], 4096
    $region41: #{tpu_custom_call.1} parent=1 // pred_fallthru
      _
    %v69 = vld [vmem:[%s0] sm:$0xf]
    %v70 = vld [vmem:[%s0 + $0x4] sm:$0xf]
    %v71 = vld [vmem:[%s0 + $0x8] sm:$0xf]
    %v72 = vld [vmem:[%s0 + $0xc] sm:$0xf]
    %v73 = vld [vmem:[%s0 + $0x10] sm:$0xf]
    %v74 = vld [vmem:[%s0 + $0x14] sm:$0xf]
    %v75 = vld [vmem:[%s0 + $0x18] sm:$0xf]
    %v76 = vld [vmem:[%s0 + $0x1c] sm:$0xf]
    %v77 = vld [vmem:[%s0 + $0x20] sm:$0xf]
    %v78 = vld [vmem:[%s0 + $0x24] sm:$0xf]
    %v79 = vld [vmem:[#allocation2] sm:$0xff]
    %v80 = vld [vmem:[#allocation2 + $0x8] sm:$0xff]
    %v81 = vld [vmem:[#allocation2 + $0x10] sm:$0xff]
    %v82 = vld [vmem:[#allocation2 + $0x18] sm:$0xff]
    %v83 = vld [vmem:[#allocation2 + $0x20] sm:$0xff]
    %v84 = vld [vmem:[#allocation2 + $0x28] sm:$0xff]
    %v85 = vld [vmem:[#allocation2 + $0x30] sm:$0xff]
    %v86 = vld [vmem:[#allocation2 + $0x38] sm:$0xff]
    %v87 = vld [vmem:[%s2] sm:$0xf]
    %v89 = vlaneseq
    %v90 = vshrl.u32 %v89, 7
    %v91 = vsub.s32 0, %v90
    %v92 = vrot.slane %v87, %v91
    %v93 = vlaneseq
    %v94 = vshrl.u32 %v93, 7
    %v95 = vsub.s32 1, %v94
    %v96 = vrot.slane %v87, %v95
    %v97 = vlaneseq
    %v98 = vshrl.u32 %v97, 7
    %v99 = vsub.s32 2, %v98
    %v100 = vrot.slane %v87, %v99
    %v101 = vlaneseq
    %v102 = vshrl.u32 %v101, 7
    %v103 = vsub.s32 3, %v102
    %v104 = vrot.slane %v87, %v103
    %v119 = vunpack.c.l.b16 %v69
    %v120 = vunpack.c.l.b16 %v70
    %v121 = vunpack.c.l.b16 %v71
    %v122 = vunpack.c.l.b16 %v72
    %v123 = vunpack.c.l.b16 %v73
    %v124 = vunpack.c.l.b16 %v74
    %v125 = vunpack.c.l.b16 %v75
    %v126 = vunpack.c.l.b16 %v76
    %v127 = vunpack.c.l.b16 %v77
    %v128 = vunpack.c.l.b16 %v78
    %v129 = vpack.c.b16 %v120, %v119
    %v130 = vpack.c.b16 %v122, %v121
    %v131 = vpack.c.b16 %v124, %v123
    %v132 = vpack.c.b16 %v126, %v125
    %v133 = vpack.c.b16 %v128, %v127
    %v142 = vunpack.c.l.b16 %v79
    %v143 = vunpack.c.h.b16 %v79
    %v144 = vunpack.c.l.b16 %v80
    %v145 = vunpack.c.h.b16 %v80
    %v146 = vunpack.c.l.b16 %v81
    %v147 = vunpack.c.h.b16 %v81
    %v148 = vunpack.c.l.b16 %v82
    %v149 = vunpack.c.h.b16 %v82
    %v150 = vunpack.c.l.b16 %v83
    %v151 = vunpack.c.h.b16 %v83
    %v152 = vunpack.c.l.b16 %v84
    %v153 = vunpack.c.h.b16 %v84
    %v154 = vunpack.c.l.b16 %v85
    %v155 = vunpack.c.h.b16 %v85
    %v156 = vunpack.c.l.b16 %v86
    %v157 = vunpack.c.h.b16 %v86
    %v158 = vpack.c.b16 %v146, %v142
    %v159 = vpack.c.b16 %v147, %v143
    %v160 = vpack.c.b16 %v148, %v144
    %v161 = vpack.c.b16 %v149, %v145
    %v162 = vpack.c.b16 %v154, %v150
    %v163 = vpack.c.b16 %v155, %v151
    %v164 = vpack.c.b16 %v156, %v152
    %v165 = vpack.c.b16 %v157, %v153
    %vm174 = vcmask 261120
    %v176 = vsel %vm174, %v129, 0
    %v179 = vsel %vm174, %v130, 0
    %v182 = vsel %vm174, %v131, 0
    %v185 = vsel %vm174, %v132, 0
    %v188 = vsel %vm174, %v133, 0
    %190 = vmatprep.subr.bf16.mxu0 %v159
    %191 = vmatpush1.bf16.msra.mxu0 %v158
    %192 = vmatprep.subr.bf16.mxu0 %v163
    %193 = vmatpush1.bf16.msra.mxu0 %v162
    %194 = vmatprep.subr.bf16.mxu0 0
    %195 = vmatpush1.bf16.msra.mxu0 0
    %196 = vmatprep.subr.bf16.mxu0 0
    %197 = vmatpush1.bf16.msra.mxu0 0
    %198 = vmatprep.subr.bf16.mxu0 0
    %199 = vmatpush1.bf16.msra.mxu0 0
    %200 = vmatprep.subr.bf16.mxu0 0
    %201 = vmatpush1.bf16.msra.mxu0 0
    %202 = vmatprep.subr.bf16.mxu0 0
    %203 = vmatpush1.bf16.msra.mxu0 0
    %204 = vmatprep.subr.bf16.mxu0 0
    %205 = vmatpush1.bf16.msra.mxu0 0
    %206 = vmatprep.subr.bf16.mxu0 0
    %207 = vmatpush1.bf16.msra.mxu0 0
    %208 = vmatprep.subr.bf16.mxu0 0
    %209 = vmatpush1.bf16.msra.mxu0 0
    %210 = vmatprep.subr.bf16.mxu0 0
    %211 = vmatpush1.bf16.msra.mxu0 0
    %212 = vmatprep.subr.bf16.mxu0 0
    %213 = vmatpush1.bf16.msra.mxu0 0
    %214 = vmatprep.subr.bf16.mxu0 0
    %215 = vmatpush1.bf16.msra.mxu0 0
    %216 = vmatprep.subr.bf16.mxu0 0
    %217 = vmatpush1.bf16.msra.mxu0 0
    %218 = vmatprep.subr.bf16.mxu0 0
    %219 = vmatpush1.bf16.msra.mxu0 0
    %220 = vmatprep.subr.bf16.mxu0 0
    %221 = vmatpush1.bf16.msra.mxu0 0
    %222 = vmatprep.mubr.bf16.mxu0 0
    %223 = vmatmul.mubr.bf16.gmra.mrb[0].mxu0 %v176
    %v224 = vpop.f32.mrb[0].mxu0
    %v225 = vadd.f32 %v92, %v224
    %v226 = vpop.f32.mrb[0].mxu0
    %v227 = vadd.f32 %v96, %v226
    %v228 = vpop.f32.mrb[0].mxu0
    %v229 = vadd.f32 %v92, %v228
    %v230 = vpop.f32.mrb[0].mxu0
    %v231 = vadd.f32 %v96, %v230
    %232 = vmatprep.mubr.bf16.mxu0 0
    %233 = vmatmul.mubr.bf16.gmra.mrb[0].mxu0 %v179
    %v234 = vpop.f32.mrb[0].mxu0
    %v235 = vadd.f32 %v92, %v234
    %v236 = vpop.f32.mrb[0].mxu0
    %v237 = vadd.f32 %v96, %v236
    %v238 = vpop.f32.mrb[0].mxu0
    %v239 = vadd.f32 %v92, %v238
    %v240 = vpop.f32.mrb[0].mxu0
    %v241 = vadd.f32 %v96, %v240
    %242 = vmatprep.mubr.bf16.mxu0 0
    %243 = vmatmul.mubr.bf16.gmra.mrb[0].mxu0 %v182
    %v244 = vpop.f32.mrb[0].mxu0
    %v245 = vadd.f32 %v92, %v244
    %v246 = vpop.f32.mrb[0].mxu0
    %v247 = vadd.f32 %v96, %v246
    %v248 = vpop.f32.mrb[0].mxu0
    %v249 = vadd.f32 %v92, %v248
    %v250 = vpop.f32.mrb[0].mxu0
    %v251 = vadd.f32 %v96, %v250
    %252 = vmatprep.mubr.bf16.mxu0 0
    %253 = vmatmul.mubr.bf16.gmra.mrb[0].mxu0 %v185
    %v254 = vpop.f32.mrb[0].mxu0
    %v255 = vadd.f32 %v92, %v254
    %v256 = vpop.f32.mrb[0].mxu0
    %v257 = vadd.f32 %v96, %v256
    %v258 = vpop.f32.mrb[0].mxu0
    %v259 = vadd.f32 %v92, %v258
    %v260 = vpop.f32.mrb[0].mxu0
    %v261 = vadd.f32 %v96, %v260
    %262 = vmatprep.mubr.bf16.mxu0 0
    %263 = vmatmul.mubr.bf16.gmra.mrb[0].mxu0 %v188
    %v264 = vpop.f32.mrb[0].mxu0
    %v265 = vadd.f32 %v92, %v264
    %v266 = vpop.f32.mrb[0].mxu0
    %v267 = vadd.f32 %v96, %v266
    %v268 = vpop.f32.mrb[0].mxu0
    %v269 = vadd.f32 %v92, %v268
    %v270 = vpop.f32.mrb[0].mxu0
    %v271 = vadd.f32 %v96, %v270
    %272 = vdwg.mxu0
    %273 = vmatprep.subr.bf16.mxu0 %v161
    %274 = vmatpush1.bf16.msra.mxu0 %v160
    %275 = vmatprep.subr.bf16.mxu0 %v165
    %276 = vmatpush1.bf16.msra.mxu0 %v164
    %277 = vmatprep.subr.bf16.mxu0 0
    %278 = vmatpush1.bf16.msra.mxu0 0
    %279 = vmatprep.subr.bf16.mxu0 0
    %280 = vmatpush1.bf16.msra.mxu0 0
    %281 = vmatprep.subr.bf16.mxu0 0
    %282 = vmatpush1.bf16.msra.mxu0 0
    %283 = vmatprep.subr.bf16.mxu0 0
    %284 = vmatpush1.bf16.msra.mxu0 0
    %285 = vmatprep.subr.bf16.mxu0 0
    %286 = vmatpush1.bf16.msra.mxu0 0
    %287 = vmatprep.subr.bf16.mxu0 0
    %288 = vmatpush1.bf16.msra.mxu0 0
    %289 = vmatprep.subr.bf16.mxu0 0
    %290 = vmatpush1.bf16.msra.mxu0 0
    %291 = vmatprep.subr.bf16.mxu0 0
    %292 = vmatpush1.bf16.msra.mxu0 0
    %293 = vmatprep.subr.bf16.mxu0 0
    %294 = vmatpush1.bf16.msra.mxu0 0
    %295 = vmatprep.subr.bf16.mxu0 0
    %296 = vmatpush1.bf16.msra.mxu0 0
    %297 = vmatprep.subr.bf16.mxu0 0
    %298 = vmatpush1.bf16.msra.mxu0 0
    %299 = vmatprep.subr.bf16.mxu0 0
    %300 = vmatpush1.bf16.msra.mxu0 0
    %301 = vmatprep.subr.bf16.mxu0 0
    %302 = vmatpush1.bf16.msra.mxu0 0
    %303 = vmatprep.subr.bf16.mxu0 0
    %304 = vmatpush1.bf16.msra.mxu0 0
    %305 = vmatprep.mubr.bf16.mxu0 0
    %306 = vmatmul.mubr.bf16.gmra.mrb[0].mxu0 %v176
    %v307 = vpop.f32.mrb[0].mxu0
    %v308 = vadd.f32 %v100, %v307
    %v309 = vpop.f32.mrb[0].mxu0
    %v310 = vadd.f32 %v104, %v309
    %v311 = vpop.f32.mrb[0].mxu0
    %v312 = vadd.f32 %v100, %v311
    %v313 = vpop.f32.mrb[0].mxu0
    %v314 = vadd.f32 %v104, %v313
    %315 = vmatprep.mubr.bf16.mxu0 0
    %316 = vmatmul.mubr.bf16.gmra.mrb[0].mxu0 %v179
    %v317 = vpop.f32.mrb[0].mxu0
    %v318 = vadd.f32 %v100, %v317
    %v319 = vpop.f32.mrb[0].mxu0
    %v320 = vadd.f32 %v104, %v319
    %v321 = vpop.f32.mrb[0].mxu0
    %v322 = vadd.f32 %v100, %v321
    %v323 = vpop.f32.mrb[0].mxu0
    %v324 = vadd.f32 %v104, %v323
    %325 = vmatprep.mubr.bf16.mxu0 0
    %326 = vmatmul.mubr.bf16.gmra.mrb[0].mxu0 %v182
    %v327 = vpop.f32.mrb[0].mxu0
    %v328 = vadd.f32 %v100, %v327
    %v329 = vpop.f32.mrb[0].mxu0
    %v330 = vadd.f32 %v104, %v329
    %v331 = vpop.f32.mrb[0].mxu0
    %v332 = vadd.f32 %v100, %v331
    %v333 = vpop.f32.mrb[0].mxu0
    %v334 = vadd.f32 %v104, %v333
    %335 = vmatprep.mubr.bf16.mxu0 0
    %336 = vmatmul.mubr.bf16.gmra.mrb[0].mxu0 %v185
    %v337 = vpop.f32.mrb[0].mxu0
    %v338 = vadd.f32 %v100, %v337
    %v339 = vpop.f32.mrb[0].mxu0
    %v340 = vadd.f32 %v104, %v339
    %v341 = vpop.f32.mrb[0].mxu0
    %v342 = vadd.f32 %v100, %v341
    %v343 = vpop.f32.mrb[0].mxu0
    %v344 = vadd.f32 %v104, %v343
    %345 = vmatprep.mubr.bf16.mxu0 0
    %346 = vmatmul.mubr.bf16.gmra.mrb[0].mxu0 %v188
    %v347 = vpop.f32.mrb[0].mxu0
    %v348 = vadd.f32 %v100, %v347
    %v349 = vpop.f32.mrb[0].mxu0
    %v350 = vadd.f32 %v104, %v349
    %v351 = vpop.f32.mrb[0].mxu0
    %v352 = vadd.f32 %v100, %v351
    %v353 = vpop.f32.mrb[0].mxu0
    %v354 = vadd.f32 %v104, %v353
    %355 = vdwg.mxu0
    %v356 = vmax.f32 %v225, 0.0
    %v357 = vmax.f32 %v227, 0.0
    %v358 = vmax.f32 %v308, 0.0
    %v359 = vmax.f32 %v310, 0.0
    %v360 = vmax.f32 %v229, 0.0
    %v361 = vmax.f32 %v231, 0.0
    %v362 = vmax.f32 %v312, 0.0
    %v363 = vmax.f32 %v314, 0.0
    %v364 = vmax.f32 %v235, 0.0
    %v365 = vmax.f32 %v237, 0.0
    %v366 = vmax.f32 %v318, 0.0
    %v367 = vmax.f32 %v320, 0.0
    %v368 = vmax.f32 %v239, 0.0
    %v369 = vmax.f32 %v241, 0.0
    %v370 = vmax.f32 %v322, 0.0
    %v371 = vmax.f32 %v324, 0.0
    %v372 = vmax.f32 %v245, 0.0
    %v373 = vmax.f32 %v247, 0.0
    %v374 = vmax.f32 %v328, 0.0
    %v375 = vmax.f32 %v330, 0.0
    %v376 = vmax.f32 %v249, 0.0
    %v377 = vmax.f32 %v251, 0.0
    %v378 = vmax.f32 %v332, 0.0
    %v379 = vmax.f32 %v334, 0.0
    %v380 = vmax.f32 %v255, 0.0
    %v381 = vmax.f32 %v257, 0.0
    %v382 = vmax.f32 %v338, 0.0
    %v383 = vmax.f32 %v340, 0.0
    %v384 = vmax.f32 %v259, 0.0
    %v385 = vmax.f32 %v261, 0.0
    %v386 = vmax.f32 %v342, 0.0
    %v387 = vmax.f32 %v344, 0.0
    %v388 = vmax.f32 %v265, 0.0
    %v389 = vmax.f32 %v267, 0.0
    %v390 = vmax.f32 %v348, 0.0
    %v391 = vmax.f32 %v350, 0.0
    %v392 = vmax.f32 %v269, 0.0
    %v393 = vmax.f32 %v271, 0.0
    %v394 = vmax.f32 %v352, 0.0
    %v395 = vmax.f32 %v354, 0.0
    %v396 = vpack.c.bf16 %v360, %v356
    %v397 = vpack.c.bf16 %v361, %v357
    %v398 = vpack.c.bf16 %v362, %v358
    %v399 = vpack.c.bf16 %v363, %v359
    %v400 = vpack.c.bf16 %v368, %v364
    %v401 = vpack.c.bf16 %v369, %v365
    %v402 = vpack.c.bf16 %v370, %v366
    %v403 = vpack.c.bf16 %v371, %v367
    %v404 = vpack.c.bf16 %v376, %v372
    %v405 = vpack.c.bf16 %v377, %v373
    %v406 = vpack.c.bf16 %v378, %v374
    %v407 = vpack.c.bf16 %v379, %v375
    %v408 = vpack.c.bf16 %v384, %v380
    %v409 = vpack.c.bf16 %v385, %v381
    %v410 = vpack.c.bf16 %v386, %v382
    %v411 = vpack.c.bf16 %v387, %v383
    %v412 = vpack.c.bf16 %v392, %v388
    %v413 = vpack.c.bf16 %v393, %v389
    %v414 = vpack.c.bf16 %v394, %v390
    %v415 = vpack.c.bf16 %v395, %v391
    %v416 = vld [vmem:[#allocation5] sm:$0xff]
    %v417 = vld [vmem:[#allocation5 + $0x8] sm:$0xff]
    %v418 = vld [vmem:[#allocation5 + $0x10] sm:$0xff]
    %v419 = vld [vmem:[#allocation5 + $0x18] sm:$0xff]
    %v420 = vld [vmem:[#allocation5 + $0x20] sm:$0xff]
    %v421 = vld [vmem:[#allocation5 + $0x28] sm:$0xff]
    %v422 = vld [vmem:[#allocation5 + $0x30] sm:$0xff]
    %v423 = vld [vmem:[#allocation5 + $0x38] sm:$0xff]
    %v424 = vld [vmem:[#allocation5 + $0x40] sm:$0xff]
    %v425 = vld [vmem:[#allocation5 + $0x48] sm:$0xff]
    %v426 = vld [vmem:[#allocation5 + $0x50] sm:$0xff]
    %v427 = vld [vmem:[#allocation5 + $0x58] sm:$0xff]
    %v428 = vld [vmem:[#allocation5 + $0x60] sm:$0xff]
    %v429 = vld [vmem:[#allocation5 + $0x68] sm:$0xff]
    %v430 = vld [vmem:[#allocation5 + $0x70] sm:$0xff]
    %v431 = vld [vmem:[#allocation5 + $0x78] sm:$0xff]
    %v432 = vld [vmem:[#allocation5 + $0x80] sm:$0xff]
    %v433 = vld [vmem:[#allocation5 + $0x88] sm:$0xff]
    %v434 = vld [vmem:[#allocation5 + $0x90] sm:$0xff]
    %v435 = vld [vmem:[#allocation5 + $0x98] sm:$0xff]
    %v436 = vld [vmem:[#allocation5 + $0xa0] sm:$0xff]
    %v437 = vld [vmem:[#allocation5 + $0xa8] sm:$0xff]
    %v438 = vld [vmem:[#allocation5 + $0xb0] sm:$0xff]
    %v439 = vld [vmem:[#allocation5 + $0xb8] sm:$0xff]
    %v440 = vld [vmem:[#allocation5 + $0xc0] sm:$0xff]
    %v441 = vld [vmem:[#allocation5 + $0xc8] sm:$0xff]
    %v442 = vld [vmem:[#allocation5 + $0xd0] sm:$0xff]
    %v443 = vld [vmem:[#allocation5 + $0xd8] sm:$0xff]
    %v444 = vld [vmem:[#allocation5 + $0xe0] sm:$0xff]
    %v445 = vld [vmem:[#allocation5 + $0xe8] sm:$0xff]
    %v446 = vld [vmem:[#allocation5 + $0xf0] sm:$0xff]
    %v447 = vld [vmem:[#allocation5 + $0xf8] sm:$0xff]
    %v448 = vld [vmem:[#allocation5 + $0x100] sm:$0xff]
    %v449 = vld [vmem:[#allocation5 + $0x108] sm:$0xff]
    %v450 = vld [vmem:[#allocation5 + $0x110] sm:$0xff]
    %v451 = vld [vmem:[#allocation5 + $0x118] sm:$0xff]
    %v452 = vld [vmem:[#allocation5 + $0x120] sm:$0xff]
    %v453 = vld [vmem:[#allocation5 + $0x128] sm:$0xff]
    %v454 = vld [vmem:[#allocation5 + $0x130] sm:$0xff]
    %v455 = vld [vmem:[#allocation5 + $0x138] sm:$0xff]
    %v456 = vld [vmem:[#allocation5 + $0x140] sm:$0xff]
    %v457 = vld [vmem:[#allocation5 + $0x148] sm:$0xff]
    %v458 = vld [vmem:[#allocation5 + $0x150] sm:$0xff]
    %v459 = vld [vmem:[#allocation5 + $0x158] sm:$0xff]
    %v460 = vld [vmem:[#allocation5 + $0x160] sm:$0xff]
    %v461 = vld [vmem:[#allocation5 + $0x168] sm:$0xff]
    %v462 = vld [vmem:[#allocation5 + $0x170] sm:$0xff]
    %v463 = vld [vmem:[#allocation5 + $0x178] sm:$0xff]
    %v464 = vld [vmem:[#allocation5 + $0x180] sm:$0xff]
    %v465 = vld [vmem:[#allocation5 + $0x188] sm:$0xff]
    %v466 = vld [vmem:[#allocation5 + $0x190] sm:$0xff]
    %v467 = vld [vmem:[#allocation5 + $0x198] sm:$0xff]
    %v468 = vld [vmem:[#allocation5 + $0x1a0] sm:$0xff]
    %v469 = vld [vmem:[#allocation5 + $0x1a8] sm:$0xff]
    %v470 = vld [vmem:[#allocation5 + $0x1b0] sm:$0xff]
    %v471 = vld [vmem:[#allocation5 + $0x1b8] sm:$0xff]
    %v472 = vld [vmem:[#allocation5 + $0x1c0] sm:$0xff]
    %v473 = vld [vmem:[#allocation5 + $0x1c8] sm:$0xff]
    %v474 = vld [vmem:[#allocation5 + $0x1d0] sm:$0xff]
    %v475 = vld [vmem:[#allocation5 + $0x1d8] sm:$0xff]
    %v476 = vld [vmem:[#allocation5 + $0x1e0] sm:$0xff]
    %v477 = vld [vmem:[#allocation5 + $0x1e8] sm:$0xff]
    %v478 = vld [vmem:[#allocation5 + $0x1f0] sm:$0xff]
    %v479 = vld [vmem:[#allocation5 + $0x1f8] sm:$0xff]
    %v480 = vld [vmem:[#allocation5 + $0x200] sm:$0xff]
    %v481 = vld [vmem:[#allocation5 + $0x208] sm:$0xff]
    %v482 = vld [vmem:[#allocation5 + $0x210] sm:$0xff]
    %v483 = vld [vmem:[#allocation5 + $0x218] sm:$0xff]
    %v484 = vld [vmem:[#allocation5 + $0x220] sm:$0xff]
    %v485 = vld [vmem:[#allocation5 + $0x228] sm:$0xff]
    %v486 = vld [vmem:[#allocation5 + $0x230] sm:$0xff]
    %v487 = vld [vmem:[#allocation5 + $0x238] sm:$0xff]
    %v488 = vld [vmem:[#allocation5 + $0x240] sm:$0xff]
    %v489 = vld [vmem:[#allocation5 + $0x248] sm:$0xff]
    %v490 = vld [vmem:[#allocation5 + $0x250] sm:$0xff]
    %v491 = vld [vmem:[#allocation5 + $0x258] sm:$0xff]
    %v492 = vld [vmem:[#allocation5 + $0x260] sm:$0xff]
    %v493 = vld [vmem:[#allocation5 + $0x268] sm:$0xff]
    %v494 = vld [vmem:[#allocation5 + $0x270] sm:$0xff]
    %v495 = vld [vmem:[#allocation5 + $0x278] sm:$0xff]
    %v496 = vld [vmem:[#allocation5 + $0x280] sm:$0xff]
    %v497 = vld [vmem:[#allocation5 + $0x288] sm:$0xff]
    %v498 = vld [vmem:[#allocation5 + $0x290] sm:$0xff]
    %v499 = vld [vmem:[#allocation5 + $0x298] sm:$0xff]
    %v500 = vld [vmem:[#allocation5 + $0x2a0] sm:$0xff]
    %v501 = vld [vmem:[#allocation5 + $0x2a8] sm:$0xff]
    %v502 = vld [vmem:[#allocation5 + $0x2b0] sm:$0xff]
    %v503 = vld [vmem:[#allocation5 + $0x2b8] sm:$0xff]
    %v504 = vld [vmem:[#allocation5 + $0x2c0] sm:$0xff]
    %v505 = vld [vmem:[#allocation5 + $0x2c8] sm:$0xff]
    %v506 = vld [vmem:[#allocation5 + $0x2d0] sm:$0xff]
    %v507 = vld [vmem:[#allocation5 + $0x2d8] sm:$0xff]
    %v508 = vld [vmem:[#allocation5 + $0x2e0] sm:$0xff]
    %v509 = vld [vmem:[#allocation5 + $0x2e8] sm:$0xff]
    %v510 = vld [vmem:[#allocation5 + $0x2f0] sm:$0xff]
    %v511 = vld [vmem:[#allocation5 + $0x2f8] sm:$0xff]
    %v512 = vld [vmem:[#allocation5 + $0x300] sm:$0xff]
    %v513 = vld [vmem:[#allocation5 + $0x308] sm:$0xff]
    %v514 = vld [vmem:[#allocation5 + $0x310] sm:$0xff]
    %v515 = vld [vmem:[#allocation5 + $0x318] sm:$0xff]
    %v516 = vld [vmem:[#allocation5 + $0x320] sm:$0xff]
    %v517 = vld [vmem:[#allocation5 + $0x328] sm:$0xff]
    %v518 = vld [vmem:[#allocation5 + $0x330] sm:$0xff]
    %v519 = vld [vmem:[#allocation5 + $0x338] sm:$0xff]
    %v520 = vld [vmem:[#allocation5 + $0x340] sm:$0xff]
    %v521 = vld [vmem:[#allocation5 + $0x348] sm:$0xff]
    %v522 = vld [vmem:[#allocation5 + $0x350] sm:$0xff]
    %v523 = vld [vmem:[#allocation5 + $0x358] sm:$0xff]
    %v524 = vld [vmem:[#allocation5 + $0x360] sm:$0xff]
    %v525 = vld [vmem:[#allocation5 + $0x368] sm:$0xff]
    %v526 = vld [vmem:[#allocation5 + $0x370] sm:$0xff]
    %v527 = vld [vmem:[#allocation5 + $0x378] sm:$0xff]
    %v528 = vld [vmem:[#allocation5 + $0x380] sm:$0xff]
    %v529 = vld [vmem:[#allocation5 + $0x388] sm:$0xff]
    %v530 = vld [vmem:[#allocation5 + $0x390] sm:$0xff]
    %v531 = vld [vmem:[#allocation5 + $0x398] sm:$0xff]
    %v532 = vld [vmem:[#allocation5 + $0x3a0] sm:$0xff]
    %v533 = vld [vmem:[#allocation5 + $0x3a8] sm:$0xff]
    %v534 = vld [vmem:[#allocation5 + $0x3b0] sm:$0xff]
    %v535 = vld [vmem:[#allocation5 + $0x3b8] sm:$0xff]
    %v536 = vld [vmem:[#allocation5 + $0x3c0] sm:$0xff]
    %v537 = vld [vmem:[#allocation5 + $0x3c8] sm:$0xff]
    %v538 = vld [vmem:[#allocation5 + $0x3d0] sm:$0xff]
    %v539 = vld [vmem:[#allocation5 + $0x3d8] sm:$0xff]
    %v540 = vld [vmem:[#allocation5 + $0x3e0] sm:$0xff]
    %v541 = vld [vmem:[#allocation5 + $0x3e8] sm:$0xff]
    %v542 = vld [vmem:[#allocation5 + $0x3f0] sm:$0xff]
    %v543 = vld [vmem:[#allocation5 + $0x3f8] sm:$0xff]
    %v544 = vld [vmem:[%s4] sm:$0xf]
    %v546 = vlaneseq
    %v547 = vshrl.u32 %v546, 7
    %v548 = vsub.s32 0, %v547
    %v549 = vrot.slane %v544, %v548
    %v550 = vlaneseq
    %v551 = vshrl.u32 %v550, 7
    %v552 = vsub.s32 1, %v551
    %v553 = vrot.slane %v544, %v552
    %v554 = vlaneseq
    %v555 = vshrl.u32 %v554, 7
    %v556 = vsub.s32 2, %v555
    %v557 = vrot.slane %v544, %v556
    %v558 = vlaneseq
    %v559 = vshrl.u32 %v558, 7
    %v560 = vsub.s32 3, %v559
    %v561 = vrot.slane %v544, %v560
    %v694 = vunpack.c.l.b16 %v416
    %v695 = vunpack.c.h.b16 %v416
    %v696 = vunpack.c.l.b16 %v417
    %v697 = vunpack.c.h.b16 %v417
    %v698 = vunpack.c.l.b16 %v418
    %v699 = vunpack.c.h.b16 %v418
    %v700 = vunpack.c.l.b16 %v419
    %v701 = vunpack.c.h.b16 %v419
    %v702 = vunpack.c.l.b16 %v420
    %v703 = vunpack.c.h.b16 %v420
    %v704 = vunpack.c.l.b16 %v421
    %v705 = vunpack.c.h.b16 %v421
    %v706 = vunpack.c.l.b16 %v422
    %v707 = vunpack.c.h.b16 %v422
    %v708 = vunpack.c.l.b16 %v423
    %v709 = vunpack.c.h.b16 %v423
    %v710 = vunpack.c.l.b16 %v424
    %v711 = vunpack.c.h.b16 %v424
    %v712 = vunpack.c.l.b16 %v425
    %v713 = vunpack.c.h.b16 %v425
    %v714 = vunpack.c.l.b16 %v426
    %v715 = vunpack.c.h.b16 %v426
    %v716 = vunpack.c.l.b16 %v427
    %v717 = vunpack.c.h.b16 %v427
    %v718 = vunpack.c.l.b16 %v428
    %v719 = vunpack.c.h.b16 %v428
    %v720 = vunpack.c.l.b16 %v429
    %v721 = vunpack.c.h.b16 %v429
    %v722 = vunpack.c.l.b16 %v430
    %v723 = vunpack.c.h.b16 %v430
    %v724 = vunpack.c.l.b16 %v431
    %v725 = vunpack.c.h.b16 %v431
    %v726 = vunpack.c.l.b16 %v432
    %v727 = vunpack.c.h.b16 %v432
    %v728 = vunpack.c.l.b16 %v433
    %v729 = vunpack.c.h.b16 %v433
    %v730 = vunpack.c.l.b16 %v434
    %v731 = vunpack.c.h.b16 %v434
    %v732 = vunpack.c.l.b16 %v435
    %v733 = vunpack.c.h.b16 %v435
    %v734 = vunpack.c.l.b16 %v436
    %v735 = vunpack.c.h.b16 %v436
    %v736 = vunpack.c.l.b16 %v437
    %v737 = vunpack.c.h.b16 %v437
    %v738 = vunpack.c.l.b16 %v438
    %v739 = vunpack.c.h.b16 %v438
    %v740 = vunpack.c.l.b16 %v439
    %v741 = vunpack.c.h.b16 %v439
    %v742 = vunpack.c.l.b16 %v440
    %v743 = vunpack.c.h.b16 %v440
    %v744 = vunpack.c.l.b16 %v441
    %v745 = vunpack.c.h.b16 %v441
    %v746 = vunpack.c.l.b16 %v442
    %v747 = vunpack.c.h.b16 %v442
    %v748 = vunpack.c.l.b16 %v443
    %v749 = vunpack.c.h.b16 %v443
    %v750 = vunpack.c.l.b16 %v444
    %v751 = vunpack.c.h.b16 %v444
    %v752 = vunpack.c.l.b16 %v445
    %v753 = vunpack.c.h.b16 %v445
    %v754 = vunpack.c.l.b16 %v446
    %v755 = vunpack.c.h.b16 %v446
    %v756 = vunpack.c.l.b16 %v447
    %v757 = vunpack.c.h.b16 %v447
    %v758 = vunpack.c.l.b16 %v448
    %v759 = vunpack.c.h.b16 %v448
    %v760 = vunpack.c.l.b16 %v449
    %v761 = vunpack.c.h.b16 %v449
    %v762 = vunpack.c.l.b16 %v450
    %v763 = vunpack.c.h.b16 %v450
    %v764 = vunpack.c.l.b16 %v451
    %v765 = vunpack.c.h.b16 %v451
    %v766 = vunpack.c.l.b16 %v452
    %v767 = vunpack.c.h.b16 %v452
    %v768 = vunpack.c.l.b16 %v453
    %v769 = vunpack.c.h.b16 %v453
    %v770 = vunpack.c.l.b16 %v454
    %v771 = vunpack.c.h.b16 %v454
    %v772 = vunpack.c.l.b16 %v455
    %v773 = vunpack.c.h.b16 %v455
    %v774 = vunpack.c.l.b16 %v456
    %v775 = vunpack.c.h.b16 %v456
    %v776 = vunpack.c.l.b16 %v457
    %v777 = vunpack.c.h.b16 %v457
    %v778 = vunpack.c.l.b16 %v458
    %v779 = vunpack.c.h.b16 %v458
    %v780 = vunpack.c.l.b16 %v459
    %v781 = vunpack.c.h.b16 %v459
    %v782 = vunpack.c.l.b16 %v460
    %v783 = vunpack.c.h.b16 %v460
    %v784 = vunpack.c.l.b16 %v461
    %v785 = vunpack.c.h.b16 %v461
    %v786 = vunpack.c.l.b16 %v462
    %v787 = vunpack.c.h.b16 %v462
    %v788 = vunpack.c.l.b16 %v463
    %v789 = vunpack.c.h.b16 %v463
    %v790 = vunpack.c.l.b16 %v464
    %v791 = vunpack.c.h.b16 %v464
    %v792 = vunpack.c.l.b16 %v465
    %v793 = vunpack.c.h.b16 %v465
    %v794 = vunpack.c.l.b16 %v466
    %v795 = vunpack.c.h.b16 %v466
    %v796 = vunpack.c.l.b16 %v467
    %v797 = vunpack.c.h.b16 %v467
    %v798 = vunpack.c.l.b16 %v468
    %v799 = vunpack.c.h.b16 %v468
    %v800 = vunpack.c.l.b16 %v469
    %v801 = vunpack.c.h.b16 %v469
    %v802 = vunpack.c.l.b16 %v470
    %v803 = vunpack.c.h.b16 %v470
    %v804 = vunpack.c.l.b16 %v471
    %v805 = vunpack.c.h.b16 %v471
    %v806 = vunpack.c.l.b16 %v472
    %v807 = vunpack.c.h.b16 %v472
    %v808 = vunpack.c.l.b16 %v473
    %v809 = vunpack.c.h.b16 %v473
    %v810 = vunpack.c.l.b16 %v474
    %v811 = vunpack.c.h.b16 %v474
    %v812 = vunpack.c.l.b16 %v475
    %v813 = vunpack.c.h.b16 %v475
    %v814 = vunpack.c.l.b16 %v476
    %v815 = vunpack.c.h.b16 %v476
    %v816 = vunpack.c.l.b16 %v477
    %v817 = vunpack.c.h.b16 %v477
    %v818 = vunpack.c.l.b16 %v478
    %v819 = vunpack.c.h.b16 %v478
    %v820 = vunpack.c.l.b16 %v479
    %v821 = vunpack.c.h.b16 %v479
    %v822 = vunpack.c.l.b16 %v480
    %v823 = vunpack.c.h.b16 %v480
    %v824 = vunpack.c.l.b16 %v481
    %v825 = vunpack.c.h.b16 %v481
    %v826 = vunpack.c.l.b16 %v482
    %v827 = vunpack.c.h.b16 %v482
    %v828 = vunpack.c.l.b16 %v483
    %v829 = vunpack.c.h.b16 %v483
    %v830 = vunpack.c.l.b16 %v484
    %v831 = vunpack.c.h.b16 %v484
    %v832 = vunpack.c.l.b16 %v485
    %v833 = vunpack.c.h.b16 %v485
    %v834 = vunpack.c.l.b16 %v486
    %v835 = vunpack.c.h.b16 %v486
    %v836 = vunpack.c.l.b16 %v487
    %v837 = vunpack.c.h.b16 %v487
    %v838 = vunpack.c.l.b16 %v488
    %v839 = vunpack.c.h.b16 %v488
    %v840 = vunpack.c.l.b16 %v489
    %v841 = vunpack.c.h.b16 %v489
    %v842 = vunpack.c.l.b16 %v490
    %v843 = vunpack.c.h.b16 %v490
    %v844 = vunpack.c.l.b16 %v491
    %v845 = vunpack.c.h.b16 %v491
    %v846 = vunpack.c.l.b16 %v492
    %v847 = vunpack.c.h.b16 %v492
    %v848 = vunpack.c.l.b16 %v493
    %v849 = vunpack.c.h.b16 %v493
    %v850 = vunpack.c.l.b16 %v494
    %v851 = vunpack.c.h.b16 %v494
    %v852 = vunpack.c.l.b16 %v495
    %v853 = vunpack.c.h.b16 %v495
    %v854 = vunpack.c.l.b16 %v496
    %v855 = vunpack.c.h.b16 %v496
    %v856 = vunpack.c.l.b16 %v497
    %v857 = vunpack.c.h.b16 %v497
    %v858 = vunpack.c.l.b16 %v498
    %v859 = vunpack.c.h.b16 %v498
    %v860 = vunpack.c.l.b16 %v499
    %v861 = vunpack.c.h.b16 %v499
    %v862 = vunpack.c.l.b16 %v500
    %v863 = vunpack.c.h.b16 %v500
    %v864 = vunpack.c.l.b16 %v501
    %v865 = vunpack.c.h.b16 %v501
    %v866 = vunpack.c.l.b16 %v502
    %v867 = vunpack.c.h.b16 %v502
    %v868 = vunpack.c.l.b16 %v503
    %v869 = vunpack.c.h.b16 %v503
    %v870 = vunpack.c.l.b16 %v504
    %v871 = vunpack.c.h.b16 %v504
    %v872 = vunpack.c.l.b16 %v505
    %v873 = vunpack.c.h.b16 %v505
    %v874 = vunpack.c.l.b16 %v506
    %v875 = vunpack.c.h.b16 %v506
    %v876 = vunpack.c.l.b16 %v507
    %v877 = vunpack.c.h.b16 %v507
    %v878 = vunpack.c.l.b16 %v508
    %v879 = vunpack.c.h.b16 %v508
    %v880 = vunpack.c.l.b16 %v509
    %v881 = vunpack.c.h.b16 %v509
    %v882 = vunpack.c.l.b16 %v510
    %v883 = vunpack.c.h.b16 %v510
    %v884 = vunpack.c.l.b16 %v511
    %v885 = vunpack.c.h.b16 %v511
    %v886 = vunpack.c.l.b16 %v512
    %v887 = vunpack.c.h.b16 %v512
    %v888 = vunpack.c.l.b16 %v513
    %v889 = vunpack.c.h.b16 %v513
    %v890 = vunpack.c.l.b16 %v514
    %v891 = vunpack.c.h.b16 %v514
    %v892 = vunpack.c.l.b16 %v515
    %v893 = vunpack.c.h.b16 %v515
    %v894 = vunpack.c.l.b16 %v516
    %v895 = vunpack.c.h.b16 %v516
    %v896 = vunpack.c.l.b16 %v517
    %v897 = vunpack.c.h.b16 %v517
    %v898 = vunpack.c.l.b16 %v518
    %v899 = vunpack.c.h.b16 %v518
    %v900 = vunpack.c.l.b16 %v519
    %v901 = vunpack.c.h.b16 %v519
    %v902 = vunpack.c.l.b16 %v520
    %v903 = vunpack.c.h.b16 %v520
    %v904 = vunpack.c.l.b16 %v521
    %v905 = vunpack.c.h.b16 %v521
    %v906 = vunpack.c.l.b16 %v522
    %v907 = vunpack.c.h.b16 %v522
    %v908 = vunpack.c.l.b16 %v523
    %v909 = vunpack.c.h.b16 %v523
    %v910 = vunpack.c.l.b16 %v524
    %v911 = vunpack.c.h.b16 %v524
    %v912 = vunpack.c.l.b16 %v525
    %v913 = vunpack.c.h.b16 %v525
    %v914 = vunpack.c.l.b16 %v526
    %v915 = vunpack.c.h.b16 %v526
    %v916 = vunpack.c.l.b16 %v527
    %v917 = vunpack.c.h.b16 %v527
    %v918 = vunpack.c.l.b16 %v528
    %v919 = vunpack.c.h.b16 %v528
    %v920 = vunpack.c.l.b16 %v529
    %v921 = vunpack.c.h.b16 %v529
    %v922 = vunpack.c.l.b16 %v530
    %v923 = vunpack.c.h.b16 %v530
    %v924 = vunpack.c.l.b16 %v531
    %v925 = vunpack.c.h.b16 %v531
    %v926 = vunpack.c.l.b16 %v532
    %v927 = vunpack.c.h.b16 %v532
    %v928 = vunpack.c.l.b16 %v533
    %v929 = vunpack.c.h.b16 %v533
    %v930 = vunpack.c.l.b16 %v534
    %v931 = vunpack.c.h.b16 %v534
    %v932 = vunpack.c.l.b16 %v535
    %v933 = vunpack.c.h.b16 %v535
    %v934 = vunpack.c.l.b16 %v536
    %v935 = vunpack.c.h.b16 %v536
    %v936 = vunpack.c.l.b16 %v537
    %v937 = vunpack.c.h.b16 %v537
    %v938 = vunpack.c.l.b16 %v538
    %v939 = vunpack.c.h.b16 %v538
    %v940 = vunpack.c.l.b16 %v539
    %v941 = vunpack.c.h.b16 %v539
    %v942 = vunpack.c.l.b16 %v540
    %v943 = vunpack.c.h.b16 %v540
    %v944 = vunpack.c.l.b16 %v541
    %v945 = vunpack.c.h.b16 %v541
    %v946 = vunpack.c.l.b16 %v542
    %v947 = vunpack.c.h.b16 %v542
    %v948 = vunpack.c.l.b16 %v543
    %v949 = vunpack.c.h.b16 %v543
    %v950 = vpack.c.b16 %v698, %v694
    %v951 = vpack.c.b16 %v699, %v695
    %v952 = vpack.c.b16 %v700, %v696
    %v953 = vpack.c.b16 %v701, %v697
    %v954 = vpack.c.b16 %v706, %v702
    %v955 = vpack.c.b16 %v707, %v703
    %v956 = vpack.c.b16 %v708, %v704
    %v957 = vpack.c.b16 %v709, %v705
    %v958 = vpack.c.b16 %v714, %v710
    %v959 = vpack.c.b16 %v715, %v711
    %v960 = vpack.c.b16 %v716, %v712
    %v961 = vpack.c.b16 %v717, %v713
    %v962 = vpack.c.b16 %v722, %v718
    %v963 = vpack.c.b16 %v723, %v719
    %v964 = vpack.c.b16 %v724, %v720
    %v965 = vpack.c.b16 %v725, %v721
    %v966 = vpack.c.b16 %v730, %v726
    %v967 = vpack.c.b16 %v731, %v727
    %v968 = vpack.c.b16 %v732, %v728
    %v969 = vpack.c.b16 %v733, %v729
    %v970 = vpack.c.b16 %v738, %v734
    %v971 = vpack.c.b16 %v739, %v735
    %v972 = vpack.c.b16 %v740, %v736
    %v973 = vpack.c.b16 %v741, %v737
    %v974 = vpack.c.b16 %v746, %v742
    %v975 = vpack.c.b16 %v747, %v743
    %v976 = vpack.c.b16 %v748, %v744
    %v977 = vpack.c.b16 %v749, %v745
    %v978 = vpack.c.b16 %v754, %v750
    %v979 = vpack.c.b16 %v755, %v751
    %v980 = vpack.c.b16 %v756, %v752
    %v981 = vpack.c.b16 %v757, %v753
    %v982 = vpack.c.b16 %v762, %v758
    %v983 = vpack.c.b16 %v763, %v759
    %v984 = vpack.c.b16 %v764, %v760
    %v985 = vpack.c.b16 %v765, %v761
    %v986 = vpack.c.b16 %v770, %v766
    %v987 = vpack.c.b16 %v771, %v767
    %v988 = vpack.c.b16 %v772, %v768
    %v989 = vpack.c.b16 %v773, %v769
    %v990 = vpack.c.b16 %v778, %v774
    %v991 = vpack.c.b16 %v779, %v775
    %v992 = vpack.c.b16 %v780, %v776
    %v993 = vpack.c.b16 %v781, %v777
    %v994 = vpack.c.b16 %v786, %v782
    %v995 = vpack.c.b16 %v787, %v783
    %v996 = vpack.c.b16 %v788, %v784
    %v997 = vpack.c.b16 %v789, %v785
    %v998 = vpack.c.b16 %v794, %v790
    %v999 = vpack.c.b16 %v795, %v791
    %v1000 = vpack.c.b16 %v796, %v792
    %v1001 = vpack.c.b16 %v797, %v793
    %v1002 = vpack.c.b16 %v802, %v798
    %v1003 = vpack.c.b16 %v803, %v799
    %v1004 = vpack.c.b16 %v804, %v800
    %v1005 = vpack.c.b16 %v805, %v801
    %v1006 = vpack.c.b16 %v810, %v806
    %v1007 = vpack.c.b16 %v811, %v807
    %v1008 = vpack.c.b16 %v812, %v808
    %v1009 = vpack.c.b16 %v813, %v809
    %v1010 = vpack.c.b16 %v818, %v814
    %v1011 = vpack.c.b16 %v819, %v815
    %v1012 = vpack.c.b16 %v820, %v816
    %v1013 = vpack.c.b16 %v821, %v817
    %v1014 = vpack.c.b16 %v826, %v822
    %v1015 = vpack.c.b16 %v827, %v823
    %v1016 = vpack.c.b16 %v828, %v824
    %v1017 = vpack.c.b16 %v829, %v825
    %v1018 = vpack.c.b16 %v834, %v830
    %v1019 = vpack.c.b16 %v835, %v831
    %v1020 = vpack.c.b16 %v836, %v832
    %v1021 = vpack.c.b16 %v837, %v833
    %v1022 = vpack.c.b16 %v842, %v838
    %v1023 = vpack.c.b16 %v843, %v839
    %v1024 = vpack.c.b16 %v844, %v840
    %v1025 = vpack.c.b16 %v845, %v841
    %v1026 = vpack.c.b16 %v850, %v846
    %v1027 = vpack.c.b16 %v851, %v847
    %v1028 = vpack.c.b16 %v852, %v848
    %v1029 = vpack.c.b16 %v853, %v849
    %v1030 = vpack.c.b16 %v858, %v854
    %v1031 = vpack.c.b16 %v859, %v855
    %v1032 = vpack.c.b16 %v860, %v856
    %v1033 = vpack.c.b16 %v861, %v857
    %v1034 = vpack.c.b16 %v866, %v862
    %v1035 = vpack.c.b16 %v867, %v863
    %v1036 = vpack.c.b16 %v868, %v864
    %v1037 = vpack.c.b16 %v869, %v865
    %v1038 = vpack.c.b16 %v874, %v870
    %v1039 = vpack.c.b16 %v875, %v871
    %v1040 = vpack.c.b16 %v876, %v872
    %v1041 = vpack.c.b16 %v877, %v873
    %v1042 = vpack.c.b16 %v882, %v878
    %v1043 = vpack.c.b16 %v883, %v879
    %v1044 = vpack.c.b16 %v884, %v880
    %v1045 = vpack.c.b16 %v885, %v881
    %v1046 = vpack.c.b16 %v890, %v886
    %v1047 = vpack.c.b16 %v891, %v887
    %v1048 = vpack.c.b16 %v892, %v888
    %v1049 = vpack.c.b16 %v893, %v889
    %v1050 = vpack.c.b16 %v898, %v894
    %v1051 = vpack.c.b16 %v899, %v895
    %v1052 = vpack.c.b16 %v900, %v896
    %v1053 = vpack.c.b16 %v901, %v897
    %v1054 = vpack.c.b16 %v906, %v902
    %v1055 = vpack.c.b16 %v907, %v903
    %v1056 = vpack.c.b16 %v908, %v904
    %v1057 = vpack.c.b16 %v909, %v905
    %v1058 = vpack.c.b16 %v914, %v910
    %v1059 = vpack.c.b16 %v915, %v911
    %v1060 = vpack.c.b16 %v916, %v912
    %v1061 = vpack.c.b16 %v917, %v913
    %v1062 = vpack.c.b16 %v922, %v918
    %v1063 = vpack.c.b16 %v923, %v919
    %v1064 = vpack.c.b16 %v924, %v920
    %v1065 = vpack.c.b16 %v925, %v921
    %v1066 = vpack.c.b16 %v930, %v926
    %v1067 = vpack.c.b16 %v931, %v927
    %v1068 = vpack.c.b16 %v932, %v928
    %v1069 = vpack.c.b16 %v933, %v929
    %v1070 = vpack.c.b16 %v938, %v934
    %v1071 = vpack.c.b16 %v939, %v935
    %v1072 = vpack.c.b16 %v940, %v936
    %v1073 = vpack.c.b16 %v941, %v937
    %v1074 = vpack.c.b16 %v946, %v942
    %v1075 = vpack.c.b16 %v947, %v943
    %v1076 = vpack.c.b16 %v948, %v944
    %v1077 = vpack.c.b16 %v949, %v945
    %1206 = vmatprep.subr.bf16.mxu0 %v951
    %1207 = vmatpush1.bf16.msra.mxu0 %v950
    %1208 = vmatprep.subr.bf16.mxu0 %v955
    %1209 = vmatpush1.bf16.msra.mxu0 %v954
    %1210 = vmatprep.subr.bf16.mxu0 %v959
    %1211 = vmatpush1.bf16.msra.mxu0 %v958
    %1212 = vmatprep.subr.bf16.mxu0 %v963
    %1213 = vmatpush1.bf16.msra.mxu0 %v962
    %1214 = vmatprep.subr.bf16.mxu0 %v967
    %1215 = vmatpush1.bf16.msra.mxu0 %v966
    %1216 = vmatprep.subr.bf16.mxu0 %v971
    %1217 = vmatpush1.bf16.msra.mxu0 %v970
    %1218 = vmatprep.subr.bf16.mxu0 %v975
    %1219 = vmatpush1.bf16.msra.mxu0 %v974
    %1220 = vmatprep.subr.bf16.mxu0 %v979
    %1221 = vmatpush1.bf16.msra.mxu0 %v978
    %1222 = vmatprep.subr.bf16.mxu0 %v983
    %1223 = vmatpush1.bf16.msra.mxu0 %v982
    %1224 = vmatprep.subr.bf16.mxu0 %v987
    %1225 = vmatpush1.bf16.msra.mxu0 %v986
    %1226 = vmatprep.subr.bf16.mxu0 %v991
    %1227 = vmatpush1.bf16.msra.mxu0 %v990
    %1228 = vmatprep.subr.bf16.mxu0 %v995
    %1229 = vmatpush1.bf16.msra.mxu0 %v994
    %1230 = vmatprep.subr.bf16.mxu0 %v999
    %1231 = vmatpush1.bf16.msra.mxu0 %v998
    %1232 = vmatprep.subr.bf16.mxu0 %v1003
    %1233 = vmatpush1.bf16.msra.mxu0 %v1002
    %1234 = vmatprep.subr.bf16.mxu0 %v1007
    %1235 = vmatpush1.bf16.msra.mxu0 %v1006
    %1236 = vmatprep.subr.bf16.mxu0 %v1011
    %1237 = vmatpush1.bf16.msra.mxu0 %v1010
    %1238 = vmatprep.mubr.bf16.mxu0 %v397
    %1239 = vmatmul.mubr.bf16.gmra.mrb[0].mxu0 %v396
    %v1240 = vpop.f32.mrb[0].mxu0
    %v1241 = vadd.f32 %v549, %v1240
    %v1242 = vpop.f32.mrb[0].mxu0
    %v1243 = vadd.f32 %v553, %v1242
    %v1244 = vpop.f32.mrb[0].mxu0
    %v1245 = vadd.f32 %v549, %v1244
    %v1246 = vpop.f32.mrb[0].mxu0
    %v1247 = vadd.f32 %v553, %v1246
    %1248 = vmatprep.mubr.bf16.mxu0 %v401
    %1249 = vmatmul.mubr.bf16.gmra.mrb[0].mxu0 %v400
    %v1250 = vpop.f32.mrb[0].mxu0
    %v1251 = vadd.f32 %v549, %v1250
    %v1252 = vpop.f32.mrb[0].mxu0
    %v1253 = vadd.f32 %v553, %v1252
    %v1254 = vpop.f32.mrb[0].mxu0
    %v1255 = vadd.f32 %v549, %v1254
    %v1256 = vpop.f32.mrb[0].mxu0
    %v1257 = vadd.f32 %v553, %v1256
    %1258 = vmatprep.mubr.bf16.mxu0 %v405
    %1259 = vmatmul.mubr.bf16.gmra.mrb[0].mxu0 %v404
    %v1260 = vpop.f32.mrb[0].mxu0
    %v1261 = vadd.f32 %v549, %v1260
    %v1262 = vpop.f32.mrb[0].mxu0
    %v1263 = vadd.f32 %v553, %v1262
    %v1264 = vpop.f32.mrb[0].mxu0
    %v1265 = vadd.f32 %v549, %v1264
    %v1266 = vpop.f32.mrb[0].mxu0
    %v1267 = vadd.f32 %v553, %v1266
    %1268 = vmatprep.mubr.bf16.mxu0 %v409
    %1269 = vmatmul.mubr.bf16.gmra.mrb[0].mxu0 %v408
    %v1270 = vpop.f32.mrb[0].mxu0
    %v1271 = vadd.f32 %v549, %v1270
    %v1272 = vpop.f32.mrb[0].mxu0
    %v1273 = vadd.f32 %v553, %v1272
    %v1274 = vpop.f32.mrb[0].mxu0
    %v1275 = vadd.f32 %v549, %v1274
    %v1276 = vpop.f32.mrb[0].mxu0
    %v1277 = vadd.f32 %v553, %v1276
    %1278 = vmatprep.mubr.bf16.mxu0 %v413
    %1279 = vmatmul.mubr.bf16.gmra.mrb[0].mxu0 %v412
    %v1280 = vpop.f32.mrb[0].mxu0
    %v1281 = vadd.f32 %v549, %v1280
    %v1282 = vpop.f32.mrb[0].mxu0
    %v1283 = vadd.f32 %v553, %v1282
    %v1284 = vpop.f32.mrb[0].mxu0
    %v1285 = vadd.f32 %v549, %v1284
    %v1286 = vpop.f32.mrb[0].mxu0
    %v1287 = vadd.f32 %v553, %v1286
    %1288 = vdwg.mxu0
    %1289 = vmatprep.subr.bf16.mxu0 %v1015
    %1290 = vmatpush1.bf16.msra.mxu0 %v1014
    %1291 = vmatprep.subr.bf16.mxu0 %v1019
    %1292 = vmatpush1.bf16.msra.mxu0 %v1018
    %1293 = vmatprep.subr.bf16.mxu0 %v1023
    %1294 = vmatpush1.bf16.msra.mxu0 %v1022
    %1295 = vmatprep.subr.bf16.mxu0 %v1027
    %1296 = vmatpush1.bf16.msra.mxu0 %v1026
    %1297 = vmatprep.subr.bf16.mxu0 %v1031
    %1298 = vmatpush1.bf16.msra.mxu0 %v1030
    %1299 = vmatprep.subr.bf16.mxu0 %v1035
    %1300 = vmatpush1.bf16.msra.mxu0 %v1034
    %1301 = vmatprep.subr.bf16.mxu0 %v1039
    %1302 = vmatpush1.bf16.msra.mxu0 %v1038
    %1303 = vmatprep.subr.bf16.mxu0 %v1043
    %1304 = vmatpush1.bf16.msra.mxu0 %v1042
    %1305 = vmatprep.subr.bf16.mxu0 %v1047
    %1306 = vmatpush1.bf16.msra.mxu0 %v1046
    %1307 = vmatprep.subr.bf16.mxu0 %v1051
    %1308 = vmatpush1.bf16.msra.mxu0 %v1050
    %1309 = vmatprep.subr.bf16.mxu0 %v1055
    %1310 = vmatpush1.bf16.msra.mxu0 %v1054
    %1311 = vmatprep.subr.bf16.mxu0 %v1059
    %1312 = vmatpush1.bf16.msra.mxu0 %v1058
    %1313 = vmatprep.subr.bf16.mxu0 %v1063
    %1314 = vmatpush1.bf16.msra.mxu0 %v1062
    %1315 = vmatprep.subr.bf16.mxu0 %v1067
    %1316 = vmatpush1.bf16.msra.mxu0 %v1066
    %1317 = vmatprep.subr.bf16.mxu0 %v1071
    %1318 = vmatpush1.bf16.msra.mxu0 %v1070
    %1319 = vmatprep.subr.bf16.mxu0 %v1075
    %1320 = vmatpush1.bf16.msra.mxu0 %v1074
    %1321 = vmatprep.mubr.bf16.mxu0 %v399
    %1322 = vmatmul.mubr.bf16.gmra.mrb[0].mxu0 %v398
    %v1323 = vpop.f32.mrb[0].mxu0
    %v1324 = vadd.f32 %v1241, %v1323
    %v1325 = vpop.f32.mrb[0].mxu0
    %v1326 = vadd.f32 %v1243, %v1325
    %v1327 = vpop.f32.mrb[0].mxu0
    %v1328 = vadd.f32 %v1245, %v1327
    %v1329 = vpop.f32.mrb[0].mxu0
    %v1330 = vadd.f32 %v1247, %v1329
    %1331 = vmatprep.mubr.bf16.mxu0 %v403
    %1332 = vmatmul.mubr.bf16.gmra.mrb[0].mxu0 %v402
    %v1333 = vpop.f32.mrb[0].mxu0
    %v1334 = vadd.f32 %v1251, %v1333
    %v1335 = vpop.f32.mrb[0].mxu0
    %v1336 = vadd.f32 %v1253, %v1335
    %v1337 = vpop.f32.mrb[0].mxu0
    %v1338 = vadd.f32 %v1255, %v1337
    %v1339 = vpop.f32.mrb[0].mxu0
    %v1340 = vadd.f32 %v1257, %v1339
    %1341 = vmatprep.mubr.bf16.mxu0 %v407
    %1342 = vmatmul.mubr.bf16.gmra.mrb[0].mxu0 %v406
    %v1343 = vpop.f32.mrb[0].mxu0
    %v1344 = vadd.f32 %v1261, %v1343
    %v1345 = vpop.f32.mrb[0].mxu0
    %v1346 = vadd.f32 %v1263, %v1345
    %v1347 = vpop.f32.mrb[0].mxu0
    %v1348 = vadd.f32 %v1265, %v1347
    %v1349 = vpop.f32.mrb[0].mxu0
    %v1350 = vadd.f32 %v1267, %v1349
    %1351 = vmatprep.mubr.bf16.mxu0 %v411
    %1352 = vmatmul.mubr.bf16.gmra.mrb[0].mxu0 %v410
    %v1353 = vpop.f32.mrb[0].mxu0
    %v1354 = vadd.f32 %v1271, %v1353
    %v1355 = vpop.f32.mrb[0].mxu0
    %v1356 = vadd.f32 %v1273, %v1355
    %v1357 = vpop.f32.mrb[0].mxu0
    %v1358 = vadd.f32 %v1275, %v1357
    %v1359 = vpop.f32.mrb[0].mxu0
    %v1360 = vadd.f32 %v1277, %v1359
    %1361 = vmatprep.mubr.bf16.mxu0 %v415
    %1362 = vmatmul.mubr.bf16.gmra.mrb[0].mxu0 %v414
    %v1363 = vpop.f32.mrb[0].mxu0
    %v1364 = vadd.f32 %v1281, %v1363
    %v1365 = vpop.f32.mrb[0].mxu0
    %v1366 = vadd.f32 %v1283, %v1365
    %v1367 = vpop.f32.mrb[0].mxu0
    %v1368 = vadd.f32 %v1285, %v1367
    %v1369 = vpop.f32.mrb[0].mxu0
    %v1370 = vadd.f32 %v1287, %v1369
    %1371 = vdwg.mxu0
    %1372 = vmatprep.subr.bf16.mxu0 %v953
    %1373 = vmatpush1.bf16.msra.mxu0 %v952
    %1374 = vmatprep.subr.bf16.mxu0 %v957
    %1375 = vmatpush1.bf16.msra.mxu0 %v956
    %1376 = vmatprep.subr.bf16.mxu0 %v961
    %1377 = vmatpush1.bf16.msra.mxu0 %v960
    %1378 = vmatprep.subr.bf16.mxu0 %v965
    %1379 = vmatpush1.bf16.msra.mxu0 %v964
    %1380 = vmatprep.subr.bf16.mxu0 %v969
    %1381 = vmatpush1.bf16.msra.mxu0 %v968
    %1382 = vmatprep.subr.bf16.mxu0 %v973
    %1383 = vmatpush1.bf16.msra.mxu0 %v972
    %1384 = vmatprep.subr.bf16.mxu0 %v977
    %1385 = vmatpush1.bf16.msra.mxu0 %v976
    %1386 = vmatprep.subr.bf16.mxu0 %v981
    %1387 = vmatpush1.bf16.msra.mxu0 %v980
    %1388 = vmatprep.subr.bf16.mxu0 %v985
    %1389 = vmatpush1.bf16.msra.mxu0 %v984
    %1390 = vmatprep.subr.bf16.mxu0 %v989
    %1391 = vmatpush1.bf16.msra.mxu0 %v988
    %1392 = vmatprep.subr.bf16.mxu0 %v993
    %1393 = vmatpush1.bf16.msra.mxu0 %v992
    %1394 = vmatprep.subr.bf16.mxu0 %v997
    %1395 = vmatpush1.bf16.msra.mxu0 %v996
    %1396 = vmatprep.subr.bf16.mxu0 %v1001
    %1397 = vmatpush1.bf16.msra.mxu0 %v1000
    %1398 = vmatprep.subr.bf16.mxu0 %v1005
    %1399 = vmatpush1.bf16.msra.mxu0 %v1004
    %1400 = vmatprep.subr.bf16.mxu0 %v1009
    %1401 = vmatpush1.bf16.msra.mxu0 %v1008
    %1402 = vmatprep.subr.bf16.mxu0 %v1013
    %1403 = vmatpush1.bf16.msra.mxu0 %v1012
    %1404 = vmatprep.mubr.bf16.mxu0 %v397
    %1405 = vmatmul.mubr.bf16.gmra.mrb[0].mxu0 %v396
    %v1406 = vpop.f32.mrb[0].mxu0
    %v1407 = vadd.f32 %v557, %v1406
    %v1408 = vpop.f32.mrb[0].mxu0
    %v1409 = vadd.f32 %v561, %v1408
    %v1410 = vpop.f32.mrb[0].mxu0
    %v1411 = vadd.f32 %v557, %v1410
    %v1412 = vpop.f32.mrb[0].mxu0
    %v1413 = vadd.f32 %v561, %v1412
    %1414 = vmatprep.mubr.bf16.mxu0 %v401
    %1415 = vmatmul.mubr.bf16.gmra.mrb[0].mxu0 %v400
    %v1416 = vpop.f32.mrb[0].mxu0
    %v1417 = vadd.f32 %v557, %v1416
    %v1418 = vpop.f32.mrb[0].mxu0
    %v1419 = vadd.f32 %v561, %v1418
    %v1420 = vpop.f32.mrb[0].mxu0
    %v1421 = vadd.f32 %v557, %v1420
    %v1422 = vpop.f32.mrb[0].mxu0
    %v1423 = vadd.f32 %v561, %v1422
    %1424 = vmatprep.mubr.bf16.mxu0 %v405
    %1425 = vmatmul.mubr.bf16.gmra.mrb[0].mxu0 %v404
    %v1426 = vpop.f32.mrb[0].mxu0
    %v1427 = vadd.f32 %v557, %v1426
    %v1428 = vpop.f32.mrb[0].mxu0
    %v1429 = vadd.f32 %v561, %v1428
    %v1430 = vpop.f32.mrb[0].mxu0
    %v1431 = vadd.f32 %v557, %v1430
    %v1432 = vpop.f32.mrb[0].mxu0
    %v1433 = vadd.f32 %v561, %v1432
    %1434 = vmatprep.mubr.bf16.mxu0 %v409
    %1435 = vmatmul.mubr.bf16.gmra.mrb[0].mxu0 %v408
    %v1436 = vpop.f32.mrb[0].mxu0
    %v1437 = vadd.f32 %v557, %v1436
    %v1438 = vpop.f32.mrb[0].mxu0
    %v1439 = vadd.f32 %v561, %v1438
    %v1440 = vpop.f32.mrb[0].mxu0
    %v1441 = vadd.f32 %v557, %v1440
    %v1442 = vpop.f32.mrb[0].mxu0
    %v1443 = vadd.f32 %v561, %v1442
    %1444 = vmatprep.mubr.bf16.mxu0 %v413
    %1445 = vmatmul.mubr.bf16.gmra.mrb[0].mxu0 %v412
    %v1446 = vpop.f32.mrb[0].mxu0
    %v1447 = vadd.f32 %v557, %v1446
    %v1448 = vpop.f32.mrb[0].mxu0
    %v1449 = vadd.f32 %v561, %v1448
    %v1450 = vpop.f32.mrb[0].mxu0
    %v1451 = vadd.f32 %v557, %v1450
    %v1452 = vpop.f32.mrb[0].mxu0
    %v1453 = vadd.f32 %v561, %v1452
    %1454 = vdwg.mxu0
    %1455 = vmatprep.subr.bf16.mxu0 %v1017
    %1456 = vmatpush1.bf16.msra.mxu0 %v1016
    %1457 = vmatprep.subr.bf16.mxu0 %v1021
    %1458 = vmatpush1.bf16.msra.mxu0 %v1020
    %1459 = vmatprep.subr.bf16.mxu0 %v1025
    %1460 = vmatpush1.bf16.msra.mxu0 %v1024
    %1461 = vmatprep.subr.bf16.mxu0 %v1029
    %1462 = vmatpush1.bf16.msra.mxu0 %v1028
    %1463 = vmatprep.subr.bf16.mxu0 %v1033
    %1464 = vmatpush1.bf16.msra.mxu0 %v1032
    %1465 = vmatprep.subr.bf16.mxu0 %v1037
    %1466 = vmatpush1.bf16.msra.mxu0 %v1036
    %1467 = vmatprep.subr.bf16.mxu0 %v1041
    %1468 = vmatpush1.bf16.msra.mxu0 %v1040
    %1469 = vmatprep.subr.bf16.mxu0 %v1045
    %1470 = vmatpush1.bf16.msra.mxu0 %v1044
    %1471 = vmatprep.subr.bf16.mxu0 %v1049
    %1472 = vmatpush1.bf16.msra.mxu0 %v1048
    %1473 = vmatprep.subr.bf16.mxu0 %v1053
    %1474 = vmatpush1.bf16.msra.mxu0 %v1052
    %1475 = vmatprep.subr.bf16.mxu0 %v1057
    %1476 = vmatpush1.bf16.msra.mxu0 %v1056
    %1477 = vmatprep.subr.bf16.mxu0 %v1061
    %1478 = vmatpush1.bf16.msra.mxu0 %v1060
    %1479 = vmatprep.subr.bf16.mxu0 %v1065
    %1480 = vmatpush1.bf16.msra.mxu0 %v1064
    %1481 = vmatprep.subr.bf16.mxu0 %v1069
    %1482 = vmatpush1.bf16.msra.mxu0 %v1068
    %1483 = vmatprep.subr.bf16.mxu0 %v1073
    %1484 = vmatpush1.bf16.msra.mxu0 %v1072
    %1485 = vmatprep.subr.bf16.mxu0 %v1077
    %1486 = vmatpush1.bf16.msra.mxu0 %v1076
    %1487 = vmatprep.mubr.bf16.mxu0 %v399
    %1488 = vmatmul.mubr.bf16.gmra.mrb[0].mxu0 %v398
    %v1489 = vpop.f32.mrb[0].mxu0
    %v1490 = vadd.f32 %v1407, %v1489
    %v1491 = vpop.f32.mrb[0].mxu0
    %v1492 = vadd.f32 %v1409, %v1491
    %v1493 = vpop.f32.mrb[0].mxu0
    %v1494 = vadd.f32 %v1411, %v1493
    %v1495 = vpop.f32.mrb[0].mxu0
    %v1496 = vadd.f32 %v1413, %v1495
    %1497 = vmatprep.mubr.bf16.mxu0 %v403
    %1498 = vmatmul.mubr.bf16.gmra.mrb[0].mxu0 %v402
    %v1499 = vpop.f32.mrb[0].mxu0
    %v1500 = vadd.f32 %v1417, %v1499
    %v1501 = vpop.f32.mrb[0].mxu0
    %v1502 = vadd.f32 %v1419, %v1501
    %v1503 = vpop.f32.mrb[0].mxu0
    %v1504 = vadd.f32 %v1421, %v1503
    %v1505 = vpop.f32.mrb[0].mxu0
    %v1506 = vadd.f32 %v1423, %v1505
    %1507 = vmatprep.mubr.bf16.mxu0 %v407
    %1508 = vmatmul.mubr.bf16.gmra.mrb[0].mxu0 %v406
    %v1509 = vpop.f32.mrb[0].mxu0
    %v1510 = vadd.f32 %v1427, %v1509
    %v1511 = vpop.f32.mrb[0].mxu0
    %v1512 = vadd.f32 %v1429, %v1511
    %v1513 = vpop.f32.mrb[0].mxu0
    %v1514 = vadd.f32 %v1431, %v1513
    %v1515 = vpop.f32.mrb[0].mxu0
    %v1516 = vadd.f32 %v1433, %v1515
    %1517 = vmatprep.mubr.bf16.mxu0 %v411
    %1518 = vmatmul.mubr.bf16.gmra.mrb[0].mxu0 %v410
    %v1519 = vpop.f32.mrb[0].mxu0
    %v1520 = vadd.f32 %v1437, %v1519
    %v1521 = vpop.f32.mrb[0].mxu0
    %v1522 = vadd.f32 %v1439, %v1521
    %v1523 = vpop.f32.mrb[0].mxu0
    %v1524 = vadd.f32 %v1441, %v1523
    %v1525 = vpop.f32.mrb[0].mxu0
    %v1526 = vadd.f32 %v1443, %v1525
    %1527 = vmatprep.mubr.bf16.mxu0 %v415
    %1528 = vmatmul.mubr.bf16.gmra.mrb[0].mxu0 %v414
    %v1529 = vpop.f32.mrb[0].mxu0
    %v1530 = vadd.f32 %v1447, %v1529
    %v1531 = vpop.f32.mrb[0].mxu0
    %v1532 = vadd.f32 %v1449, %v1531
    %v1533 = vpop.f32.mrb[0].mxu0
    %v1534 = vadd.f32 %v1451, %v1533
    %v1535 = vpop.f32.mrb[0].mxu0
    %v1536 = vadd.f32 %v1453, %v1535
    %1537 = vdwg.mxu0
    %v1538 = vmax.f32 %v1324, 0.0
    %v1539 = vmax.f32 %v1326, 0.0
    %v1540 = vmax.f32 %v1490, 0.0
    %v1541 = vmax.f32 %v1492, 0.0
    %v1542 = vmax.f32 %v1328, 0.0
    %v1543 = vmax.f32 %v1330, 0.0
    %v1544 = vmax.f32 %v1494, 0.0
    %v1545 = vmax.f32 %v1496, 0.0
    %v1546 = vmax.f32 %v1334, 0.0
    %v1547 = vmax.f32 %v1336, 0.0
    %v1548 = vmax.f32 %v1500, 0.0
    %v1549 = vmax.f32 %v1502, 0.0
    %v1550 = vmax.f32 %v1338, 0.0
    %v1551 = vmax.f32 %v1340, 0.0
    %v1552 = vmax.f32 %v1504, 0.0
    %v1553 = vmax.f32 %v1506, 0.0
    %v1554 = vmax.f32 %v1344, 0.0
    %v1555 = vmax.f32 %v1346, 0.0
    %v1556 = vmax.f32 %v1510, 0.0
    %v1557 = vmax.f32 %v1512, 0.0
    %v1558 = vmax.f32 %v1348, 0.0
    %v1559 = vmax.f32 %v1350, 0.0
    %v1560 = vmax.f32 %v1514, 0.0
    %v1561 = vmax.f32 %v1516, 0.0
    %v1562 = vmax.f32 %v1354, 0.0
    %v1563 = vmax.f32 %v1356, 0.0
    %v1564 = vmax.f32 %v1520, 0.0
    %v1565 = vmax.f32 %v1522, 0.0
    %v1566 = vmax.f32 %v1358, 0.0
    %v1567 = vmax.f32 %v1360, 0.0
    %v1568 = vmax.f32 %v1524, 0.0
    %v1569 = vmax.f32 %v1526, 0.0
    %v1570 = vmax.f32 %v1364, 0.0
    %v1571 = vmax.f32 %v1366, 0.0
    %v1572 = vmax.f32 %v1530, 0.0
    %v1573 = vmax.f32 %v1532, 0.0
    %v1574 = vmax.f32 %v1368, 0.0
    %v1575 = vmax.f32 %v1370, 0.0
    %v1576 = vmax.f32 %v1534, 0.0
    %v1577 = vmax.f32 %v1536, 0.0
    %v1578 = vpack.c.bf16 %v1542, %v1538
    %v1579 = vpack.c.bf16 %v1543, %v1539
    %v1580 = vpack.c.bf16 %v1544, %v1540
    %v1581 = vpack.c.bf16 %v1545, %v1541
    %v1582 = vpack.c.bf16 %v1550, %v1546
    %v1583 = vpack.c.bf16 %v1551, %v1547
    %v1584 = vpack.c.bf16 %v1552, %v1548
    %v1585 = vpack.c.bf16 %v1553, %v1549
    %v1586 = vpack.c.bf16 %v1558, %v1554
    %v1587 = vpack.c.bf16 %v1559, %v1555
    %v1588 = vpack.c.bf16 %v1560, %v1556
    %v1589 = vpack.c.bf16 %v1561, %v1557
    %v1590 = vpack.c.bf16 %v1566, %v1562
    %v1591 = vpack.c.bf16 %v1567, %v1563
    %v1592 = vpack.c.bf16 %v1568, %v1564
    %v1593 = vpack.c.bf16 %v1569, %v1565
    %v1594 = vpack.c.bf16 %v1574, %v1570
    %v1595 = vpack.c.bf16 %v1575, %v1571
    %v1596 = vpack.c.bf16 %v1576, %v1572
    %v1597 = vpack.c.bf16 %v1577, %v1573
    %v1598 = vld [vmem:[#allocation7] sm:$0xf]
    %v1599 = vld [vmem:[#allocation7 + $0x4] sm:$0xf]
    %v1600 = vld [vmem:[#allocation7 + $0x8] sm:$0xf]
    %v1601 = vld [vmem:[#allocation7 + $0xc] sm:$0xf]
    %v1602 = vld [vmem:[#allocation7 + $0x10] sm:$0xf]
    %v1603 = vld [vmem:[#allocation7 + $0x14] sm:$0xf]
    %v1604 = vld [vmem:[#allocation7 + $0x18] sm:$0xf]
    %v1605 = vld [vmem:[#allocation7 + $0x1c] sm:$0xf]
    %v1606 = vld [vmem:[#allocation7 + $0x20] sm:$0xf]
    %v1607 = vld [vmem:[#allocation7 + $0x24] sm:$0xf]
    %v1608 = vld [vmem:[#allocation7 + $0x28] sm:$0xf]
    %v1609 = vld [vmem:[#allocation7 + $0x2c] sm:$0xf]
    %v1610 = vld [vmem:[#allocation7 + $0x30] sm:$0xf]
    %v1611 = vld [vmem:[#allocation7 + $0x34] sm:$0xf]
    %v1612 = vld [vmem:[#allocation7 + $0x38] sm:$0xf]
    %v1613 = vld [vmem:[#allocation7 + $0x3c] sm:$0xf]
    %v1614 = vld [vmem:[#allocation7 + $0x40] sm:$0xf]
    %v1615 = vld [vmem:[#allocation7 + $0x44] sm:$0xf]
    %v1616 = vld [vmem:[#allocation7 + $0x48] sm:$0xf]
    %v1617 = vld [vmem:[#allocation7 + $0x4c] sm:$0xf]
    %v1618 = vld [vmem:[#allocation7 + $0x50] sm:$0xf]
    %v1619 = vld [vmem:[#allocation7 + $0x54] sm:$0xf]
    %v1620 = vld [vmem:[#allocation7 + $0x58] sm:$0xf]
    %v1621 = vld [vmem:[#allocation7 + $0x5c] sm:$0xf]
    %v1622 = vld [vmem:[#allocation7 + $0x60] sm:$0xf]
    %v1623 = vld [vmem:[#allocation7 + $0x64] sm:$0xf]
    %v1624 = vld [vmem:[#allocation7 + $0x68] sm:$0xf]
    %v1625 = vld [vmem:[#allocation7 + $0x6c] sm:$0xf]
    %v1626 = vld [vmem:[#allocation7 + $0x70] sm:$0xf]
    %v1627 = vld [vmem:[#allocation7 + $0x74] sm:$0xf]
    %v1628 = vld [vmem:[#allocation7 + $0x78] sm:$0xf]
    %v1629 = vld [vmem:[#allocation7 + $0x7c] sm:$0xf]
    %v1630 = vld [vmem:[#allocation7 + $0x80] sm:$0xf]
    %v1631 = vld [vmem:[#allocation7 + $0x84] sm:$0xf]
    %v1632 = vld [vmem:[#allocation7 + $0x88] sm:$0xf]
    %v1633 = vld [vmem:[#allocation7 + $0x8c] sm:$0xf]
    %v1634 = vld [vmem:[#allocation7 + $0x90] sm:$0xf]
    %v1635 = vld [vmem:[#allocation7 + $0x94] sm:$0xf]
    %v1636 = vld [vmem:[#allocation7 + $0x98] sm:$0xf]
    %v1637 = vld [vmem:[#allocation7 + $0x9c] sm:$0xf]
    %v1638 = vld [vmem:[#allocation7 + $0xa0] sm:$0xf]
    %v1639 = vld [vmem:[#allocation7 + $0xa4] sm:$0xf]
    %v1640 = vld [vmem:[#allocation7 + $0xa8] sm:$0xf]
    %v1641 = vld [vmem:[#allocation7 + $0xac] sm:$0xf]
    %v1642 = vld [vmem:[#allocation7 + $0xb0] sm:$0xf]
    %v1643 = vld [vmem:[#allocation7 + $0xb4] sm:$0xf]
    %v1644 = vld [vmem:[#allocation7 + $0xb8] sm:$0xf]
    %v1645 = vld [vmem:[#allocation7 + $0xbc] sm:$0xf]
    %v1646 = vld [vmem:[#allocation7 + $0xc0] sm:$0xf]
    %v1647 = vld [vmem:[#allocation7 + $0xc4] sm:$0xf]
    %v1648 = vld [vmem:[#allocation7 + $0xc8] sm:$0xf]
    %v1649 = vld [vmem:[#allocation7 + $0xcc] sm:$0xf]
    %v1650 = vld [vmem:[#allocation7 + $0xd0] sm:$0xf]
    %v1651 = vld [vmem:[#allocation7 + $0xd4] sm:$0xf]
    %v1652 = vld [vmem:[#allocation7 + $0xd8] sm:$0xf]
    %v1653 = vld [vmem:[#allocation7 + $0xdc] sm:$0xf]
    %v1654 = vld [vmem:[#allocation7 + $0xe0] sm:$0xf]
    %v1655 = vld [vmem:[#allocation7 + $0xe4] sm:$0xf]
    %v1656 = vld [vmem:[#allocation7 + $0xe8] sm:$0xf]
    %v1657 = vld [vmem:[#allocation7 + $0xec] sm:$0xf]
    %v1658 = vld [vmem:[#allocation7 + $0xf0] sm:$0xf]
    %v1659 = vld [vmem:[#allocation7 + $0xf4] sm:$0xf]
    %v1660 = vld [vmem:[#allocation7 + $0xf8] sm:$0xf]
    %v1661 = vld [vmem:[#allocation7 + $0xfc] sm:$0xf]
    %v1662 = vld [vmem:[%s6] sm:$0x1]
    %v1664 = vlaneseq
    %v1665 = vshrl.u32 %v1664, 7
    %v1666 = vsub.s32 0, %v1665
    %v1667 = vrot.slane %v1662, %v1666
    %v1733 = vunpack.c.l.b16 %v1598
    %v1734 = vunpack.c.l.b16 %v1599
    %v1735 = vunpack.c.l.b16 %v1600
    %v1736 = vunpack.c.l.b16 %v1601
    %v1737 = vunpack.c.l.b16 %v1602
    %v1738 = vunpack.c.l.b16 %v1603
    %v1739 = vunpack.c.l.b16 %v1604
    %v1740 = vunpack.c.l.b16 %v1605
    %v1741 = vunpack.c.l.b16 %v1606
    %v1742 = vunpack.c.l.b16 %v1607
    %v1743 = vunpack.c.l.b16 %v1608
    %v1744 = vunpack.c.l.b16 %v1609
    %v1745 = vunpack.c.l.b16 %v1610
    %v1746 = vunpack.c.l.b16 %v1611
    %v1747 = vunpack.c.l.b16 %v1612
    %v1748 = vunpack.c.l.b16 %v1613
    %v1749 = vunpack.c.l.b16 %v1614
    %v1750 = vunpack.c.l.b16 %v1615
    %v1751 = vunpack.c.l.b16 %v1616
    %v1752 = vunpack.c.l.b16 %v1617
    %v1753 = vunpack.c.l.b16 %v1618
    %v1754 = vunpack.c.l.b16 %v1619
    %v1755 = vunpack.c.l.b16 %v1620
    %v1756 = vunpack.c.l.b16 %v1621
    %v1757 = vunpack.c.l.b16 %v1622
    %v1758 = vunpack.c.l.b16 %v1623
    %v1759 = vunpack.c.l.b16 %v1624
    %v1760 = vunpack.c.l.b16 %v1625
    %v1761 = vunpack.c.l.b16 %v1626
    %v1762 = vunpack.c.l.b16 %v1627
    %v1763 = vunpack.c.l.b16 %v1628
    %v1764 = vunpack.c.l.b16 %v1629
    %v1765 = vunpack.c.l.b16 %v1630
    %v1766 = vunpack.c.l.b16 %v1631
    %v1767 = vunpack.c.l.b16 %v1632
    %v1768 = vunpack.c.l.b16 %v1633
    %v1769 = vunpack.c.l.b16 %v1634
    %v1770 = vunpack.c.l.b16 %v1635
    %v1771 = vunpack.c.l.b16 %v1636
    %v1772 = vunpack.c.l.b16 %v1637
    %v1773 = vunpack.c.l.b16 %v1638
    %v1774 = vunpack.c.l.b16 %v1639
    %v1775 = vunpack.c.l.b16 %v1640
    %v1776 = vunpack.c.l.b16 %v1641
    %v1777 = vunpack.c.l.b16 %v1642
    %v1778 = vunpack.c.l.b16 %v1643
    %v1779 = vunpack.c.l.b16 %v1644
    %v1780 = vunpack.c.l.b16 %v1645
    %v1781 = vunpack.c.l.b16 %v1646
    %v1782 = vunpack.c.l.b16 %v1647
    %v1783 = vunpack.c.l.b16 %v1648
    %v1784 = vunpack.c.l.b16 %v1649
    %v1785 = vunpack.c.l.b16 %v1650
    %v1786 = vunpack.c.l.b16 %v1651
    %v1787 = vunpack.c.l.b16 %v1652
    %v1788 = vunpack.c.l.b16 %v1653
    %v1789 = vunpack.c.l.b16 %v1654
    %v1790 = vunpack.c.l.b16 %v1655
    %v1791 = vunpack.c.l.b16 %v1656
    %v1792 = vunpack.c.l.b16 %v1657
    %v1793 = vunpack.c.l.b16 %v1658
    %v1794 = vunpack.c.l.b16 %v1659
    %v1795 = vunpack.c.l.b16 %v1660
    %v1796 = vunpack.c.l.b16 %v1661
    %v1797 = vpack.c.b16 %v1734, %v1733
    %v1798 = vpack.c.b16 %v1736, %v1735
    %v1799 = vpack.c.b16 %v1738, %v1737
    %v1800 = vpack.c.b16 %v1740, %v1739
    %v1801 = vpack.c.b16 %v1742, %v1741
    %v1802 = vpack.c.b16 %v1744, %v1743
    %v1803 = vpack.c.b16 %v1746, %v1745
    %v1804 = vpack.c.b16 %v1748, %v1747
    %v1805 = vpack.c.b16 %v1750, %v1749
    %v1806 = vpack.c.b16 %v1752, %v1751
    %v1807 = vpack.c.b16 %v1754, %v1753
    %v1808 = vpack.c.b16 %v1756, %v1755
    %v1809 = vpack.c.b16 %v1758, %v1757
    %v1810 = vpack.c.b16 %v1760, %v1759
    %v1811 = vpack.c.b16 %v1762, %v1761
    %v1812 = vpack.c.b16 %v1764, %v1763
    %v1813 = vpack.c.b16 %v1766, %v1765
    %v1814 = vpack.c.b16 %v1768, %v1767
    %v1815 = vpack.c.b16 %v1770, %v1769
    %v1816 = vpack.c.b16 %v1772, %v1771
    %v1817 = vpack.c.b16 %v1774, %v1773
    %v1818 = vpack.c.b16 %v1776, %v1775
    %v1819 = vpack.c.b16 %v1778, %v1777
    %v1820 = vpack.c.b16 %v1780, %v1779
    %v1821 = vpack.c.b16 %v1782, %v1781
    %v1822 = vpack.c.b16 %v1784, %v1783
    %v1823 = vpack.c.b16 %v1786, %v1785
    %v1824 = vpack.c.b16 %v1788, %v1787
    %v1825 = vpack.c.b16 %v1790, %v1789
    %v1826 = vpack.c.b16 %v1792, %v1791
    %v1827 = vpack.c.b16 %v1794, %v1793
    %v1828 = vpack.c.b16 %v1796, %v1795
    %1861 = vmatprep.subr.bf16.mxu0 0
    %1862 = vmatpush1.bf16.msra.mxu0 %v1797
    %1863 = vmatprep.subr.bf16.mxu0 0
    %1864 = vmatpush1.bf16.msra.mxu0 %v1798
    %1865 = vmatprep.subr.bf16.mxu0 0
    %1866 = vmatpush1.bf16.msra.mxu0 %v1799
    %1867 = vmatprep.subr.bf16.mxu0 0
    %1868 = vmatpush1.bf16.msra.mxu0 %v1800
    %1869 = vmatprep.subr.bf16.mxu0 0
    %1870 = vmatpush1.bf16.msra.mxu0 %v1801
    %1871 = vmatprep.subr.bf16.mxu0 0
    %1872 = vmatpush1.bf16.msra.mxu0 %v1802
    %1873 = vmatprep.subr.bf16.mxu0 0
    %1874 = vmatpush1.bf16.msra.mxu0 %v1803
    %1875 = vmatprep.subr.bf16.mxu0 0
    %1876 = vmatpush1.bf16.msra.mxu0 %v1804
    %1877 = vmatprep.subr.bf16.mxu0 0
    %1878 = vmatpush1.bf16.msra.mxu0 %v1805
    %1879 = vmatprep.subr.bf16.mxu0 0
    %1880 = vmatpush1.bf16.msra.mxu0 %v1806
    %1881 = vmatprep.subr.bf16.mxu0 0
    %1882 = vmatpush1.bf16.msra.mxu0 %v1807
    %1883 = vmatprep.subr.bf16.mxu0 0
    %1884 = vmatpush1.bf16.msra.mxu0 %v1808
    %1885 = vmatprep.subr.bf16.mxu0 0
    %1886 = vmatpush1.bf16.msra.mxu0 %v1809
    %1887 = vmatprep.subr.bf16.mxu0 0
    %1888 = vmatpush1.bf16.msra.mxu0 %v1810
    %1889 = vmatprep.subr.bf16.mxu0 0
    %1890 = vmatpush1.bf16.msra.mxu0 %v1811
    %1891 = vmatprep.subr.bf16.mxu0 0
    %1892 = vmatpush1.bf16.msra.mxu0 %v1812
    %1893 = vmatprep.mubr.bf16.mxu0 %v1579
    %1894 = vmatmul.mubr.bf16.gmra.mrb[0].mxu0 %v1578
    %v1895 = vpop.f32.mrb[0].mxu0
    %v1896 = vadd.f32 %v1667, %v1895
    %v1897 = vpop.f32.mrb[0].mxu0
    %v1898 = vpop.f32.mrb[0].mxu0
    %v1899 = vadd.f32 %v1667, %v1898
    %v1900 = vpop.f32.mrb[0].mxu0
    %1901 = vmatprep.mubr.bf16.mxu0 %v1583
    %1902 = vmatmul.mubr.bf16.gmra.mrb[0].mxu0 %v1582
    %v1903 = vpop.f32.mrb[0].mxu0
    %v1904 = vadd.f32 %v1667, %v1903
    %v1905 = vpop.f32.mrb[0].mxu0
    %v1906 = vpop.f32.mrb[0].mxu0
    %v1907 = vadd.f32 %v1667, %v1906
    %v1908 = vpop.f32.mrb[0].mxu0
    %1909 = vmatprep.mubr.bf16.mxu0 %v1587
    %1910 = vmatmul.mubr.bf16.gmra.mrb[0].mxu0 %v1586
    %v1911 = vpop.f32.mrb[0].mxu0
    %v1912 = vadd.f32 %v1667, %v1911
    %v1913 = vpop.f32.mrb[0].mxu0
    %v1914 = vpop.f32.mrb[0].mxu0
    %v1915 = vadd.f32 %v1667, %v1914
    %v1916 = vpop.f32.mrb[0].mxu0
    %1917 = vmatprep.mubr.bf16.mxu0 %v1591
    %1918 = vmatmul.mubr.bf16.gmra.mrb[0].mxu0 %v1590
    %v1919 = vpop.f32.mrb[0].mxu0
    %v1920 = vadd.f32 %v1667, %v1919
    %v1921 = vpop.f32.mrb[0].mxu0
    %v1922 = vpop.f32.mrb[0].mxu0
    %v1923 = vadd.f32 %v1667, %v1922
    %v1924 = vpop.f32.mrb[0].mxu0
    %1925 = vmatprep.mubr.bf16.mxu0 %v1595
    %1926 = vmatmul.mubr.bf16.gmra.mrb[0].mxu0 %v1594
    %v1927 = vpop.f32.mrb[0].mxu0
    %v1928 = vadd.f32 %v1667, %v1927
    %v1929 = vpop.f32.mrb[0].mxu0
    %v1930 = vpop.f32.mrb[0].mxu0
    %v1931 = vadd.f32 %v1667, %v1930
    %v1932 = vpop.f32.mrb[0].mxu0
    %1933 = vdwg.mxu0
    %1934 = vmatprep.subr.bf16.mxu0 0
    %1935 = vmatpush1.bf16.msra.mxu0 %v1813
    %1936 = vmatprep.subr.bf16.mxu0 0
    %1937 = vmatpush1.bf16.msra.mxu0 %v1814
    %1938 = vmatprep.subr.bf16.mxu0 0
    %1939 = vmatpush1.bf16.msra.mxu0 %v1815
    %1940 = vmatprep.subr.bf16.mxu0 0
    %1941 = vmatpush1.bf16.msra.mxu0 %v1816
    %1942 = vmatprep.subr.bf16.mxu0 0
    %1943 = vmatpush1.bf16.msra.mxu0 %v1817
    %1944 = vmatprep.subr.bf16.mxu0 0
    %1945 = vmatpush1.bf16.msra.mxu0 %v1818
    %1946 = vmatprep.subr.bf16.mxu0 0
    %1947 = vmatpush1.bf16.msra.mxu0 %v1819
    %1948 = vmatprep.subr.bf16.mxu0 0
    %1949 = vmatpush1.bf16.msra.mxu0 %v1820
    %1950 = vmatprep.subr.bf16.mxu0 0
    %1951 = vmatpush1.bf16.msra.mxu0 %v1821
    %1952 = vmatprep.subr.bf16.mxu0 0
    %1953 = vmatpush1.bf16.msra.mxu0 %v1822
    %1954 = vmatprep.subr.bf16.mxu0 0
    %1955 = vmatpush1.bf16.msra.mxu0 %v1823
    %1956 = vmatprep.subr.bf16.mxu0 0
    %1957 = vmatpush1.bf16.msra.mxu0 %v1824
    %1958 = vmatprep.subr.bf16.mxu0 0
    %1959 = vmatpush1.bf16.msra.mxu0 %v1825
    %1960 = vmatprep.subr.bf16.mxu0 0
    %1961 = vmatpush1.bf16.msra.mxu0 %v1826
    %1962 = vmatprep.subr.bf16.mxu0 0
    %1963 = vmatpush1.bf16.msra.mxu0 %v1827
    %1964 = vmatprep.subr.bf16.mxu0 0
    %1965 = vmatpush1.bf16.msra.mxu0 %v1828
    %1966 = vmatprep.mubr.bf16.mxu0 %v1581
    %1967 = vmatmul.mubr.bf16.gmra.mrb[0].mxu0 %v1580
    %v1968 = vpop.f32.mrb[0].mxu0
    %v1969 = vadd.f32 %v1896, %v1968
    %v1970 = vpop.f32.mrb[0].mxu0
    %v1971 = vpop.f32.mrb[0].mxu0
    %v1972 = vadd.f32 %v1899, %v1971
    %v1973 = vpop.f32.mrb[0].mxu0
    %1974 = vmatprep.mubr.bf16.mxu0 %v1585
    %1975 = vmatmul.mubr.bf16.gmra.mrb[0].mxu0 %v1584
    %v1976 = vpop.f32.mrb[0].mxu0
    %v1977 = vadd.f32 %v1904, %v1976
    %v1978 = vpop.f32.mrb[0].mxu0
    %v1979 = vpop.f32.mrb[0].mxu0
    %v1980 = vadd.f32 %v1907, %v1979
    %v1981 = vpop.f32.mrb[0].mxu0
    %1982 = vmatprep.mubr.bf16.mxu0 %v1589
    %1983 = vmatmul.mubr.bf16.gmra.mrb[0].mxu0 %v1588
    %v1984 = vpop.f32.mrb[0].mxu0
    %v1985 = vadd.f32 %v1912, %v1984
    %v1986 = vpop.f32.mrb[0].mxu0
    %v1987 = vpop.f32.mrb[0].mxu0
    %v1988 = vadd.f32 %v1915, %v1987
    %v1989 = vpop.f32.mrb[0].mxu0
    %1990 = vmatprep.mubr.bf16.mxu0 %v1593
    %1991 = vmatmul.mubr.bf16.gmra.mrb[0].mxu0 %v1592
    %v1992 = vpop.f32.mrb[0].mxu0
    %v1993 = vadd.f32 %v1920, %v1992
    %v1994 = vpop.f32.mrb[0].mxu0
    %v1995 = vpop.f32.mrb[0].mxu0
    %v1996 = vadd.f32 %v1923, %v1995
    %v1997 = vpop.f32.mrb[0].mxu0
    %1998 = vmatprep.mubr.bf16.mxu0 %v1597
    %1999 = vmatmul.mubr.bf16.gmra.mrb[0].mxu0 %v1596
    %v2000 = vpop.f32.mrb[0].mxu0
    %v2001 = vadd.f32 %v1928, %v2000
    %v2002 = vpop.f32.mrb[0].mxu0
    %v2003 = vpop.f32.mrb[0].mxu0
    %v2004 = vadd.f32 %v1931, %v2003
    %v2005 = vpop.f32.mrb[0].mxu0
    %2006 = vdwg.mxu0
    %2007 = vst [vmem:[#allocation8] sm:$0xff] %v1969
    %2008 = vst [vmem:[#allocation8 + $0x8] sm:$0xff] %v1972
    %2009 = vst [vmem:[#allocation8 + $0x10] sm:$0xff] %v1977
    %2010 = vst [vmem:[#allocation8 + $0x18] sm:$0xff] %v1980
    %2011 = vst [vmem:[#allocation8 + $0x20] sm:$0xff] %v1985
    %2012 = vst [vmem:[#allocation8 + $0x28] sm:$0xff] %v1988
    %2013 = vst [vmem:[#allocation8 + $0x30] sm:$0xff] %v1993
    %2014 = vst [vmem:[#allocation8 + $0x38] sm:$0xff] %v1996
    %2015 = vst [vmem:[#allocation8 + $0x40] sm:$0xff] %v2001
    %2016 = vst [vmem:[#allocation8 + $0x48] sm:$0xff] %v2004
    // Predicated region
    $region42: #{tpu_custom_call.1} parent=1 // pred_check
      _
    $region43: #{tpu_custom_call.1} parent=1 // pred_check_branch
      %2018 = sbr.rel (0) target = $region45
    $region44: #{tpu_custom_call.1} parent=1 // pred_region
      %s2020 = ssub.s32 1280, 1280
      %2021 = vsyncadd [#allocation4], %s2020
      %s2022 = sshll.u32 [#allocation8], 4
      %s2023 = int_to_ptr.vmem [resolvable:$true] %s2022
      %2028 = dma.vmem_to_hbm [thread:$0]  %s2023, 1280, %s7, [#allocation4], 128, 128, 8
    $region45: #{tpu_custom_call.1} parent=1 // pred_fallthru
      _
    // Predicated region
    $region46: #{tpu_custom_call.1} parent=1 // pred_check
      _
    $region47: #{tpu_custom_call.1} parent=1 // pred_check_branch
      %2030 = sbr.rel (0) target = $region49
    $region48: #{tpu_custom_call.1} parent=1 // pred_region
      %2031 = dma.done [#allocation4], 1280
    $region49: #{tpu_custom_call.1} parent=1 // pred_fallthru
      _
    %2032 = vsyncpa [#allocation3], 1
    %2033 = vsyncpa [#allocation6], 1
    %2034 = vsyncpa [#allocation4], 1

</llo_original>
